<compile_context>
chip_gen: v7x
topology: tpu7x:2x2x1
jax: 0.10.0
libtpu: 0.0.40
codegen_flags: <defaults>
</compile_context>

<pallas_src>
import functools

import jax
import jax.numpy as jnp
from jax.experimental import pallas as pl
from jax.experimental.pallas import tpu as pltpu


# ----------------------------------------------------------------------------
# Pallas kernel
# ----------------------------------------------------------------------------
def upconv_kernel(body_ref, halo0_ref, halo1_ref, wmain_ref, wcorr_ref,
                  bias_ref, o_ref):
    # body_ref:  (1, b, W+2, Cin)   padded-input rows [t*b, t*b+b), b = TH//2
    # halo0_ref: (1, 1, W+2, Cin)   padded-input row t*b + b
    # halo1_ref: (1, 1, W+2, Cin)   padded-input row t*b + b + 1
    # wmain_ref: (9*Cin, 2*Cout)    W-polyphase conv weights (BN scale folded);
    #                               K ordered (ky, dx, cin); N = [even | odd]
    # wcorr_ref: (6*Cin, 2*Cout)    W-boundary (conv zero-pad) correction weights
    # bias_ref:  (1, 2*Cout)        folded BN bias (per phase), f32
    # o_ref:     (1, TH, W, 2*Cout) output tile; (W, 2*Cout) row-major == the
    #                               interleaved (Wu, Cout) NHWC layout
    b = body_ref.shape[1]
    Wp = body_ref.shape[2]
    Cin = body_ref.shape[3]
    W = Wp - 2
    TH = 2 * b
    C2 = wmain_ref.shape[1]
    Cout = C2 // 2

    t = pl.program_id(1)
    num_t = pl.num_programs(1)

    # ---- bilinear 2x upsample along H (align_corners=False); f32 blends ----
    xv = jnp.concatenate([body_ref[0], halo0_ref[0], halo1_ref[0]],
                         axis=0).astype(jnp.float32)              # (b+2, Wp, Cin)
    even = 0.25 * xv[0:b] + 0.75 * xv[1:b + 1]                     # up rows 2m
    odd = 0.75 * xv[1:b + 1] + 0.25 * xv[2:b + 2]                  # up rows 2m+1
    inter = jnp.stack([even, odd], axis=1).reshape(TH, Wp, Cin)
    # conv zero rows at the global top/bottom edge, real upsampled rows else.
    gate_top = (t > 0).astype(jnp.float32)
    gate_bot = (t < num_t - 1).astype(jnp.float32)
    top = (0.75 * xv[0] + 0.25 * xv[1]) * gate_top
    bot = (0.25 * xv[b] + 0.75 * xv[b + 1]) * gate_bot
    up = jnp.concatenate([top[None], inter, bot[None]], axis=0)    # (TH+2, Wp, Cin)

    # ---- single MXU matmul: K = 9*Cin taps, N = 2*Cout (even|odd W phase) --
    cdt = wmain_ref.dtype
    taps = [up[ky:ky + TH, dx:dx + W, :] for ky in range(3) for dx in range(3)]
    patch = jnp.concatenate(taps, axis=-1).astype(cdt)             # (TH, W, 9Cin)
    patch2 = patch.reshape(TH * W, 9 * Cin)
    prec = jax.lax.Precision.HIGHEST if cdt == jnp.float32 else None
    y = jnp.dot(patch2, wmain_ref[...],
                preferred_element_type=jnp.float32, precision=prec)
    y = y.reshape(TH, W, C2)

    # ---- W-boundary correction (conv zero cols at upsampled -1 and 2W) -----
    e0 = (0.75 * up[:, 0:1, :] + 0.25 * up[:, 1:2, :]).reshape(TH + 2, Cin)
    eL = (0.25 * up[:, W:W + 1, :] + 0.75 * up[:, W + 1:W + 2, :]).reshape(TH + 2, Cin)
    corr_lhs = jnp.concatenate(
        [e0[0:TH], e0[1:TH + 1], e0[2:TH + 2],
         eL[0:TH], eL[1:TH + 1], eL[2:TH + 2]], axis=-1).astype(cdt)  # (TH, 6Cin)
    corr = jnp.dot(corr_lhs, wcorr_ref[...],
                   preferred_element_type=jnp.float32, precision=prec)  # (TH, 2Cout)
    jcol = jax.lax.broadcasted_iota(jnp.int32, (W, C2), 0)
    ccol = jax.lax.broadcasted_iota(jnp.int32, (W, C2), 1)
    bmask = (((jcol == 0) & (ccol < Cout)) |
             ((jcol == W - 1) & (ccol >= Cout))).astype(jnp.float32)
    y = y - corr[:, None, :] * bmask[None, :, :]

    # ---- folded BatchNorm bias + ReLU; single store -------------------------
    y = jnp.maximum(y + bias_ref[...], 0.0)
    o_ref[0] = y.astype(o_ref.dtype)


# ----------------------------------------------------------------------------
# Generation-aware VMEM budgets and tile selection
# ----------------------------------------------------------------------------
def _vmem_budgets():
    # v5e/v6e: 128 MiB physical VMEM; v7x: 64 MiB.  Fall back conservatively.
    try:
        cap = int(pltpu.get_tpu_info().vmem_capacity_bytes)
    except Exception:
        cap = 64 * 1024 * 1024
    tile_budget = min(cap // 4, 28 * 1024 * 1024)      # ~16 MiB on v7x, 28 MiB else
    vmem_limit = int(min(cap * 3 // 4, 96 * 1024 * 1024))  # 48 MiB v7x, 96 MiB else
    return tile_budget, vmem_limit


def _choose_h_tile(N, Hu, W, Cin, Cout, in_item, out_item, budget_bytes,
                   min_steps=4):
    """Largest output-row tile fitting the budget while keeping >= min_steps
    grid steps (>= 2 per TensorCore on v7x megacore)."""
    cands = [th for th in range(2, Hu + 1, 2) if Hu % th == 0]
    if not cands:
        return Hu
    Wp, C2 = W + 2, 2 * Cout

    def tile_bytes(th):
        b = th // 2
        in_b = 2 * (b + 2) * Wp * Cin * in_item           # body + halos, 2x buffered
        out_b = 2 * th * W * C2 * out_item                # output block, 2x buffered
        up_b = 4 * (th + 2) * Wp * Cin * 4                # f32 upsample temporaries
        patch_b = 2 * th * W * 9 * Cin * 4                # tap patch (+ reshape copy)
        y_b = 3 * th * W * C2 * 4                         # matmul result + mask temps
        return in_b + out_b + up_b + patch_b + y_b

    fitting = [th for th in cands if tile_bytes(th) <= budget_bytes] or [cands[0]]
    prefer = [th for th in fitting if N * (Hu // th) >= min_steps]
    return max(prefer) if prefer else max(fitting)


# ----------------------------------------------------------------------------
# Public wrapper: NCHW in -> NCHW out (PyTorch convention; NHWC optional).
# ----------------------------------------------------------------------------
@functools.partial(jax.jit, static_argnames=("eps", "compute_dtype", "out_dtype",
                                             "h_tile", "out_layout"))
def upconv_forward(x_nchw, weight, gamma, beta, running_mean, running_var,
                   eps=1e-5, compute_dtype=jnp.float32, out_dtype=jnp.float32,
                   h_tile=None, out_layout="NCHW"):
    """PyTorch-equivalent `upconv` forward (inference-mode BatchNorm).

    x_nchw: (N, Cin, H, W); weight: (Cout, Cin, 3, 3).
    out_layout="NCHW" returns (N, Cout, 2H, 2W) (PyTorch layout);
    out_layout="NHWC" returns (N, 2H, 2W, Cout) and skips the final transpose.
    compute_dtype / out_dtype = jnp.bfloat16 halve HBM bytes (f32 blends and
    f32 matmul accumulation are kept).
    """
    if out_layout not in ("NCHW", "NHWC"):
        raise ValueError(out_layout)
    N, Cin, H, W = x_nchw.shape
    Cout = weight.shape[0]
    Hu, Wu = 2 * H, 2 * W
    cdt = jnp.dtype(compute_dtype)
    odt = jnp.dtype(out_dtype)

    # --- only pre-pass: NCHW -> NHWC + 1px edge pad of the SMALL input ------
    x = jnp.transpose(x_nchw, (0, 2, 3, 1)).astype(jnp.float32)
    xph = jnp.pad(x, ((0, 0), (1, 1), (1, 1), (0, 0)), mode="edge")
    xph = xph.astype(cdt)                                     # (N, H+2, W+2, Cin)

    # --- fold BN (inference) + bilinear W phases into the conv weights ------
    scale = gamma.astype(jnp.float32) / jnp.sqrt(
        running_var.astype(jnp.float32) + eps)
    wc = jnp.transpose(weight, (2, 3, 1, 0)).astype(jnp.float32) * scale  # (ky,kx,Cin,Cout)
    wc0, wc1, wc2 = wc[:, 0], wc[:, 1], wc[:, 2]              # (3, Cin, Cout) per kx
    we = jnp.stack([0.75 * wc0 + 0.25 * wc1,                  # even W phase, dx = 0..2
                    0.25 * wc0 + 0.75 * wc1 + 0.75 * wc2,
                    0.25 * wc2], axis=1)
    wo = jnp.stack([0.25 * wc0,                               # odd W phase
                    0.75 * wc0 + 0.75 * wc1 + 0.25 * wc2,
                    0.25 * wc1 + 0.75 * wc2], axis=1)
    w_main = jnp.concatenate([we, wo], axis=-1).reshape(9 * Cin, 2 * Cout).astype(cdt)
    zblk = jnp.zeros_like(wc0)
    w_corr = jnp.concatenate(
        [jnp.concatenate([wc0, zblk], axis=-1),               # q == 0 (even phase)
         jnp.concatenate([zblk, wc2], axis=-1)],              # q == Wu-1 (odd phase)
        axis=0).reshape(6 * Cin, 2 * Cout).astype(cdt)
    bias = beta.astype(jnp.float32) - running_mean.astype(jnp.float32) * scale
    bias2 = jnp.concatenate([bias, bias]).reshape(1, 2 * Cout)

    # --- tile size against a per-generation VMEM budget ----------------------
    tile_budget, vmem_limit = _vmem_budgets()
    TH = h_tile if h_tile is not None else _choose_h_tile(
        N, Hu, W, Cin, Cout, cdt.itemsize, odt.itemsize, tile_budget)
    assert Hu % TH == 0 and TH % 2 == 0, TH
    b = TH // 2
    T = Hu // TH
    Wp = W + 2

    cost = pl.CostEstimate(
        flops=2 * N * Hu * W * (9 * Cin) * (2 * Cout),
        transcendentals=0,
        bytes_accessed=int(xph.size * cdt.itemsize
                           + (w_main.size + w_corr.size) * cdt.itemsize
                           + bias2.size * 4
                           + N * Hu * Wu * Cout * odt.itemsize))

    # NOTE: for realistic channel counts (Cout >= 64) the 2*Cout output lane
    # dim is dense; W % 8 == 0 additionally keeps the in-kernel reshapes free.
    # TODO(synk): dedicated small-channel path folding W into the lane axis.
    out = pl.pallas_call(
        upconv_kernel,
        out_shape=jax.ShapeDtypeStruct((N, Hu, W, 2 * Cout), odt),
        grid=(N, T),
        in_specs=[
            pl.BlockSpec((1, b, Wp, Cin), lambda n, t: (n, t, 0, 0)),
            pl.BlockSpec((1, 1, Wp, Cin), lambda n, t: (n, (t + 1) * b, 0, 0)),
            pl.BlockSpec((1, 1, Wp, Cin), lambda n, t: (n, (t + 1) * b + 1, 0, 0)),
            pl.BlockSpec((9 * Cin, 2 * Cout), lambda n, t: (0, 0)),
            pl.BlockSpec((6 * Cin, 2 * Cout), lambda n, t: (0, 0)),
            pl.BlockSpec((1, 2 * Cout), lambda n, t: (0, 0)),
        ],
        out_specs=pl.BlockSpec((1, TH, W, 2 * Cout), lambda n, t: (n, t, 0, 0)),
        compiler_params=pltpu.CompilerParams(
            dimension_semantics=("parallel", "parallel"),
            vmem_limit_bytes=vmem_limit),
        cost_estimate=cost,
    )(xph, xph, xph, w_main, w_corr, bias2)

    # (N, Hu, W, 2*Cout) row-major == NHWC (N, Hu, Wu, Cout): free reshape.
    out_nhwc = out.reshape(N, Hu, Wu, Cout)
    if out_layout == "NHWC":
        return out_nhwc
    return jnp.transpose(out_nhwc, (0, 3, 1, 2))


# ----------------------------------------------------------------------------
# Pure-JAX reference (independent code path) for numerical sanity checks.
# ----------------------------------------------------------------------------
def _upconv_reference(x_nchw, weight, gamma, beta, mean, var, eps=1e-5):
    x = jnp.transpose(x_nchw, (0, 2, 3, 1)).astype(jnp.float32)
    _, H, W, _ = x.shape

    def up_idx(size):
        o = jnp.arange(2 * size, dtype=jnp.float32)
        src = jnp.maximum((o + 0.5) / 2.0 - 0.5, 0.0)
        i0 = jnp.floor(src).astype(jnp.int32)
        i1 = jnp.minimum(i0 + 1, size - 1)
        w1 = src - i0.astype(jnp.float32)
        return i0, i1, 1.0 - w1, w1

    hi0, hi1, hw0, hw1 = up_idx(H)
    wi0, wi1, ww0, ww1 = up_idx(W)
    xh = x[:, hi0] * hw0[None, :, None, None] + x[:, hi1] * hw1[None, :, None, None]
    xu = (xh[:, :, wi0] * ww0[None, None, :, None]
          + xh[:, :, wi1] * ww1[None, None, :, None])

    w_hwio = jnp.transpose(weight, (2, 3, 1, 0)).astype(jnp.float32)
    y = jax.lax.conv_general_dilated(
        xu, w_hwio, window_strides=(1, 1), padding="SAME",
        dimension_numbers=("NHWC", "HWIO", "NHWC"),
        precision=jax.lax.Precision.HIGHEST)
    scale = gamma / jnp.sqrt(var + eps)
    y = y * scale + (beta - mean * scale)
    y = jnp.maximum(y, 0.0)
    return jnp.transpose(y, (0, 3, 1, 2))


if __name__ == "__main__":
    key = jax.random.PRNGKey(0)
    k_x, k_w, k_g, k_b, k_m, k_v = jax.random.split(key, 6)

    N, Cin, Cout, H, W = 2, 4, 8, 16, 16

    x = jax.random.normal(k_x, (N, Cin, H, W), dtype=jnp.float32)
    weight = 0.1 * jax.random.normal(k_w, (Cout, Cin, 3, 3), dtype=jnp.float32)
    gamma = 1.0 + 0.05 * jax.random.normal(k_g, (Cout,), dtype=jnp.float32)
    beta = 0.05 * jax.random.normal(k_b, (Cout,), dtype=jnp.float32)
    running_mean = 0.1 * jax.random.normal(k_m, (Cout,), dtype=jnp.float32)
    running_var = jnp.abs(jax.random.normal(k_v, (Cout,), dtype=jnp.float32)) + 0.5

    ref = _upconv_reference(x, weight, gamma, beta, running_mean, running_var)

    # Default (f32, NCHW) path: must match PyTorch numerics tightly.
    out = upconv_forward(x, weight, gamma, beta, running_mean, running_var)
    jax.block_until_ready(out)
    assert out.shape == (N, Cout, 2 * H, 2 * W), out.shape
    err_f32 = float(jnp.max(jnp.abs(out - ref)))
    assert err_f32 < 2e-3, f"f32 max abs error vs reference: {err_f32}"

    # bf16 compute/output path (halved HBM traffic; looser tolerance).
    out_bf16 = upconv_forward(x, weight, gamma, beta, running_mean, running_var,
                              compute_dtype=jnp.bfloat16, out_dtype=jnp.bfloat16)
    jax.block_until_ready(out_bf16)
    err_bf16 = float(jnp.max(jnp.abs(out_bf16.astype(jnp.float32) - ref)))
    assert err_bf16 < 6e-2, f"bf16 max abs error vs reference: {err_bf16}"

    print("KERNEL_OK")
</pallas_src>

<mosaic_0001>
module attributes {stable_mosaic.version = 11 : i64} {
  func.func @upconv_kernel(%arg0: i32, %arg1: i32, %arg2: memref<1x8x18x4xf32, #tpu.memory_space<vmem>>, %arg3: memref<1x1x18x4xf32, #tpu.memory_space<vmem>>, %arg4: memref<1x1x18x4xf32, #tpu.memory_space<vmem>>, %arg5: memref<36x16xf32, #tpu.memory_space<vmem>>, %arg6: memref<24x16xf32, #tpu.memory_space<vmem>>, %arg7: memref<1x16xf32, #tpu.memory_space<vmem>>, %arg8: memref<1x16x16x16xf32, #tpu.memory_space<vmem>>) attributes {dimension_semantics = [#tpu.dimension_semantics<parallel>, #tpu.dimension_semantics<parallel>], iteration_bounds = array<i64: 2, 2>, scalar_prefetch = 0 : i64, scratch_operands = 0 : i64, tpu.core_type = #tpu.core_type<tc>, window_params = [{transform_indices = @transform_0, window_bounds = array<i64: 1, 8, 18, 4>}, {transform_indices = @transform_1, window_bounds = array<i64: 1, 1, 18, 4>}, {transform_indices = @transform_2, window_bounds = array<i64: 1, 1, 18, 4>}, {pipeline_mode = #tpu.pipeline_mode<synchronous>, transform_indices = @transform_3, window_bounds = array<i64: 36, 16>}, {pipeline_mode = #tpu.pipeline_mode<synchronous>, transform_indices = @transform_4, window_bounds = array<i64: 24, 16>}, {pipeline_mode = #tpu.pipeline_mode<synchronous>, transform_indices = @transform_5, window_bounds = array<i64: 1, 16>}, {transform_indices = @transform_6, window_bounds = array<i64: 1, 16, 16, 16>}]} {
    %c0 = arith.constant 0 : index
    %c0_0 = arith.constant 0 : index
    %c0_1 = arith.constant 0 : index
    %c0_2 = arith.constant 0 : index
    %0 = vector.load %arg2[%c0, %c0_0, %c0_1, %c0_2] : memref<1x8x18x4xf32, #tpu.memory_space<vmem>>, vector<1x8x18x4xf32>
    %1 = vector.shape_cast %0 : vector<1x8x18x4xf32> to vector<8x18x4xf32>
    %c0_3 = arith.constant 0 : index
    %c0_4 = arith.constant 0 : index
    %c0_5 = arith.constant 0 : index
    %c0_6 = arith.constant 0 : index
    %2 = vector.load %arg3[%c0_3, %c0_4, %c0_5, %c0_6] : memref<1x1x18x4xf32, #tpu.memory_space<vmem>>, vector<1x1x18x4xf32>
    %3 = vector.shape_cast %2 : vector<1x1x18x4xf32> to vector<1x18x4xf32>
    %c0_7 = arith.constant 0 : index
    %c0_8 = arith.constant 0 : index
    %c0_9 = arith.constant 0 : index
    %c0_10 = arith.constant 0 : index
    %4 = vector.load %arg4[%c0_7, %c0_8, %c0_9, %c0_10] : memref<1x1x18x4xf32, #tpu.memory_space<vmem>>, vector<1x1x18x4xf32>
    %5 = vector.shape_cast %4 : vector<1x1x18x4xf32> to vector<1x18x4xf32>
    %6 = tpu.concatenate %1, %3, %5 in 0 : vector<8x18x4xf32>, vector<1x18x4xf32>, vector<1x18x4xf32> -> vector<10x18x4xf32>
    %7 = vector.extract_strided_slice %6 {offsets = [0, 0, 0], sizes = [8, 18, 4], strides = [1, 1, 1]} : vector<10x18x4xf32> to vector<8x18x4xf32>
    %cst = arith.constant 2.500000e-01 : f32
    %8 = vector.broadcast %cst : f32 to vector<8x18x4xf32>
    %9 = arith.mulf %8, %7 : vector<8x18x4xf32>
    %10 = vector.extract_strided_slice %6 {offsets = [1, 0, 0], sizes = [8, 18, 4], strides = [1, 1, 1]} : vector<10x18x4xf32> to vector<8x18x4xf32>
    %cst_11 = arith.constant 7.500000e-01 : f32
    %11 = vector.broadcast %cst_11 : f32 to vector<8x18x4xf32>
    %12 = arith.mulf %11, %10 : vector<8x18x4xf32>
    %13 = arith.addf %9, %12 : vector<8x18x4xf32>
    %14 = vector.extract_strided_slice %6 {offsets = [1, 0, 0], sizes = [8, 18, 4], strides = [1, 1, 1]} : vector<10x18x4xf32> to vector<8x18x4xf32>
    %cst_12 = arith.constant 7.500000e-01 : f32
    %15 = vector.broadcast %cst_12 : f32 to vector<8x18x4xf32>
    %16 = arith.mulf %15, %14 : vector<8x18x4xf32>
    %17 = vector.extract_strided_slice %6 {offsets = [2, 0, 0], sizes = [8, 18, 4], strides = [1, 1, 1]} : vector<10x18x4xf32> to vector<8x18x4xf32>
    %cst_13 = arith.constant 2.500000e-01 : f32
    %18 = vector.broadcast %cst_13 : f32 to vector<8x18x4xf32>
    %19 = arith.mulf %18, %17 : vector<8x18x4xf32>
    %20 = arith.addf %16, %19 : vector<8x18x4xf32>
    %21 = vector.shape_cast %13 : vector<8x18x4xf32> to vector<8x1x18x4xf32>
    %22 = vector.shape_cast %20 : vector<8x18x4xf32> to vector<8x1x18x4xf32>
    %23 = tpu.concatenate %21, %22 in 1 : vector<8x1x18x4xf32>, vector<8x1x18x4xf32> -> vector<8x2x18x4xf32>
    %24 = vector.shape_cast %23 : vector<8x2x18x4xf32> to vector<16x18x4xf32>
    %c0_i32 = arith.constant 0 : i32
    %25 = arith.cmpi sgt, %arg1, %c0_i32 : i32
    %26 = arith.extui %25 : i1 to i32
    %27 = arith.sitofp %26 : i32 to f32
    %c1_i32 = arith.constant 1 : i32
    %28 = arith.cmpi slt, %arg1, %c1_i32 : i32
    %29 = arith.extui %28 : i1 to i32
    %30 = arith.sitofp %29 : i32 to f32
    %31 = vector.extract_strided_slice %6 {offsets = [0, 0, 0], sizes = [1, 18, 4], strides = [1, 1, 1]} : vector<10x18x4xf32> to vector<1x18x4xf32>
    %32 = vector.shape_cast %31 : vector<1x18x4xf32> to vector<18x4xf32>
    %cst_14 = arith.constant 7.500000e-01 : f32
    %33 = vector.broadcast %cst_14 : f32 to vector<18x4xf32>
    %34 = arith.mulf %33, %32 : vector<18x4xf32>
    %35 = vector.extract_strided_slice %6 {offsets = [1, 0, 0], sizes = [1, 18, 4], strides = [1, 1, 1]} : vector<10x18x4xf32> to vector<1x18x4xf32>
    %36 = vector.shape_cast %35 : vector<1x18x4xf32> to vector<18x4xf32>
    %cst_15 = arith.constant 2.500000e-01 : f32
    %37 = vector.broadcast %cst_15 : f32 to vector<18x4xf32>
    %38 = arith.mulf %37, %36 : vector<18x4xf32>
    %39 = arith.addf %34, %38 : vector<18x4xf32>
    %40 = vector.broadcast %27 : f32 to vector<18x4xf32>
    %41 = arith.mulf %39, %40 : vector<18x4xf32>
    %42 = vector.extract_strided_slice %6 {offsets = [8, 0, 0], sizes = [1, 18, 4], strides = [1, 1, 1]} : vector<10x18x4xf32> to vector<1x18x4xf32>
    %43 = vector.shape_cast %42 : vector<1x18x4xf32> to vector<18x4xf32>
    %cst_16 = arith.constant 2.500000e-01 : f32
    %44 = vector.broadcast %cst_16 : f32 to vector<18x4xf32>
    %45 = arith.mulf %44, %43 : vector<18x4xf32>
    %46 = vector.extract_strided_slice %6 {offsets = [9, 0, 0], sizes = [1, 18, 4], strides = [1, 1, 1]} : vector<10x18x4xf32> to vector<1x18x4xf32>
    %47 = vector.shape_cast %46 : vector<1x18x4xf32> to vector<18x4xf32>
    %cst_17 = arith.constant 7.500000e-01 : f32
    %48 = vector.broadcast %cst_17 : f32 to vector<18x4xf32>
    %49 = arith.mulf %48, %47 : vector<18x4xf32>
    %50 = arith.addf %45, %49 : vector<18x4xf32>
    %51 = vector.broadcast %30 : f32 to vector<18x4xf32>
    %52 = arith.mulf %50, %51 : vector<18x4xf32>
    %53 = vector.shape_cast %41 : vector<18x4xf32> to vector<1x18x4xf32>
    %54 = vector.shape_cast %52 : vector<18x4xf32> to vector<1x18x4xf32>
    %55 = tpu.concatenate %53, %24, %54 in 0 : vector<1x18x4xf32>, vector<16x18x4xf32>, vector<1x18x4xf32> -> vector<18x18x4xf32>
    %56 = vector.extract_strided_slice %55 {offsets = [0, 0, 0], sizes = [16, 16, 4], strides = [1, 1, 1]} : vector<18x18x4xf32> to vector<16x16x4xf32>
    %57 = vector.extract_strided_slice %55 {offsets = [0, 1, 0], sizes = [16, 16, 4], strides = [1, 1, 1]} : vector<18x18x4xf32> to vector<16x16x4xf32>
    %58 = vector.extract_strided_slice %55 {offsets = [0, 2, 0], sizes = [16, 16, 4], strides = [1, 1, 1]} : vector<18x18x4xf32> to vector<16x16x4xf32>
    %59 = vector.extract_strided_slice %55 {offsets = [1, 0, 0], sizes = [16, 16, 4], strides = [1, 1, 1]} : vector<18x18x4xf32> to vector<16x16x4xf32>
    %60 = vector.extract_strided_slice %55 {offsets = [1, 1, 0], sizes = [16, 16, 4], strides = [1, 1, 1]} : vector<18x18x4xf32> to vector<16x16x4xf32>
    %61 = vector.extract_strided_slice %55 {offsets = [1, 2, 0], sizes = [16, 16, 4], strides = [1, 1, 1]} : vector<18x18x4xf32> to vector<16x16x4xf32>
    %62 = vector.extract_strided_slice %55 {offsets = [2, 0, 0], sizes = [16, 16, 4], strides = [1, 1, 1]} : vector<18x18x4xf32> to vector<16x16x4xf32>
    %63 = vector.extract_strided_slice %55 {offsets = [2, 1, 0], sizes = [16, 16, 4], strides = [1, 1, 1]} : vector<18x18x4xf32> to vector<16x16x4xf32>
    %64 = vector.extract_strided_slice %55 {offsets = [2, 2, 0], sizes = [16, 16, 4], strides = [1, 1, 1]} : vector<18x18x4xf32> to vector<16x16x4xf32>
    %65 = tpu.concatenate %56, %57, %58, %59, %60, %61, %62, %63, %64 in 2 : vector<16x16x4xf32>, vector<16x16x4xf32>, vector<16x16x4xf32>, vector<16x16x4xf32>, vector<16x16x4xf32>, vector<16x16x4xf32>, vector<16x16x4xf32>, vector<16x16x4xf32>, vector<16x16x4xf32> -> vector<16x16x36xf32>
    %66 = vector.shape_cast %65 : vector<16x16x36xf32> to vector<256x36xf32>
    %c0_18 = arith.constant 0 : index
    %c0_19 = arith.constant 0 : index
    %67 = vector.load %arg5[%c0_18, %c0_19] : memref<36x16xf32, #tpu.memory_space<vmem>>, vector<36x16xf32>
    %cst_20 = arith.constant dense<0.000000e+00> : vector<256x16xf32>
    %68 = tpu.matmul %66, %67, %cst_20 {dimension_numbers = #tpu.dot_dimension_numbers<[1], [0], [0], [1], [0, 0, 1, 1], [], []>, precision = #tpu.contract_precision<fp32>} : vector<256x36xf32>, vector<36x16xf32>, vector<256x16xf32> -> vector<256x16xf32>
    %69 = vector.shape_cast %68 : vector<256x16xf32> to vector<16x16x16xf32>
    %70 = vector.extract_strided_slice %55 {offsets = [0, 0, 0], sizes = [18, 1, 4], strides = [1, 1, 1]} : vector<18x18x4xf32> to vector<18x1x4xf32>
    %cst_21 = arith.constant 7.500000e-01 : f32
    %71 = vector.broadcast %cst_21 : f32 to vector<18x1x4xf32>
    %72 = arith.mulf %71, %70 : vector<18x1x4xf32>
    %73 = vector.extract_strided_slice %55 {offsets = [0, 1, 0], sizes = [18, 1, 4], strides = [1, 1, 1]} : vector<18x18x4xf32> to vector<18x1x4xf32>
    %cst_22 = arith.constant 2.500000e-01 : f32
    %74 = vector.broadcast %cst_22 : f32 to vector<18x1x4xf32>
    %75 = arith.mulf %74, %73 : vector<18x1x4xf32>
    %76 = arith.addf %72, %75 : vector<18x1x4xf32>
    %77 = vector.shape_cast %76 : vector<18x1x4xf32> to vector<18x4xf32>
    %78 = vector.extract_strided_slice %55 {offsets = [0, 16, 0], sizes = [18, 1, 4], strides = [1, 1, 1]} : vector<18x18x4xf32> to vector<18x1x4xf32>
    %cst_23 = arith.constant 2.500000e-01 : f32
    %79 = vector.broadcast %cst_23 : f32 to vector<18x1x4xf32>
    %80 = arith.mulf %79, %78 : vector<18x1x4xf32>
    %81 = vector.extract_strided_slice %55 {offsets = [0, 17, 0], sizes = [18, 1, 4], strides = [1, 1, 1]} : vector<18x18x4xf32> to vector<18x1x4xf32>
    %cst_24 = arith.constant 7.500000e-01 : f32
    %82 = vector.broadcast %cst_24 : f32 to vector<18x1x4xf32>
    %83 = arith.mulf %82, %81 : vector<18x1x4xf32>
    %84 = arith.addf %80, %83 : vector<18x1x4xf32>
    %85 = vector.shape_cast %84 : vector<18x1x4xf32> to vector<18x4xf32>
    %86 = vector.extract_strided_slice %77 {offsets = [0, 0], sizes = [16, 4], strides = [1, 1]} : vector<18x4xf32> to vector<16x4xf32>
    %87 = vector.extract_strided_slice %77 {offsets = [1, 0], sizes = [16, 4], strides = [1, 1]} : vector<18x4xf32> to vector<16x4xf32>
    %88 = vector.extract_strided_slice %77 {offsets = [2, 0], sizes = [16, 4], strides = [1, 1]} : vector<18x4xf32> to vector<16x4xf32>
    %89 = vector.extract_strided_slice %85 {offsets = [0, 0], sizes = [16, 4], strides = [1, 1]} : vector<18x4xf32> to vector<16x4xf32>
    %90 = vector.extract_strided_slice %85 {offsets = [1, 0], sizes = [16, 4], strides = [1, 1]} : vector<18x4xf32> to vector<16x4xf32>
    %91 = vector.extract_strided_slice %85 {offsets = [2, 0], sizes = [16, 4], strides = [1, 1]} : vector<18x4xf32> to vector<16x4xf32>
    %92 = tpu.concatenate %86, %87, %88, %89, %90, %91 in 1 : vector<16x4xf32>, vector<16x4xf32>, vector<16x4xf32>, vector<16x4xf32>, vector<16x4xf32>, vector<16x4xf32> -> vector<16x24xf32>
    %c0_25 = arith.constant 0 : index
    %c0_26 = arith.constant 0 : index
    %93 = vector.load %arg6[%c0_25, %c0_26] : memref<24x16xf32, #tpu.memory_space<vmem>>, vector<24x16xf32>
    %cst_27 = arith.constant dense<0.000000e+00> : vector<16x16xf32>
    %94 = tpu.matmul %92, %93, %cst_27 {dimension_numbers = #tpu.dot_dimension_numbers<[1], [0], [0], [1], [0, 0, 1, 1], [], []>, precision = #tpu.contract_precision<fp32>} : vector<16x24xf32>, vector<24x16xf32>, vector<16x16xf32> -> vector<16x16xf32>
    %95 = tpu.iota {dimensions = array<i32: 0>} : vector<16x16xi32>
    %96 = tpu.iota {dimensions = array<i32: 1>} : vector<16x16xi32>
    %c0_i32_28 = arith.constant 0 : i32
    %97 = vector.broadcast %c0_i32_28 : i32 to vector<16x16xi32>
    %98 = arith.cmpi eq, %95, %97 : vector<16x16xi32>
    %c8_i32 = arith.constant 8 : i32
    %99 = vector.broadcast %c8_i32 : i32 to vector<16x16xi32>
    %100 = arith.cmpi slt, %96, %99 : vector<16x16xi32>
    %101 = arith.andi %98, %100 : vector<16x16xi1>
    %c15_i32 = arith.constant 15 : i32
    %102 = vector.broadcast %c15_i32 : i32 to vector<16x16xi32>
    %103 = arith.cmpi eq, %95, %102 : vector<16x16xi32>
    %c8_i32_29 = arith.constant 8 : i32
    %104 = vector.broadcast %c8_i32_29 : i32 to vector<16x16xi32>
    %105 = arith.cmpi sge, %96, %104 : vector<16x16xi32>
    %106 = arith.andi %103, %105 : vector<16x16xi1>
    %107 = arith.ori %101, %106 : vector<16x16xi1>
    %108 = arith.extui %107 : vector<16x16xi1> to vector<16x16xi32>
    %109 = arith.sitofp %108 : vector<16x16xi32> to vector<16x16xf32>
    %110 = vector.shape_cast %94 : vector<16x16xf32> to vector<16x1x16xf32>
    %111 = vector.shape_cast %109 : vector<16x16xf32> to vector<1x16x16xf32>
    %112 = vector.broadcast %110 : vector<16x1x16xf32> to vector<16x16x16xf32>
    %113 = vector.broadcast %111 : vector<1x16x16xf32> to vector<16x16x16xf32>
    %114 = arith.mulf %112, %113 : vector<16x16x16xf32>
    %115 = arith.subf %69, %114 : vector<16x16x16xf32>
    %c0_30 = arith.constant 0 : index
    %c0_31 = arith.constant 0 : index
    %116 = vector.load %arg7[%c0_30, %c0_31] : memref<1x16xf32, #tpu.memory_space<vmem>>, vector<1x16xf32>
    %117 = vector.shape_cast %116 : vector<1x16xf32> to vector<1x1x16xf32>
    %118 = vector.broadcast %117 : vector<1x1x16xf32> to vector<16x16x16xf32>
    %119 = arith.addf %115, %118 : vector<16x16x16xf32>
    %cst_32 = arith.constant 0.000000e+00 : f32
    %120 = vector.broadcast %cst_32 : f32 to vector<16x16x16xf32>
    %121 = arith.maximumf %119, %120 : vector<16x16x16xf32>
    %c0_33 = arith.constant 0 : index
    %c0_34 = arith.constant 0 : index
    %c0_35 = arith.constant 0 : index
    %c0_36 = arith.constant 0 : index
    %122 = vector.load %arg8[%c0_33, %c0_34, %c0_35, %c0_36] : memref<1x16x16x16xf32, #tpu.memory_space<vmem>>, vector<1x16x16x16xf32>
    %123 = vector.shape_cast %122 : vector<1x16x16x16xf32> to vector<16x16x16xf32>
    %124 = vector.shape_cast %121 : vector<16x16x16xf32> to vector<1x16x16x16xf32>
    tpu.vector_store %arg8[%c0_33, %c0_34, %c0_35, %c0_36], %124 {strides = array<i32>} : memref<1x16x16x16xf32, #tpu.memory_space<vmem>>, vector<1x16x16x16xf32>,
    return
  }
  func.func @transform_0(%arg0: i32, %arg1: i32) -> (i32, i32, i32, i32) {
    %c0_i32 = arith.constant 0 : i32
    %c0_i32_0 = arith.constant 0 : i32
    %c0_i32_1 = arith.constant 0 : i32
    return %arg0, %arg1, %c0_i32, %c0_i32_0 : i32, i32, i32, i32
  }
  func.func @transform_1(%arg0: i32, %arg1: i32) -> (i32, i32, i32, i32) {
    %c1_i32 = arith.constant 1 : i32
    %0 = arith.addi %arg1, %c1_i32 : i32
    %c8_i32 = arith.constant 8 : i32
    %1 = arith.muli %0, %c8_i32 : i32
    %c0_i32 = arith.constant 0 : i32
    %c0_i32_0 = arith.constant 0 : i32
    %c0_i32_1 = arith.constant 0 : i32
    return %arg0, %1, %c0_i32, %c0_i32_0 : i32, i32, i32, i32
  }
  func.func @transform_2(%arg0: i32, %arg1: i32) -> (i32, i32, i32, i32) {
    %c1_i32 = arith.constant 1 : i32
    %0 = arith.addi %arg1, %c1_i32 : i32
    %c8_i32 = arith.constant 8 : i32
    %1 = arith.muli %0, %c8_i32 : i32
    %c1_i32_0 = arith.constant 1 : i32
    %2 = arith.addi %1, %c1_i32_0 : i32
    %c0_i32 = arith.constant 0 : i32
    %c0_i32_1 = arith.constant 0 : i32
    %c0_i32_2 = arith.constant 0 : i32
    return %arg0, %2, %c0_i32, %c0_i32_1 : i32, i32, i32, i32
  }
  func.func @transform_3(%arg0: i32, %arg1: i32) -> (i32, i32) {
    %c0_i32 = arith.constant 0 : i32
    %c0_i32_0 = arith.constant 0 : i32
    %c0_i32_1 = arith.constant 0 : i32
    return %c0_i32, %c0_i32_0 : i32, i32
  }
  func.func @transform_4(%arg0: i32, %arg1: i32) -> (i32, i32) {
    %c0_i32 = arith.constant 0 : i32
    %c0_i32_0 = arith.constant 0 : i32
    %c0_i32_1 = arith.constant 0 : i32
    return %c0_i32, %c0_i32_0 : i32, i32
  }
  func.func @transform_5(%arg0: i32, %arg1: i32) -> (i32, i32) {
    %c0_i32 = arith.constant 0 : i32
    %c0_i32_0 = arith.constant 0 : i32
    %c0_i32_1 = arith.constant 0 : i32
    return %c0_i32, %c0_i32_0 : i32, i32
  }
  func.func @transform_6(%arg0: i32, %arg1: i32) -> (i32, i32, i32, i32) {
    %c0_i32 = arith.constant 0 : i32
    %c0_i32_0 = arith.constant 0 : i32
    %c0_i32_1 = arith.constant 0 : i32
    return %arg0, %arg1, %c0_i32, %c0_i32_0 : i32, i32, i32, i32
  }
}

</mosaic_0001>

<llo_original>
// kernel: upconv_forward.1
$region0: #{upconv_forward.1}
  #allocation0 [shape = 'u32[]', space=smem, size = 0x4, offset = 0x4, fixed_abs, tag = 'smem constant byte address 0x4 - core index']
  #allocation1 [shape = 'u32[144,128]{1,0:T(1,128)}', space=vmem, size = 0x12000, scoped, tag = 'internal scratch']
  %s0 = inlined_call_operand.vmem [shape: f32[2,18,18,4], index: 0, kind: input, shape index: {}, may-alias: {0,1,2}]
  %s1 = inlined_call_operand.vmem [shape: f32[2,18,18,4], index: 1, kind: input, shape index: {}, may-alias: {0,1,2}]
  %s2 = inlined_call_operand.vmem [shape: f32[2,18,18,4], index: 2, kind: input, shape index: {}, may-alias: {0,1,2}]
  %s3 = inlined_call_operand.vmem [shape: f32[36,16], index: 3, kind: input, shape index: {}]
  %s4 = inlined_call_operand.vmem [shape: f32[24,16], index: 4, kind: input, shape index: {}]
  %s5 = inlined_call_operand.vmem [shape: f32[1,16], index: 5, kind: input, shape index: {}]
  %s6 = inlined_call_operand.vmem [shape: f32[2,32,16,16], index: 6, kind: output, shape index: {}]
  %s7 = sld [smem:[#allocation0]]
  $region57: #{upconv_forward.1} parent=0
    _
  %s9 = ssub.s32 1, %s7
  %s10 = scalar_select 0, %s9, %s7
  loop: start=0, step=1, limit=6
  $region2: #{upconv_forward.1} parent=0 // loop_pre_header
    _
  $region3: #{upconv_forward.1} parent=0 // loop_header
    %s12 = sphi 0, %s16
    %p13 = scmp.ge.s32.totalorder %s12, 6
    %s19 = sphi 0, %s31
    %s20 = sphi 0, %s27
    %s21 = sphi 0, %s19
    %s22 = sphi 0, %s20
    %s23 = sphi 0, %s21
    %s24 = sphi 0, %s22
    %s36 = sphi 0, %s38
    %s39 = sphi 0, %s36
    %s40 = sphi 0, %s39
    %s56 = sphi 0, %s40
    %s68 = sphi 0, %s70
    %s71 = sphi 0, %s68
    %s72 = sphi 0, %s71
    %s88 = sphi 0, %s72
    %s102 = sphi 0, %s104
    %s105 = sphi 0, %s102
    %s106 = sphi 0, %s105
    %s122 = sphi 0, %s106
    %s126 = sphi 0, %s126
    %s128 = sphi 0, %s126
    %s129 = sphi 0, %s128
    %s143 = sphi 0, %s129
    %s147 = sphi 0, %s147
    %s149 = sphi 0, %s147
    %s150 = sphi 0, %s149
    %s164 = sphi 0, %s150
    %s168 = sphi 0, %s168
    %s170 = sphi 0, %s168
    %s171 = sphi 0, %s170
    %s185 = sphi 0, %s171
    %s193 = sphi 0, %s195
    %s196 = sphi 0, %s193
    %s197 = sphi 0, %s196
    %s213 = sphi 0, %s197
  $region4: #{upconv_forward.1} parent=0 // loop_header_branch
    %15 = sbr.rel (%p13) target = $region8
  $region5: #{upconv_forward.1} parent=0 // loop_body
    %s17 = ssub.s32 %s12, 1
    %s18 = ssub.s32 %s12, 2
    %s25 = sadd.s32 1, %s20
    %p26 = scmp.ge.s32.totalorder %s25, 2
    %s27 = scalar_select %p26, 0, %s25
    %s28 = sadd.s32 1, %s19
    %s29 = scalar_select %p26, %s28, %s19
    %p30 = scmp.ge.s32.totalorder %s29, 2
    %s31 = scalar_select %p30, 0, %s29
    %s32 = ssub.s32 %s19, %s31
    %s33 = ssub.s32 %s20, %s27
    %s34 = sor.u32 %s32, %s33
    %p35 = scmp.eq.s32.totalorder %s34, 0
    %s37 = sadd.s32 %s36, 1
    %s38 = scalar_select %p35, %s36, %s37
    %p41 = pneg %p35
    %p42 = scmp.eq.s32.totalorder %s12, 3
    %p43 = por %p41, %p42
    %p44 = scmp.ne.s32.totalorder %s36, %s39
    %p45 = scmp.eq.s32.totalorder %s12, 0
    %p46 = por %p44, %p45
    %p47 = scmp.ne.s32.totalorder %s36, %s39
    %p48 = scmp.eq.s32.totalorder %s17, 3
    %p49 = por %p47, %p48
    %p50 = scmp.ne.s32.totalorder %s39, %s40
    %p51 = scmp.eq.s32.totalorder %s17, 0
    %p52 = por %p50, %p51
    %p53 = scmp.ne.s32.totalorder %s39, %s40
    %p54 = scmp.eq.s32.totalorder %s18, 3
    %p55 = por %p53, %p54
    %p57 = scmp.ne.s32.totalorder %s40, %s56
    %p58 = scmp.eq.s32.totalorder %s18, 0
    %p59 = por %p57, %p58
    %s60 = sadd.s32 %s20, 1
    %s61 = smul.u32 %s60, 8
    %s62 = sadd.s32 %s27, 1
    %s63 = smul.u32 %s62, 8
    %s64 = ssub.s32 %s19, %s31
    %s65 = ssub.s32 %s61, %s63
    %s66 = sor.u32 %s64, %s65
    %p67 = scmp.eq.s32.totalorder %s66, 0
    %s69 = sadd.s32 %s68, 1
    %s70 = scalar_select %p67, %s68, %s69
    %p73 = pneg %p67
    %p74 = scmp.eq.s32.totalorder %s12, 3
    %p75 = por %p73, %p74
    %p76 = scmp.ne.s32.totalorder %s68, %s71
    %p77 = scmp.eq.s32.totalorder %s12, 0
    %p78 = por %p76, %p77
    %p79 = scmp.ne.s32.totalorder %s68, %s71
    %p80 = scmp.eq.s32.totalorder %s17, 3
    %p81 = por %p79, %p80
    %p82 = scmp.ne.s32.totalorder %s71, %s72
    %p83 = scmp.eq.s32.totalorder %s17, 0
    %p84 = por %p82, %p83
    %p85 = scmp.ne.s32.totalorder %s71, %s72
    %p86 = scmp.eq.s32.totalorder %s18, 3
    %p87 = por %p85, %p86
    %p89 = scmp.ne.s32.totalorder %s72, %s88
    %p90 = scmp.eq.s32.totalorder %s18, 0
    %p91 = por %p89, %p90
    %s92 = sadd.s32 %s20, 1
    %s93 = smul.u32 %s92, 8
    %s94 = sadd.s32 %s93, 1
    %s95 = sadd.s32 %s27, 1
    %s96 = smul.u32 %s95, 8
    %s97 = sadd.s32 %s96, 1
    %s98 = ssub.s32 %s19, %s31
    %s99 = ssub.s32 %s94, %s97
    %s100 = sor.u32 %s98, %s99
    %p101 = scmp.eq.s32.totalorder %s100, 0
    %s103 = sadd.s32 %s102, 1
    %s104 = scalar_select %p101, %s102, %s103
    %p107 = pneg %p101
    %p108 = scmp.eq.s32.totalorder %s12, 3
    %p109 = por %p107, %p108
    %p110 = scmp.ne.s32.totalorder %s102, %s105
    %p111 = scmp.eq.s32.totalorder %s12, 0
    %p112 = por %p110, %p111
    %p113 = scmp.ne.s32.totalorder %s102, %s105
    %p114 = scmp.eq.s32.totalorder %s17, 3
    %p115 = por %p113, %p114
    %p116 = scmp.ne.s32.totalorder %s105, %s106
    %p117 = scmp.eq.s32.totalorder %s17, 0
    %p118 = por %p116, %p117
    %p119 = scmp.ne.s32.totalorder %s105, %s106
    %p120 = scmp.eq.s32.totalorder %s18, 3
    %p121 = por %p119, %p120
    %p123 = scmp.ne.s32.totalorder %s106, %s122
    %p124 = scmp.eq.s32.totalorder %s18, 0
    %p125 = por %p123, %p124
    %s127 = sadd.s32 %s126, 1
    %p130 = scmp.eq.s32.totalorder %s12, 3
    %p131 = scmp.ne.s32.totalorder %s126, %s128
    %p132 = scmp.eq.s32.totalorder %s12, 0
    %p133 = por %p131, %p132
    %p134 = scmp.ne.s32.totalorder %s126, %s128
    %p135 = scmp.eq.s32.totalorder %s17, 3
    %p136 = por %p134, %p135
    %p137 = scmp.ne.s32.totalorder %s128, %s129
    %p138 = scmp.eq.s32.totalorder %s17, 0
    %p139 = por %p137, %p138
    %p140 = scmp.ne.s32.totalorder %s128, %s129
    %p141 = scmp.eq.s32.totalorder %s18, 3
    %p142 = por %p140, %p141
    %p144 = scmp.ne.s32.totalorder %s129, %s143
    %p145 = scmp.eq.s32.totalorder %s18, 0
    %p146 = por %p144, %p145
    %s148 = sadd.s32 %s147, 1
    %p151 = scmp.eq.s32.totalorder %s12, 3
    %p152 = scmp.ne.s32.totalorder %s147, %s149
    %p153 = scmp.eq.s32.totalorder %s12, 0
    %p154 = por %p152, %p153
    %p155 = scmp.ne.s32.totalorder %s147, %s149
    %p156 = scmp.eq.s32.totalorder %s17, 3
    %p157 = por %p155, %p156
    %p158 = scmp.ne.s32.totalorder %s149, %s150
    %p159 = scmp.eq.s32.totalorder %s17, 0
    %p160 = por %p158, %p159
    %p161 = scmp.ne.s32.totalorder %s149, %s150
    %p162 = scmp.eq.s32.totalorder %s18, 3
    %p163 = por %p161, %p162
    %p165 = scmp.ne.s32.totalorder %s150, %s164
    %p166 = scmp.eq.s32.totalorder %s18, 0
    %p167 = por %p165, %p166
    %s169 = sadd.s32 %s168, 1
    %p172 = scmp.eq.s32.totalorder %s12, 3
    %p173 = scmp.ne.s32.totalorder %s168, %s170
    %p174 = scmp.eq.s32.totalorder %s12, 0
    %p175 = por %p173, %p174
    %p176 = scmp.ne.s32.totalorder %s168, %s170
    %p177 = scmp.eq.s32.totalorder %s17, 3
    %p178 = por %p176, %p177
    %p179 = scmp.ne.s32.totalorder %s170, %s171
    %p180 = scmp.eq.s32.totalorder %s17, 0
    %p181 = por %p179, %p180
    %p182 = scmp.ne.s32.totalorder %s170, %s171
    %p183 = scmp.eq.s32.totalorder %s18, 3
    %p184 = por %p182, %p183
    %p186 = scmp.ne.s32.totalorder %s171, %s185
    %p187 = scmp.eq.s32.totalorder %s18, 0
    %p188 = por %p186, %p187
    %s189 = ssub.s32 %s19, %s31
    %s190 = ssub.s32 %s20, %s27
    %s191 = sor.u32 %s189, %s190
    %p192 = scmp.eq.s32.totalorder %s191, 0
    %s194 = sadd.s32 %s193, 1
    %s195 = scalar_select %p192, %s193, %s194
    %p198 = pneg %p192
    %p199 = scmp.eq.s32.totalorder %s12, 3
    %p200 = por %p198, %p199
    %p201 = scmp.ne.s32.totalorder %s193, %s196
    %p202 = scmp.eq.s32.totalorder %s12, 0
    %p203 = por %p201, %p202
    %p204 = scmp.ne.s32.totalorder %s193, %s196
    %p205 = scmp.eq.s32.totalorder %s17, 3
    %p206 = por %p204, %p205
    %p207 = scmp.ne.s32.totalorder %s196, %s197
    %p208 = scmp.eq.s32.totalorder %s17, 0
    %p209 = por %p207, %p208
    %p210 = scmp.ne.s32.totalorder %s196, %s197
    %p211 = scmp.eq.s32.totalorder %s18, 3
    %p212 = por %p210, %p211
    %p214 = scmp.ne.s32.totalorder %s197, %s213
    %p215 = scmp.eq.s32.totalorder %s18, 0
    %p216 = por %p214, %p215
    %p217 = scmp.le.s32.totalorder 1, %s12
    %p218 = scmp.lt.s32.totalorder %s12, 5
    %p219 = pnand %p217, %p218
    %p220 = pneg %p219
    // Predicated region
    $region9: #{upconv_forward.1} parent=5 // pred_check
      _
    $region10: #{upconv_forward.1} parent=5 // pred_check_branch
      %222 = sbr.rel (%p219) target = $region12
    $region11: #{upconv_forward.1} parent=5 // pred_region
      %s223 = ssub.s32 %s12, 1
      // Predicated region
      $region13: #{upconv_forward.1} parent=11 // pred_check
        %p224 = pneg %p139
      $region14: #{upconv_forward.1} parent=11 // pred_check_branch
        %226 = sbr.rel (%p224) target = $region16
      $region15: #{upconv_forward.1} parent=11 // pred_region
        _
      $region16: #{upconv_forward.1} parent=11 // pred_fallthru
        _
      // Predicated region
      $region17: #{upconv_forward.1} parent=11 // pred_check
        %p227 = pneg %p160
      $region18: #{upconv_forward.1} parent=11 // pred_check_branch
        %229 = sbr.rel (%p227) target = $region20
      $region19: #{upconv_forward.1} parent=11 // pred_region
        _
      $region20: #{upconv_forward.1} parent=11 // pred_fallthru
        _
      // Predicated region
      $region21: #{upconv_forward.1} parent=11 // pred_check
        %p230 = pneg %p181
      $region22: #{upconv_forward.1} parent=11 // pred_check_branch
        %232 = sbr.rel (%p230) target = $region24
      $region23: #{upconv_forward.1} parent=11 // pred_region
        _
      $region24: #{upconv_forward.1} parent=11 // pred_fallthru
        _
    $region12: #{upconv_forward.1} parent=5 // pred_fallthru
      _
    %p233 = scmp.lt.s32.totalorder %s12, 4
    // Predicated region
    $region25: #{upconv_forward.1} parent=5 // pred_check
      %p234 = pneg %p233
    $region26: #{upconv_forward.1} parent=5 // pred_check_branch
      %236 = sbr.rel (%p234) target = $region28
    $region27: #{upconv_forward.1} parent=5 // pred_region
      // Predicated region
      $region29: #{upconv_forward.1} parent=27 // pred_check
        %p237 = pneg %p46
      $region30: #{upconv_forward.1} parent=27 // pred_check_branch
        %239 = sbr.rel (%p237) target = $region32
      $region31: #{upconv_forward.1} parent=27 // pred_region
        %s240 = smul.u32 8, %s20
        %s241 = ssub.s32 18, %s240
        %p242 = scmp.lt.s32.totalorder %s241, 8
        %s243 = scalar_select %p242, %s241, 8
        %s244 = smul.u32 128, %s243
        %s245 = smul.u32 %s244, 3
        %p246 = scmp.lt.s32.totalorder %s19, 1
        %s247 = scalar_select %p246, %s19, 1
        %p248 = scmp.lt.s32.totalorder %s240, 17
        %s249 = scalar_select %p248, %s240, 17
        %s250 = smul.addr %s249, 3
        %s251 = smul.addr %s247, 54
        %s252 = sadd.s32 %s250, %s251
        %s253 = smul.addr %s252, 8
        %s254 = scalar_lea.vmem %s0, %s253
        %s255 = smul.u32 8, %s20
        %s256 = ssub.s32 18, %s255
        %p257 = scmp.lt.s32.totalorder %s256, 8
        %s258 = scalar_select %p257, %s256, 8
        %s259 = smul.u32 128, %s258
        %s260 = smul.u32 %s259, 3
      $region32: #{upconv_forward.1} parent=27 // pred_fallthru
        _
      // Predicated region
      $region33: #{upconv_forward.1} parent=27 // pred_check
        %p261 = pneg %p78
      $region34: #{upconv_forward.1} parent=27 // pred_check_branch
        %263 = sbr.rel (%p261) target = $region36
      $region35: #{upconv_forward.1} parent=27 // pred_region
        %s264 = sadd.s32 %s20, 1
        %s265 = smul.u32 %s264, 8
        %p266 = scmp.lt.s32.totalorder %s19, 1
        %s267 = scalar_select %p266, %s19, 1
        %p268 = scmp.lt.s32.totalorder %s265, 17
        %s269 = scalar_select %p268, %s265, 17
        %s270 = smul.addr %s269, 3
        %s271 = smul.addr %s267, 54
        %s272 = sadd.s32 %s270, %s271
        %s273 = smul.addr %s272, 8
        %s274 = scalar_lea.vmem %s1, %s273
        %s275 = sadd.s32 %s20, 1
        %s276 = smul.u32 %s275, 8
      $region36: #{upconv_forward.1} parent=27 // pred_fallthru
        _
      // Predicated region
      $region37: #{upconv_forward.1} parent=27 // pred_check
        %p277 = pneg %p112
      $region38: #{upconv_forward.1} parent=27 // pred_check_branch
        %279 = sbr.rel (%p277) target = $region40
      $region39: #{upconv_forward.1} parent=27 // pred_region
        %s280 = sadd.s32 %s20, 1
        %s281 = smul.u32 %s280, 8
        %s282 = sadd.s32 %s281, 1
        %p283 = scmp.lt.s32.totalorder %s19, 1
        %s284 = scalar_select %p283, %s19, 1
        %p285 = scmp.lt.s32.totalorder %s282, 17
        %s286 = scalar_select %p285, %s282, 17
        %s287 = smul.addr %s286, 3
        %s288 = smul.addr %s284, 54
        %s289 = sadd.s32 %s287, %s288
        %s290 = smul.addr %s289, 8
        %s291 = scalar_lea.vmem %s2, %s290
        %s292 = sadd.s32 %s20, 1
        %s293 = smul.u32 %s292, 8
        %s294 = sadd.s32 %s293, 1
      $region40: #{upconv_forward.1} parent=27 // pred_fallthru
        _
    $region28: #{upconv_forward.1} parent=5 // pred_fallthru
      _
    %p295 = scmp.le.s32.totalorder 1, %s12
    %p296 = scmp.lt.s32.totalorder %s12, 5
    %p297 = pnand %p295, %p296
    %p298 = pneg %p297
    // Predicated region
    $region41: #{upconv_forward.1} parent=5 // pred_check
      _
    $region42: #{upconv_forward.1} parent=5 // pred_check_branch
      %300 = sbr.rel (%p297) target = $region44
    $region43: #{upconv_forward.1} parent=5 // pred_region
      %s301 = ssub.s32 %s12, 1
      %s302 = smul.u32 8, %s22
      %s303 = ssub.s32 18, %s302
      %p304 = scmp.lt.s32.totalorder %s303, 8
      %s305 = scalar_select %p304, %s303, 8
      %s306 = smul.u32 128, %s305
      %s307 = smul.u32 %s306, 3
      %p308 = scmp.lt.s32.totalorder %s21, 1
      %s309 = scalar_select %p308, %s21, 1
      %p310 = scmp.lt.s32.totalorder %s302, 17
      %s311 = scalar_select %p310, %s302, 17
      %s312 = smul.addr %s311, 3
      %s313 = smul.addr %s309, 54
      %s314 = sadd.s32 %s312, %s313
      %s315 = smul.addr %s314, 8
      %s316 = scalar_lea.vmem %s0, %s315
      %p317 = pneg %p52
      %p318 = pneg %p49
      %s319 = sadd.s32 %s22, 1
      %s320 = smul.u32 %s319, 8
      %p321 = scmp.lt.s32.totalorder %s21, 1
      %s322 = scalar_select %p321, %s21, 1
      %p323 = scmp.lt.s32.totalorder %s320, 17
      %s324 = scalar_select %p323, %s320, 17
      %s325 = smul.addr %s324, 3
      %s326 = smul.addr %s322, 54
      %s327 = sadd.s32 %s325, %s326
      %s328 = smul.addr %s327, 8
      %s329 = scalar_lea.vmem %s1, %s328
      %p330 = pneg %p84
      %p331 = pneg %p81
      %s332 = sadd.s32 %s22, 1
      %s333 = smul.u32 %s332, 8
      %s334 = sadd.s32 %s333, 1
      %p335 = scmp.lt.s32.totalorder %s21, 1
      %s336 = scalar_select %p335, %s21, 1
      %p337 = scmp.lt.s32.totalorder %s334, 17
      %s338 = scalar_select %p337, %s334, 17
      %s339 = smul.addr %s338, 3
      %s340 = smul.addr %s336, 54
      %s341 = sadd.s32 %s339, %s340
      %s342 = smul.addr %s341, 8
      %s343 = scalar_lea.vmem %s2, %s342
      %p344 = pneg %p118
      %p345 = pneg %p115
      %p346 = pneg %p139
      %p347 = pneg %p136
      %p348 = pneg %p160
      %p349 = pneg %p157
      %p350 = pneg %p181
      %p351 = pneg %p178
      %p352 = pneg %p209
      %p353 = pneg %p206
      %s354 = smul.u32 16, %s22
      %p355 = scmp.lt.s32.totalorder %s21, 1
      %s356 = scalar_select %p355, %s21, 1
      %p357 = scmp.lt.s32.totalorder %s354, 31
      %s358 = scalar_select %p357, %s354, 31
      %s359 = smul.addr %s358, 2
      %s360 = smul.addr %s356, 64
      %s361 = sadd.s32 %s359, %s360
      %s362 = smul.addr %s361, 8
      %s363 = scalar_lea.vmem %s6, %s362
      %s364 = smul.u32 8, %s22
      %s365 = ssub.s32 18, %s364
      %p366 = scmp.lt.s32.totalorder %s365, 8
      %s367 = scalar_select %p366, %s365, 8
      %s368 = smul.u32 128, %s367
      %s369 = smul.u32 %s368, 3
      %p370 = scmp.lt.s32.totalorder %s21, 1
      %s371 = scalar_select %p370, %s21, 1
      %p372 = scmp.lt.s32.totalorder %s364, 17
      %s373 = scalar_select %p372, %s364, 17
      %s374 = smul.addr %s373, 3
      %s375 = smul.addr %s371, 54
      %s376 = sadd.s32 %s374, %s375
      %s377 = smul.addr %s376, 8
      %s378 = scalar_lea.vmem %s0, %s377
      %s379 = smul.u32 8, %s22
      %s380 = ssub.s32 18, %s379
      %p381 = scmp.lt.s32.totalorder %s380, 8
      %s382 = scalar_select %p381, %s380, 8
      %s383 = smul.u32 128, %s382
      %s384 = smul.u32 %s383, 3
      %s385 = sadd.s32 %s22, 1
      %s386 = smul.u32 %s385, 8
      %p387 = scmp.lt.s32.totalorder %s21, 1
      %s388 = scalar_select %p387, %s21, 1
      %p389 = scmp.lt.s32.totalorder %s386, 17
      %s390 = scalar_select %p389, %s386, 17
      %s391 = smul.addr %s390, 3
      %s392 = smul.addr %s388, 54
      %s393 = sadd.s32 %s391, %s392
      %s394 = smul.addr %s393, 8
      %s395 = scalar_lea.vmem %s1, %s394
      %s396 = sadd.s32 %s22, 1
      %s397 = smul.u32 %s396, 8
      %s398 = sadd.s32 %s22, 1
      %s399 = smul.u32 %s398, 8
      %s400 = sadd.s32 %s399, 1
      %p401 = scmp.lt.s32.totalorder %s21, 1
      %s402 = scalar_select %p401, %s21, 1
      %p403 = scmp.lt.s32.totalorder %s400, 17
      %s404 = scalar_select %p403, %s400, 17
      %s405 = smul.addr %s404, 3
      %s406 = smul.addr %s402, 54
      %s407 = sadd.s32 %s405, %s406
      %s408 = smul.addr %s407, 8
      %s409 = scalar_lea.vmem %s2, %s408
      %s410 = sadd.s32 %s22, 1
      %s411 = smul.u32 %s410, 8
      %s412 = sadd.s32 %s411, 1
      %s413 = smul.u32 16, %s22
      %p414 = scmp.lt.s32.totalorder %s21, 1
      %s415 = scalar_select %p414, %s21, 1
      %p416 = scmp.lt.s32.totalorder %s413, 31
      %s417 = scalar_select %p416, %s413, 31
      %s418 = smul.addr %s417, 2
      %s419 = smul.addr %s415, 64
      %s420 = sadd.s32 %s418, %s419
      %s421 = smul.addr %s420, 8
      %s422 = scalar_lea.vmem %s6, %s421
      %s423 = smul.u32 16, %s22
      %v424 = vld [vmem:[%s378] sm:$0xff]
      %v425 = vld [vmem:[%s378 + $0x8] sm:$0xff]
      %v426 = vld [vmem:[%s378 + $0x10] sm:$0x3]
      %v427 = vld [vmem:[%s378 + $0x18] sm:$0xff]
      %v428 = vld [vmem:[%s378 + $0x20] sm:$0xff]
      %v429 = vld [vmem:[%s378 + $0x28] sm:$0x3]
      %v430 = vld [vmem:[%s378 + $0x30] sm:$0xff]
      %v431 = vld [vmem:[%s378 + $0x38] sm:$0xff]
      %v432 = vld [vmem:[%s378 + $0x40] sm:$0x3]
      %v433 = vld [vmem:[%s378 + $0x48] sm:$0xff]
      %v434 = vld [vmem:[%s378 + $0x50] sm:$0xff]
      %v435 = vld [vmem:[%s378 + $0x58] sm:$0x3]
      %v436 = vld [vmem:[%s378 + $0x60] sm:$0xff]
      %v437 = vld [vmem:[%s378 + $0x68] sm:$0xff]
      %v438 = vld [vmem:[%s378 + $0x70] sm:$0x3]
      %v439 = vld [vmem:[%s378 + $0x78] sm:$0xff]
      %v440 = vld [vmem:[%s378 + $0x80] sm:$0xff]
      %v441 = vld [vmem:[%s378 + $0x88] sm:$0x3]
      %v442 = vld [vmem:[%s378 + $0x90] sm:$0xff]
      %v443 = vld [vmem:[%s378 + $0x98] sm:$0xff]
      %v444 = vld [vmem:[%s378 + $0xa0] sm:$0x3]
      %v445 = vld [vmem:[%s378 + $0xa8] sm:$0xff]
      %v446 = vld [vmem:[%s378 + $0xb0] sm:$0xff]
      %v447 = vld [vmem:[%s378 + $0xb8] sm:$0x3]
      %v448 = vld [vmem:[%s395] sm:$0xff]
      %v449 = vld [vmem:[%s395 + $0x8] sm:$0xff]
      %v450 = vld [vmem:[%s395 + $0x10] sm:$0x3]
      %v451 = vld [vmem:[%s409] sm:$0xff]
      %v452 = vld [vmem:[%s409 + $0x8] sm:$0xff]
      %v453 = vld [vmem:[%s409 + $0x10] sm:$0x3]
      %v454 = vmul.f32 %v424, 0.25
      %v455 = vmul.f32 %v425, 0.25
      %v456 = vmul.f32 %v426, 0.25
      %v457 = vmul.f32 %v427, 0.25
      %v458 = vmul.f32 %v428, 0.25
      %v459 = vmul.f32 %v429, 0.25
      %v460 = vmul.f32 %v430, 0.25
      %v461 = vmul.f32 %v431, 0.25
      %v462 = vmul.f32 %v432, 0.25
      %v463 = vmul.f32 %v433, 0.25
      %v464 = vmul.f32 %v434, 0.25
      %v465 = vmul.f32 %v435, 0.25
      %v466 = vmul.f32 %v436, 0.25
      %v467 = vmul.f32 %v437, 0.25
      %v468 = vmul.f32 %v438, 0.25
      %v469 = vmul.f32 %v439, 0.25
      %v470 = vmul.f32 %v440, 0.25
      %v471 = vmul.f32 %v441, 0.25
      %v472 = vmul.f32 %v442, 0.25
      %v473 = vmul.f32 %v443, 0.25
      %v474 = vmul.f32 %v444, 0.25
      %v475 = vmul.f32 %v445, 0.25
      %v476 = vmul.f32 %v446, 0.25
      %v477 = vmul.f32 %v447, 0.25
      %v478 = vmul.f32 %v427, 0.75
      %v479 = vmul.f32 %v428, 0.75
      %v480 = vmul.f32 %v429, 0.75
      %v481 = vmul.f32 %v430, 0.75
      %v482 = vmul.f32 %v431, 0.75
      %v483 = vmul.f32 %v432, 0.75
      %v484 = vmul.f32 %v433, 0.75
      %v485 = vmul.f32 %v434, 0.75
      %v486 = vmul.f32 %v435, 0.75
      %v487 = vmul.f32 %v436, 0.75
      %v488 = vmul.f32 %v437, 0.75
      %v489 = vmul.f32 %v438, 0.75
      %v490 = vmul.f32 %v439, 0.75
      %v491 = vmul.f32 %v440, 0.75
      %v492 = vmul.f32 %v441, 0.75
      %v493 = vmul.f32 %v442, 0.75
      %v494 = vmul.f32 %v443, 0.75
      %v495 = vmul.f32 %v444, 0.75
      %v496 = vmul.f32 %v445, 0.75
      %v497 = vmul.f32 %v446, 0.75
      %v498 = vmul.f32 %v447, 0.75
      %v499 = vmul.f32 %v448, 0.75
      %v500 = vmul.f32 %v449, 0.75
      %v501 = vmul.f32 %v450, 0.75
      %v502 = vadd.f32 %v454, %v478
      %v503 = vadd.f32 %v455, %v479
      %v504 = vadd.f32 %v456, %v480
      %v505 = vadd.f32 %v457, %v481
      %v506 = vadd.f32 %v458, %v482
      %v507 = vadd.f32 %v459, %v483
      %v508 = vadd.f32 %v460, %v484
      %v509 = vadd.f32 %v461, %v485
      %v510 = vadd.f32 %v462, %v486
      %v511 = vadd.f32 %v463, %v487
      %v512 = vadd.f32 %v464, %v488
      %v513 = vadd.f32 %v465, %v489
      %v514 = vadd.f32 %v466, %v490
      %v515 = vadd.f32 %v467, %v491
      %v516 = vadd.f32 %v468, %v492
      %v517 = vadd.f32 %v469, %v493
      %v518 = vadd.f32 %v470, %v494
      %v519 = vadd.f32 %v471, %v495
      %v520 = vadd.f32 %v472, %v496
      %v521 = vadd.f32 %v473, %v497
      %v522 = vadd.f32 %v474, %v498
      %v523 = vadd.f32 %v475, %v499
      %v524 = vadd.f32 %v476, %v500
      %v525 = vadd.f32 %v477, %v501
      %v526 = vmul.f32 %v448, 0.25
      %v527 = vmul.f32 %v449, 0.25
      %v528 = vmul.f32 %v450, 0.25
      %v529 = vmul.f32 %v451, 0.25
      %v530 = vmul.f32 %v452, 0.25
      %v531 = vmul.f32 %v453, 0.25
      %v532 = vadd.f32 %v478, %v460
      %v533 = vadd.f32 %v479, %v461
      %v534 = vadd.f32 %v480, %v462
      %v535 = vadd.f32 %v481, %v463
      %v536 = vadd.f32 %v482, %v464
      %v537 = vadd.f32 %v483, %v465
      %v538 = vadd.f32 %v484, %v466
      %v539 = vadd.f32 %v485, %v467
      %v540 = vadd.f32 %v486, %v468
      %v541 = vadd.f32 %v487, %v469
      %v542 = vadd.f32 %v488, %v470
      %v543 = vadd.f32 %v489, %v471
      %v544 = vadd.f32 %v490, %v472
      %v545 = vadd.f32 %v491, %v473
      %v546 = vadd.f32 %v492, %v474
      %v547 = vadd.f32 %v493, %v475
      %v548 = vadd.f32 %v494, %v476
      %v549 = vadd.f32 %v495, %v477
      %v550 = vadd.f32 %v496, %v526
      %v551 = vadd.f32 %v497, %v527
      %v552 = vadd.f32 %v498, %v528
      %v553 = vadd.f32 %v499, %v529
      %v554 = vadd.f32 %v500, %v530
      %v555 = vadd.f32 %v501, %v531
      %p556 = scmp.gt.s32.totalorder %s22, 0
      %s557 = scalar_select %p556, 1, 0
      %s558 = scvt.s32.f32 %s557
      %p559 = scmp.lt.s32.totalorder %s22, 1
      %s560 = scalar_select %p559, 1, 0
      %s561 = scvt.s32.f32 %s560
      %v562 = vmul.f32 %v424, 0.75
      %v563 = vmul.f32 %v425, 0.75
      %v564 = vmul.f32 %v426, 0.75
      %v565 = vadd.f32 %v562, %v457
      %v566 = vadd.f32 %v563, %v458
      %v567 = vadd.f32 %v564, %v459
      %v568 = vstv %s558
      %v569 = vmul.f32 %v565, %v568
      %v570 = vmul.f32 %v566, %v568
      %v571 = vmul.f32 %v567, %v568
      %v572 = vmul.f32 %v451, 0.75
      %v573 = vmul.f32 %v452, 0.75
      %v574 = vmul.f32 %v453, 0.75
      %v575 = vadd.f32 %v526, %v572
      %v576 = vadd.f32 %v527, %v573
      %v577 = vadd.f32 %v528, %v574
      %v578 = vstv %s561
      %v579 = vmul.f32 %v575, %v578
      %v580 = vmul.f32 %v576, %v578
      %v581 = vmul.f32 %v577, %v578
      %vm630 = vcmask 1046528
      %v631 = vrot.slane %v569, 1
      %v632 = vrot.slane %v570, 1
      %v633 = vsel %vm630, %v631, %v632
      %v634 = vrot.slane %v571, 1
      %v635 = vsel %vm630, %v632, %v634
      %v636 = vrot.slane %v502, 1
      %v637 = vrot.slane %v503, 1
      %v638 = vsel %vm630, %v636, %v637
      %v639 = vrot.slane %v504, 1
      %v640 = vsel %vm630, %v637, %v639
      %v641 = vrot.slane %v532, 1
      %v642 = vrot.slane %v533, 1
      %v643 = vsel %vm630, %v641, %v642
      %v644 = vrot.slane %v534, 1
      %v645 = vsel %vm630, %v642, %v644
      %v646 = vrot.slane %v505, 1
      %v647 = vrot.slane %v506, 1
      %v648 = vsel %vm630, %v646, %v647
      %v649 = vrot.slane %v507, 1
      %v650 = vsel %vm630, %v647, %v649
      %v651 = vrot.slane %v535, 1
      %v652 = vrot.slane %v536, 1
      %v653 = vsel %vm630, %v651, %v652
      %v654 = vrot.slane %v537, 1
      %v655 = vsel %vm630, %v652, %v654
      %v656 = vrot.slane %v508, 1
      %v657 = vrot.slane %v509, 1
      %v658 = vsel %vm630, %v656, %v657
      %v659 = vrot.slane %v510, 1
      %v660 = vsel %vm630, %v657, %v659
      %v661 = vrot.slane %v538, 1
      %v662 = vrot.slane %v539, 1
      %v663 = vsel %vm630, %v661, %v662
      %v664 = vrot.slane %v540, 1
      %v665 = vsel %vm630, %v662, %v664
      %v666 = vrot.slane %v511, 1
      %v667 = vrot.slane %v512, 1
      %v668 = vsel %vm630, %v666, %v667
      %v669 = vrot.slane %v513, 1
      %v670 = vsel %vm630, %v667, %v669
      %v671 = vrot.slane %v541, 1
      %v672 = vrot.slane %v542, 1
      %v673 = vsel %vm630, %v671, %v672
      %v674 = vrot.slane %v543, 1
      %v675 = vsel %vm630, %v672, %v674
      %v676 = vrot.slane %v514, 1
      %v677 = vrot.slane %v515, 1
      %v678 = vsel %vm630, %v676, %v677
      %v679 = vrot.slane %v516, 1
      %v680 = vsel %vm630, %v677, %v679
      %v681 = vrot.slane %v544, 1
      %v682 = vrot.slane %v545, 1
      %v683 = vsel %vm630, %v681, %v682
      %v684 = vrot.slane %v546, 1
      %v685 = vsel %vm630, %v682, %v684
      %v686 = vrot.slane %v517, 1
      %v687 = vrot.slane %v518, 1
      %v688 = vsel %vm630, %v686, %v687
      %v689 = vrot.slane %v519, 1
      %v690 = vsel %vm630, %v687, %v689
      %v691 = vrot.slane %v547, 1
      %v692 = vrot.slane %v548, 1
      %v693 = vsel %vm630, %v691, %v692
      %v694 = vrot.slane %v549, 1
      %v695 = vsel %vm630, %v692, %v694
      %v696 = vrot.slane %v520, 1
      %v697 = vrot.slane %v521, 1
      %v698 = vsel %vm630, %v696, %v697
      %v699 = vrot.slane %v522, 1
      %v700 = vsel %vm630, %v697, %v699
      %v701 = vrot.slane %v550, 1
      %v702 = vrot.slane %v551, 1
      %v703 = vsel %vm630, %v701, %v702
      %v704 = vrot.slane %v552, 1
      %v705 = vsel %vm630, %v702, %v704
      %v706 = vrot.slane %v523, 1
      %v707 = vrot.slane %v524, 1
      %v708 = vsel %vm630, %v706, %v707
      %v709 = vrot.slane %v525, 1
      %v710 = vsel %vm630, %v707, %v709
      %711 = vrot.lane.b32.xlu0 %v633, 4
      %v712 = vpop.permute.xlu0 %711
      %713 = vrot.lane.b32.xlu0 %v635, 4
      %v714 = vpop.permute.xlu0 %713
      %715 = vrot.lane.b32.xlu0 %v638, 4
      %v716 = vpop.permute.xlu0 %715
      %717 = vrot.lane.b32.xlu0 %v640, 4
      %v718 = vpop.permute.xlu0 %717
      %719 = vrot.lane.b32.xlu0 %v643, 4
      %v720 = vpop.permute.xlu0 %719
      %721 = vrot.lane.b32.xlu0 %v645, 4
      %v722 = vpop.permute.xlu0 %721
      %723 = vrot.lane.b32.xlu0 %v648, 4
      %v724 = vpop.permute.xlu0 %723
      %725 = vrot.lane.b32.xlu0 %v650, 4
      %v726 = vpop.permute.xlu0 %725
      %727 = vrot.lane.b32.xlu0 %v653, 4
      %v728 = vpop.permute.xlu0 %727
      %729 = vrot.lane.b32.xlu0 %v655, 4
      %v730 = vpop.permute.xlu0 %729
      %731 = vrot.lane.b32.xlu0 %v658, 4
      %v732 = vpop.permute.xlu0 %731
      %733 = vrot.lane.b32.xlu0 %v660, 4
      %v734 = vpop.permute.xlu0 %733
      %735 = vrot.lane.b32.xlu0 %v663, 4
      %v736 = vpop.permute.xlu0 %735
      %737 = vrot.lane.b32.xlu0 %v665, 4
      %v738 = vpop.permute.xlu0 %737
      %739 = vrot.lane.b32.xlu0 %v668, 4
      %v740 = vpop.permute.xlu0 %739
      %741 = vrot.lane.b32.xlu0 %v670, 4
      %v742 = vpop.permute.xlu0 %741
      %743 = vrot.lane.b32.xlu0 %v673, 4
      %v744 = vpop.permute.xlu0 %743
      %745 = vrot.lane.b32.xlu0 %v675, 4
      %v746 = vpop.permute.xlu0 %745
      %747 = vrot.lane.b32.xlu0 %v678, 4
      %v748 = vpop.permute.xlu0 %747
      %749 = vrot.lane.b32.xlu0 %v680, 4
      %v750 = vpop.permute.xlu0 %749
      %751 = vrot.lane.b32.xlu0 %v683, 4
      %v752 = vpop.permute.xlu0 %751
      %753 = vrot.lane.b32.xlu0 %v685, 4
      %v754 = vpop.permute.xlu0 %753
      %755 = vrot.lane.b32.xlu0 %v688, 4
      %v756 = vpop.permute.xlu0 %755
      %757 = vrot.lane.b32.xlu0 %v690, 4
      %v758 = vpop.permute.xlu0 %757
      %759 = vrot.lane.b32.xlu0 %v693, 4
      %v760 = vpop.permute.xlu0 %759
      %761 = vrot.lane.b32.xlu0 %v695, 4
      %v762 = vpop.permute.xlu0 %761
      %763 = vrot.lane.b32.xlu0 %v698, 4
      %v764 = vpop.permute.xlu0 %763
      %765 = vrot.lane.b32.xlu0 %v700, 4
      %v766 = vpop.permute.xlu0 %765
      %767 = vrot.lane.b32.xlu0 %v703, 4
      %v768 = vpop.permute.xlu0 %767
      %769 = vrot.lane.b32.xlu0 %v705, 4
      %v770 = vpop.permute.xlu0 %769
      %771 = vrot.lane.b32.xlu0 %v708, 4
      %v772 = vpop.permute.xlu0 %771
      %773 = vrot.lane.b32.xlu0 %v710, 4
      %v774 = vpop.permute.xlu0 %773
      %vm807 = vcmask 1045504
      %v808 = vrot.slane %v569, 2
      %v809 = vrot.slane %v570, 2
      %v810 = vsel %vm807, %v808, %v809
      %v811 = vrot.slane %v571, 2
      %v812 = vsel %vm807, %v809, %v811
      %v813 = vrot.slane %v502, 2
      %v814 = vrot.slane %v503, 2
      %v815 = vsel %vm807, %v813, %v814
      %v816 = vrot.slane %v504, 2
      %v817 = vsel %vm807, %v814, %v816
      %v818 = vrot.slane %v532, 2
      %v819 = vrot.slane %v533, 2
      %v820 = vsel %vm807, %v818, %v819
      %v821 = vrot.slane %v534, 2
      %v822 = vsel %vm807, %v819, %v821
      %v823 = vrot.slane %v505, 2
      %v824 = vrot.slane %v506, 2
      %v825 = vsel %vm807, %v823, %v824
      %v826 = vrot.slane %v507, 2
      %v827 = vsel %vm807, %v824, %v826
      %v828 = vrot.slane %v535, 2
      %v829 = vrot.slane %v536, 2
      %v830 = vsel %vm807, %v828, %v829
      %v831 = vrot.slane %v537, 2
      %v832 = vsel %vm807, %v829, %v831
      %v833 = vrot.slane %v508, 2
      %v834 = vrot.slane %v509, 2
      %v835 = vsel %vm807, %v833, %v834
      %v836 = vrot.slane %v510, 2
      %v837 = vsel %vm807, %v834, %v836
      %v838 = vrot.slane %v538, 2
      %v839 = vrot.slane %v539, 2
      %v840 = vsel %vm807, %v838, %v839
      %v841 = vrot.slane %v540, 2
      %v842 = vsel %vm807, %v839, %v841
      %v843 = vrot.slane %v511, 2
      %v844 = vrot.slane %v512, 2
      %v845 = vsel %vm807, %v843, %v844
      %v846 = vrot.slane %v513, 2
      %v847 = vsel %vm807, %v844, %v846
      %v848 = vrot.slane %v541, 2
      %v849 = vrot.slane %v542, 2
      %v850 = vsel %vm807, %v848, %v849
      %v851 = vrot.slane %v543, 2
      %v852 = vsel %vm807, %v849, %v851
      %v853 = vrot.slane %v514, 2
      %v854 = vrot.slane %v515, 2
      %v855 = vsel %vm807, %v853, %v854
      %v856 = vrot.slane %v516, 2
      %v857 = vsel %vm807, %v854, %v856
      %v858 = vrot.slane %v544, 2
      %v859 = vrot.slane %v545, 2
      %v860 = vsel %vm807, %v858, %v859
      %v861 = vrot.slane %v546, 2
      %v862 = vsel %vm807, %v859, %v861
      %v863 = vrot.slane %v517, 2
      %v864 = vrot.slane %v518, 2
      %v865 = vsel %vm807, %v863, %v864
      %v866 = vrot.slane %v519, 2
      %v867 = vsel %vm807, %v864, %v866
      %v868 = vrot.slane %v547, 2
      %v869 = vrot.slane %v548, 2
      %v870 = vsel %vm807, %v868, %v869
      %v871 = vrot.slane %v549, 2
      %v872 = vsel %vm807, %v869, %v871
      %v873 = vrot.slane %v520, 2
      %v874 = vrot.slane %v521, 2
      %v875 = vsel %vm807, %v873, %v874
      %v876 = vrot.slane %v522, 2
      %v877 = vsel %vm807, %v874, %v876
      %v878 = vrot.slane %v550, 2
      %v879 = vrot.slane %v551, 2
      %v880 = vsel %vm807, %v878, %v879
      %v881 = vrot.slane %v552, 2
      %v882 = vsel %vm807, %v879, %v881
      %v883 = vrot.slane %v523, 2
      %v884 = vrot.slane %v524, 2
      %v885 = vsel %vm807, %v883, %v884
      %v886 = vrot.slane %v525, 2
      %v887 = vsel %vm807, %v884, %v886
      %888 = vrot.lane.b32.xlu0 %v810, 8
      %v889 = vpop.permute.xlu0 %888
      %890 = vrot.lane.b32.xlu0 %v812, 8
      %v891 = vpop.permute.xlu0 %890
      %892 = vrot.lane.b32.xlu0 %v815, 8
      %v893 = vpop.permute.xlu0 %892
      %894 = vrot.lane.b32.xlu0 %v817, 8
      %v895 = vpop.permute.xlu0 %894
      %896 = vrot.lane.b32.xlu0 %v820, 8
      %v897 = vpop.permute.xlu0 %896
      %898 = vrot.lane.b32.xlu0 %v822, 8
      %v899 = vpop.permute.xlu0 %898
      %900 = vrot.lane.b32.xlu0 %v825, 8
      %v901 = vpop.permute.xlu0 %900
      %902 = vrot.lane.b32.xlu0 %v827, 8
      %v903 = vpop.permute.xlu0 %902
      %904 = vrot.lane.b32.xlu0 %v830, 8
      %v905 = vpop.permute.xlu0 %904
      %906 = vrot.lane.b32.xlu0 %v832, 8
      %v907 = vpop.permute.xlu0 %906
      %908 = vrot.lane.b32.xlu0 %v835, 8
      %v909 = vpop.permute.xlu0 %908
      %910 = vrot.lane.b32.xlu0 %v837, 8
      %v911 = vpop.permute.xlu0 %910
      %912 = vrot.lane.b32.xlu0 %v840, 8
      %v913 = vpop.permute.xlu0 %912
      %914 = vrot.lane.b32.xlu0 %v842, 8
      %v915 = vpop.permute.xlu0 %914
      %916 = vrot.lane.b32.xlu0 %v845, 8
      %v917 = vpop.permute.xlu0 %916
      %918 = vrot.lane.b32.xlu0 %v847, 8
      %v919 = vpop.permute.xlu0 %918
      %920 = vrot.lane.b32.xlu0 %v850, 8
      %v921 = vpop.permute.xlu0 %920
      %922 = vrot.lane.b32.xlu0 %v852, 8
      %v923 = vpop.permute.xlu0 %922
      %924 = vrot.lane.b32.xlu0 %v855, 8
      %v925 = vpop.permute.xlu0 %924
      %926 = vrot.lane.b32.xlu0 %v857, 8
      %v927 = vpop.permute.xlu0 %926
      %928 = vrot.lane.b32.xlu0 %v860, 8
      %v929 = vpop.permute.xlu0 %928
      %930 = vrot.lane.b32.xlu0 %v862, 8
      %v931 = vpop.permute.xlu0 %930
      %932 = vrot.lane.b32.xlu0 %v865, 8
      %v933 = vpop.permute.xlu0 %932
      %934 = vrot.lane.b32.xlu0 %v867, 8
      %v935 = vpop.permute.xlu0 %934
      %936 = vrot.lane.b32.xlu0 %v870, 8
      %v937 = vpop.permute.xlu0 %936
      %938 = vrot.lane.b32.xlu0 %v872, 8
      %v939 = vpop.permute.xlu0 %938
      %940 = vrot.lane.b32.xlu0 %v875, 8
      %v941 = vpop.permute.xlu0 %940
      %942 = vrot.lane.b32.xlu0 %v877, 8
      %v943 = vpop.permute.xlu0 %942
      %944 = vrot.lane.b32.xlu0 %v880, 8
      %v945 = vpop.permute.xlu0 %944
      %946 = vrot.lane.b32.xlu0 %v882, 8
      %v947 = vpop.permute.xlu0 %946
      %948 = vrot.lane.b32.xlu0 %v885, 8
      %v949 = vpop.permute.xlu0 %948
      %950 = vrot.lane.b32.xlu0 %v887, 8
      %v951 = vpop.permute.xlu0 %950
      %986 = vrot.lane.b32.xlu0 %v502, 12
      %v987 = vpop.permute.xlu0 %986
      %988 = vrot.lane.b32.xlu0 %v503, 12
      %v989 = vpop.permute.xlu0 %988
      %990 = vrot.lane.b32.xlu0 %v532, 12
      %v991 = vpop.permute.xlu0 %990
      %992 = vrot.lane.b32.xlu0 %v533, 12
      %v993 = vpop.permute.xlu0 %992
      %994 = vrot.lane.b32.xlu0 %v505, 12
      %v995 = vpop.permute.xlu0 %994
      %996 = vrot.lane.b32.xlu0 %v506, 12
      %v997 = vpop.permute.xlu0 %996
      %998 = vrot.lane.b32.xlu0 %v535, 12
      %v999 = vpop.permute.xlu0 %998
      %1000 = vrot.lane.b32.xlu0 %v536, 12
      %v1001 = vpop.permute.xlu0 %1000
      %1002 = vrot.lane.b32.xlu0 %v508, 12
      %v1003 = vpop.permute.xlu0 %1002
      %1004 = vrot.lane.b32.xlu0 %v509, 12
      %v1005 = vpop.permute.xlu0 %1004
      %1006 = vrot.lane.b32.xlu0 %v538, 12
      %v1007 = vpop.permute.xlu0 %1006
      %1008 = vrot.lane.b32.xlu0 %v539, 12
      %v1009 = vpop.permute.xlu0 %1008
      %1010 = vrot.lane.b32.xlu0 %v511, 12
      %v1011 = vpop.permute.xlu0 %1010
      %1012 = vrot.lane.b32.xlu0 %v512, 12
      %v1013 = vpop.permute.xlu0 %1012
      %1014 = vrot.lane.b32.xlu0 %v541, 12
      %v1015 = vpop.permute.xlu0 %1014
      %1016 = vrot.lane.b32.xlu0 %v542, 12
      %v1017 = vpop.permute.xlu0 %1016
      %1018 = vrot.lane.b32.xlu0 %v514, 12
      %v1019 = vpop.permute.xlu0 %1018
      %1020 = vrot.lane.b32.xlu0 %v515, 12
      %v1021 = vpop.permute.xlu0 %1020
      %1022 = vrot.lane.b32.xlu0 %v544, 12
      %v1023 = vpop.permute.xlu0 %1022
      %1024 = vrot.lane.b32.xlu0 %v545, 12
      %v1025 = vpop.permute.xlu0 %1024
      %1026 = vrot.lane.b32.xlu0 %v517, 12
      %v1027 = vpop.permute.xlu0 %1026
      %1028 = vrot.lane.b32.xlu0 %v518, 12
      %v1029 = vpop.permute.xlu0 %1028
      %1030 = vrot.lane.b32.xlu0 %v547, 12
      %v1031 = vpop.permute.xlu0 %1030
      %1032 = vrot.lane.b32.xlu0 %v548, 12
      %v1033 = vpop.permute.xlu0 %1032
      %1034 = vrot.lane.b32.xlu0 %v520, 12
      %v1035 = vpop.permute.xlu0 %1034
      %1036 = vrot.lane.b32.xlu0 %v521, 12
      %v1037 = vpop.permute.xlu0 %1036
      %1038 = vrot.lane.b32.xlu0 %v550, 12
      %v1039 = vpop.permute.xlu0 %1038
      %1040 = vrot.lane.b32.xlu0 %v551, 12
      %v1041 = vpop.permute.xlu0 %1040
      %1042 = vrot.lane.b32.xlu0 %v523, 12
      %v1043 = vpop.permute.xlu0 %1042
      %1044 = vrot.lane.b32.xlu0 %v524, 12
      %v1045 = vpop.permute.xlu0 %1044
      %1046 = vrot.lane.b32.xlu0 %v553, 12
      %v1047 = vpop.permute.xlu0 %1046
      %1048 = vrot.lane.b32.xlu0 %v554, 12
      %v1049 = vpop.permute.xlu0 %1048
      %v1083 = vrot.slane %v553, 1
      %v1084 = vrot.slane %v554, 1
      %v1085 = vsel %vm630, %v1083, %v1084
      %v1086 = vrot.slane %v555, 1
      %v1087 = vsel %vm630, %v1084, %v1086
      %1088 = vrot.lane.b32.xlu0 %v638, 16
      %v1089 = vpop.permute.xlu0 %1088
      %1090 = vrot.lane.b32.xlu0 %v640, 16
      %v1091 = vpop.permute.xlu0 %1090
      %1092 = vrot.lane.b32.xlu0 %v643, 16
      %v1093 = vpop.permute.xlu0 %1092
      %1094 = vrot.lane.b32.xlu0 %v645, 16
      %v1095 = vpop.permute.xlu0 %1094
      %1096 = vrot.lane.b32.xlu0 %v648, 16
      %v1097 = vpop.permute.xlu0 %1096
      %1098 = vrot.lane.b32.xlu0 %v650, 16
      %v1099 = vpop.permute.xlu0 %1098
      %1100 = vrot.lane.b32.xlu0 %v653, 16
      %v1101 = vpop.permute.xlu0 %1100
      %1102 = vrot.lane.b32.xlu0 %v655, 16
      %v1103 = vpop.permute.xlu0 %1102
      %1104 = vrot.lane.b32.xlu0 %v658, 16
      %v1105 = vpop.permute.xlu0 %1104
      %1106 = vrot.lane.b32.xlu0 %v660, 16
      %v1107 = vpop.permute.xlu0 %1106
      %1108 = vrot.lane.b32.xlu0 %v663, 16
      %v1109 = vpop.permute.xlu0 %1108
      %1110 = vrot.lane.b32.xlu0 %v665, 16
      %v1111 = vpop.permute.xlu0 %1110
      %1112 = vrot.lane.b32.xlu0 %v668, 16
      %v1113 = vpop.permute.xlu0 %1112
      %1114 = vrot.lane.b32.xlu0 %v670, 16
      %v1115 = vpop.permute.xlu0 %1114
      %1116 = vrot.lane.b32.xlu0 %v673, 16
      %v1117 = vpop.permute.xlu0 %1116
      %1118 = vrot.lane.b32.xlu0 %v675, 16
      %v1119 = vpop.permute.xlu0 %1118
      %1120 = vrot.lane.b32.xlu0 %v678, 16
      %v1121 = vpop.permute.xlu0 %1120
      %1122 = vrot.lane.b32.xlu0 %v680, 16
      %v1123 = vpop.permute.xlu0 %1122
      %1124 = vrot.lane.b32.xlu0 %v683, 16
      %v1125 = vpop.permute.xlu0 %1124
      %1126 = vrot.lane.b32.xlu0 %v685, 16
      %v1127 = vpop.permute.xlu0 %1126
      %1128 = vrot.lane.b32.xlu0 %v688, 16
      %v1129 = vpop.permute.xlu0 %1128
      %1130 = vrot.lane.b32.xlu0 %v690, 16
      %v1131 = vpop.permute.xlu0 %1130
      %1132 = vrot.lane.b32.xlu0 %v693, 16
      %v1133 = vpop.permute.xlu0 %1132
      %1134 = vrot.lane.b32.xlu0 %v695, 16
      %v1135 = vpop.permute.xlu0 %1134
      %1136 = vrot.lane.b32.xlu0 %v698, 16
      %v1137 = vpop.permute.xlu0 %1136
      %1138 = vrot.lane.b32.xlu0 %v700, 16
      %v1139 = vpop.permute.xlu0 %1138
      %1140 = vrot.lane.b32.xlu0 %v703, 16
      %v1141 = vpop.permute.xlu0 %1140
      %1142 = vrot.lane.b32.xlu0 %v705, 16
      %v1143 = vpop.permute.xlu0 %1142
      %1144 = vrot.lane.b32.xlu0 %v708, 16
      %v1145 = vpop.permute.xlu0 %1144
      %1146 = vrot.lane.b32.xlu0 %v710, 16
      %v1147 = vpop.permute.xlu0 %1146
      %1148 = vrot.lane.b32.xlu0 %v1085, 16
      %v1149 = vpop.permute.xlu0 %1148
      %1150 = vrot.lane.b32.xlu0 %v1087, 16
      %v1151 = vpop.permute.xlu0 %1150
      %v1184 = vrot.slane %v553, 2
      %v1185 = vrot.slane %v554, 2
      %v1186 = vsel %vm807, %v1184, %v1185
      %v1187 = vrot.slane %v555, 2
      %v1188 = vsel %vm807, %v1185, %v1187
      %1189 = vrot.lane.b32.xlu0 %v815, 20
      %v1190 = vpop.permute.xlu0 %1189
      %1191 = vrot.lane.b32.xlu0 %v817, 20
      %v1192 = vpop.permute.xlu0 %1191
      %1193 = vrot.lane.b32.xlu0 %v820, 20
      %v1194 = vpop.permute.xlu0 %1193
      %1195 = vrot.lane.b32.xlu0 %v822, 20
      %v1196 = vpop.permute.xlu0 %1195
      %1197 = vrot.lane.b32.xlu0 %v825, 20
      %v1198 = vpop.permute.xlu0 %1197
      %1199 = vrot.lane.b32.xlu0 %v827, 20
      %v1200 = vpop.permute.xlu0 %1199
      %1201 = vrot.lane.b32.xlu0 %v830, 20
      %v1202 = vpop.permute.xlu0 %1201
      %1203 = vrot.lane.b32.xlu0 %v832, 20
      %v1204 = vpop.permute.xlu0 %1203
      %1205 = vrot.lane.b32.xlu0 %v835, 20
      %v1206 = vpop.permute.xlu0 %1205
      %1207 = vrot.lane.b32.xlu0 %v837, 20
      %v1208 = vpop.permute.xlu0 %1207
      %1209 = vrot.lane.b32.xlu0 %v840, 20
      %v1210 = vpop.permute.xlu0 %1209
      %1211 = vrot.lane.b32.xlu0 %v842, 20
      %v1212 = vpop.permute.xlu0 %1211
      %1213 = vrot.lane.b32.xlu0 %v845, 20
      %v1214 = vpop.permute.xlu0 %1213
      %1215 = vrot.lane.b32.xlu0 %v847, 20
      %v1216 = vpop.permute.xlu0 %1215
      %1217 = vrot.lane.b32.xlu0 %v850, 20
      %v1218 = vpop.permute.xlu0 %1217
      %1219 = vrot.lane.b32.xlu0 %v852, 20
      %v1220 = vpop.permute.xlu0 %1219
      %1221 = vrot.lane.b32.xlu0 %v855, 20
      %v1222 = vpop.permute.xlu0 %1221
      %1223 = vrot.lane.b32.xlu0 %v857, 20
      %v1224 = vpop.permute.xlu0 %1223
      %1225 = vrot.lane.b32.xlu0 %v860, 20
      %v1226 = vpop.permute.xlu0 %1225
      %1227 = vrot.lane.b32.xlu0 %v862, 20
      %v1228 = vpop.permute.xlu0 %1227
      %1229 = vrot.lane.b32.xlu0 %v865, 20
      %v1230 = vpop.permute.xlu0 %1229
      %1231 = vrot.lane.b32.xlu0 %v867, 20
      %v1232 = vpop.permute.xlu0 %1231
      %1233 = vrot.lane.b32.xlu0 %v870, 20
      %v1234 = vpop.permute.xlu0 %1233
      %1235 = vrot.lane.b32.xlu0 %v872, 20
      %v1236 = vpop.permute.xlu0 %1235
      %1237 = vrot.lane.b32.xlu0 %v875, 20
      %v1238 = vpop.permute.xlu0 %1237
      %1239 = vrot.lane.b32.xlu0 %v877, 20
      %v1240 = vpop.permute.xlu0 %1239
      %1241 = vrot.lane.b32.xlu0 %v880, 20
      %v1242 = vpop.permute.xlu0 %1241
      %1243 = vrot.lane.b32.xlu0 %v882, 20
      %v1244 = vpop.permute.xlu0 %1243
      %1245 = vrot.lane.b32.xlu0 %v885, 20
      %v1246 = vpop.permute.xlu0 %1245
      %1247 = vrot.lane.b32.xlu0 %v887, 20
      %v1248 = vpop.permute.xlu0 %1247
      %1249 = vrot.lane.b32.xlu0 %v1186, 20
      %v1250 = vpop.permute.xlu0 %1249
      %1251 = vrot.lane.b32.xlu0 %v1188, 20
      %v1252 = vpop.permute.xlu0 %1251
      %1287 = vrot.lane.b32.xlu0 %v532, 24
      %v1288 = vpop.permute.xlu0 %1287
      %1289 = vrot.lane.b32.xlu0 %v533, 24
      %v1290 = vpop.permute.xlu0 %1289
      %1291 = vrot.lane.b32.xlu0 %v505, 24
      %v1292 = vpop.permute.xlu0 %1291
      %1293 = vrot.lane.b32.xlu0 %v506, 24
      %v1294 = vpop.permute.xlu0 %1293
      %1295 = vrot.lane.b32.xlu0 %v535, 24
      %v1296 = vpop.permute.xlu0 %1295
      %1297 = vrot.lane.b32.xlu0 %v536, 24
      %v1298 = vpop.permute.xlu0 %1297
      %1299 = vrot.lane.b32.xlu0 %v508, 24
      %v1300 = vpop.permute.xlu0 %1299
      %1301 = vrot.lane.b32.xlu0 %v509, 24
      %v1302 = vpop.permute.xlu0 %1301
      %1303 = vrot.lane.b32.xlu0 %v538, 24
      %v1304 = vpop.permute.xlu0 %1303
      %1305 = vrot.lane.b32.xlu0 %v539, 24
      %v1306 = vpop.permute.xlu0 %1305
      %1307 = vrot.lane.b32.xlu0 %v511, 24
      %v1308 = vpop.permute.xlu0 %1307
      %1309 = vrot.lane.b32.xlu0 %v512, 24
      %v1310 = vpop.permute.xlu0 %1309
      %1311 = vrot.lane.b32.xlu0 %v541, 24
      %v1312 = vpop.permute.xlu0 %1311
      %1313 = vrot.lane.b32.xlu0 %v542, 24
      %v1314 = vpop.permute.xlu0 %1313
      %1315 = vrot.lane.b32.xlu0 %v514, 24
      %v1316 = vpop.permute.xlu0 %1315
      %1317 = vrot.lane.b32.xlu0 %v515, 24
      %v1318 = vpop.permute.xlu0 %1317
      %1319 = vrot.lane.b32.xlu0 %v544, 24
      %v1320 = vpop.permute.xlu0 %1319
      %1321 = vrot.lane.b32.xlu0 %v545, 24
      %v1322 = vpop.permute.xlu0 %1321
      %1323 = vrot.lane.b32.xlu0 %v517, 24
      %v1324 = vpop.permute.xlu0 %1323
      %1325 = vrot.lane.b32.xlu0 %v518, 24
      %v1326 = vpop.permute.xlu0 %1325
      %1327 = vrot.lane.b32.xlu0 %v547, 24
      %v1328 = vpop.permute.xlu0 %1327
      %1329 = vrot.lane.b32.xlu0 %v548, 24
      %v1330 = vpop.permute.xlu0 %1329
      %1331 = vrot.lane.b32.xlu0 %v520, 24
      %v1332 = vpop.permute.xlu0 %1331
      %1333 = vrot.lane.b32.xlu0 %v521, 24
      %v1334 = vpop.permute.xlu0 %1333
      %1335 = vrot.lane.b32.xlu0 %v550, 24
      %v1336 = vpop.permute.xlu0 %1335
      %1337 = vrot.lane.b32.xlu0 %v551, 24
      %v1338 = vpop.permute.xlu0 %1337
      %1339 = vrot.lane.b32.xlu0 %v523, 24
      %v1340 = vpop.permute.xlu0 %1339
      %1341 = vrot.lane.b32.xlu0 %v524, 24
      %v1342 = vpop.permute.xlu0 %1341
      %1343 = vrot.lane.b32.xlu0 %v553, 24
      %v1344 = vpop.permute.xlu0 %1343
      %1345 = vrot.lane.b32.xlu0 %v554, 24
      %v1346 = vpop.permute.xlu0 %1345
      %1347 = vrot.lane.b32.xlu0 %v579, 24
      %v1348 = vpop.permute.xlu0 %1347
      %1349 = vrot.lane.b32.xlu0 %v580, 24
      %v1350 = vpop.permute.xlu0 %1349
      %v1384 = vrot.slane %v579, 1
      %v1385 = vrot.slane %v580, 1
      %v1386 = vsel %vm630, %v1384, %v1385
      %v1387 = vrot.slane %v581, 1
      %v1388 = vsel %vm630, %v1385, %v1387
      %1389 = vrot.lane.b32.xlu0 %v643, 28
      %v1390 = vpop.permute.xlu0 %1389
      %1391 = vrot.lane.b32.xlu0 %v645, 28
      %v1392 = vpop.permute.xlu0 %1391
      %1393 = vrot.lane.b32.xlu0 %v648, 28
      %v1394 = vpop.permute.xlu0 %1393
      %1395 = vrot.lane.b32.xlu0 %v650, 28
      %v1396 = vpop.permute.xlu0 %1395
      %1397 = vrot.lane.b32.xlu0 %v653, 28
      %v1398 = vpop.permute.xlu0 %1397
      %1399 = vrot.lane.b32.xlu0 %v655, 28
      %v1400 = vpop.permute.xlu0 %1399
      %1401 = vrot.lane.b32.xlu0 %v658, 28
      %v1402 = vpop.permute.xlu0 %1401
      %1403 = vrot.lane.b32.xlu0 %v660, 28
      %v1404 = vpop.permute.xlu0 %1403
      %1405 = vrot.lane.b32.xlu0 %v663, 28
      %v1406 = vpop.permute.xlu0 %1405
      %1407 = vrot.lane.b32.xlu0 %v665, 28
      %v1408 = vpop.permute.xlu0 %1407
      %1409 = vrot.lane.b32.xlu0 %v668, 28
      %v1410 = vpop.permute.xlu0 %1409
      %1411 = vrot.lane.b32.xlu0 %v670, 28
      %v1412 = vpop.permute.xlu0 %1411
      %1413 = vrot.lane.b32.xlu0 %v673, 28
      %v1414 = vpop.permute.xlu0 %1413
      %1415 = vrot.lane.b32.xlu0 %v675, 28
      %v1416 = vpop.permute.xlu0 %1415
      %1417 = vrot.lane.b32.xlu0 %v678, 28
      %v1418 = vpop.permute.xlu0 %1417
      %1419 = vrot.lane.b32.xlu0 %v680, 28
      %v1420 = vpop.permute.xlu0 %1419
      %1421 = vrot.lane.b32.xlu0 %v683, 28
      %v1422 = vpop.permute.xlu0 %1421
      %1423 = vrot.lane.b32.xlu0 %v685, 28
      %v1424 = vpop.permute.xlu0 %1423
      %1425 = vrot.lane.b32.xlu0 %v688, 28
      %v1426 = vpop.permute.xlu0 %1425
      %1427 = vrot.lane.b32.xlu0 %v690, 28
      %v1428 = vpop.permute.xlu0 %1427
      %1429 = vrot.lane.b32.xlu0 %v693, 28
      %v1430 = vpop.permute.xlu0 %1429
      %1431 = vrot.lane.b32.xlu0 %v695, 28
      %v1432 = vpop.permute.xlu0 %1431
      %1433 = vrot.lane.b32.xlu0 %v698, 28
      %v1434 = vpop.permute.xlu0 %1433
      %1435 = vrot.lane.b32.xlu0 %v700, 28
      %v1436 = vpop.permute.xlu0 %1435
      %1437 = vrot.lane.b32.xlu0 %v703, 28
      %v1438 = vpop.permute.xlu0 %1437
      %1439 = vrot.lane.b32.xlu0 %v705, 28
      %v1440 = vpop.permute.xlu0 %1439
      %1441 = vrot.lane.b32.xlu0 %v708, 28
      %v1442 = vpop.permute.xlu0 %1441
      %1443 = vrot.lane.b32.xlu0 %v710, 28
      %v1444 = vpop.permute.xlu0 %1443
      %1445 = vrot.lane.b32.xlu0 %v1085, 28
      %v1446 = vpop.permute.xlu0 %1445
      %1447 = vrot.lane.b32.xlu0 %v1087, 28
      %v1448 = vpop.permute.xlu0 %1447
      %1449 = vrot.lane.b32.xlu0 %v1386, 28
      %v1450 = vpop.permute.xlu0 %1449
      %1451 = vrot.lane.b32.xlu0 %v1388, 28
      %v1452 = vpop.permute.xlu0 %1451
      %v1485 = vrot.slane %v579, 2
      %v1486 = vrot.slane %v580, 2
      %v1487 = vsel %vm807, %v1485, %v1486
      %v1488 = vrot.slane %v581, 2
      %v1489 = vsel %vm807, %v1486, %v1488
      %1490 = vrot.lane.b32.xlu0 %v820, 32
      %v1491 = vpop.permute.xlu0 %1490
      %1492 = vrot.lane.b32.xlu0 %v822, 32
      %v1493 = vpop.permute.xlu0 %1492
      %1494 = vrot.lane.b32.xlu0 %v825, 32
      %v1495 = vpop.permute.xlu0 %1494
      %1496 = vrot.lane.b32.xlu0 %v827, 32
      %v1497 = vpop.permute.xlu0 %1496
      %1498 = vrot.lane.b32.xlu0 %v830, 32
      %v1499 = vpop.permute.xlu0 %1498
      %1500 = vrot.lane.b32.xlu0 %v832, 32
      %v1501 = vpop.permute.xlu0 %1500
      %1502 = vrot.lane.b32.xlu0 %v835, 32
      %v1503 = vpop.permute.xlu0 %1502
      %1504 = vrot.lane.b32.xlu0 %v837, 32
      %v1505 = vpop.permute.xlu0 %1504
      %1506 = vrot.lane.b32.xlu0 %v840, 32
      %v1507 = vpop.permute.xlu0 %1506
      %1508 = vrot.lane.b32.xlu0 %v842, 32
      %v1509 = vpop.permute.xlu0 %1508
      %1510 = vrot.lane.b32.xlu0 %v845, 32
      %v1511 = vpop.permute.xlu0 %1510
      %1512 = vrot.lane.b32.xlu0 %v847, 32
      %v1513 = vpop.permute.xlu0 %1512
      %1514 = vrot.lane.b32.xlu0 %v850, 32
      %v1515 = vpop.permute.xlu0 %1514
      %1516 = vrot.lane.b32.xlu0 %v852, 32
      %v1517 = vpop.permute.xlu0 %1516
      %1518 = vrot.lane.b32.xlu0 %v855, 32
      %v1519 = vpop.permute.xlu0 %1518
      %1520 = vrot.lane.b32.xlu0 %v857, 32
      %v1521 = vpop.permute.xlu0 %1520
      %1522 = vrot.lane.b32.xlu0 %v860, 32
      %v1523 = vpop.permute.xlu0 %1522
      %1524 = vrot.lane.b32.xlu0 %v862, 32
      %v1525 = vpop.permute.xlu0 %1524
      %1526 = vrot.lane.b32.xlu0 %v865, 32
      %v1527 = vpop.permute.xlu0 %1526
      %1528 = vrot.lane.b32.xlu0 %v867, 32
      %v1529 = vpop.permute.xlu0 %1528
      %1530 = vrot.lane.b32.xlu0 %v870, 32
      %v1531 = vpop.permute.xlu0 %1530
      %1532 = vrot.lane.b32.xlu0 %v872, 32
      %v1533 = vpop.permute.xlu0 %1532
      %1534 = vrot.lane.b32.xlu0 %v875, 32
      %v1535 = vpop.permute.xlu0 %1534
      %1536 = vrot.lane.b32.xlu0 %v877, 32
      %v1537 = vpop.permute.xlu0 %1536
      %1538 = vrot.lane.b32.xlu0 %v880, 32
      %v1539 = vpop.permute.xlu0 %1538
      %1540 = vrot.lane.b32.xlu0 %v882, 32
      %v1541 = vpop.permute.xlu0 %1540
      %1542 = vrot.lane.b32.xlu0 %v885, 32
      %v1543 = vpop.permute.xlu0 %1542
      %1544 = vrot.lane.b32.xlu0 %v887, 32
      %v1545 = vpop.permute.xlu0 %1544
      %1546 = vrot.lane.b32.xlu0 %v1186, 32
      %v1547 = vpop.permute.xlu0 %1546
      %1548 = vrot.lane.b32.xlu0 %v1188, 32
      %v1549 = vpop.permute.xlu0 %1548
      %1550 = vrot.lane.b32.xlu0 %v1487, 32
      %v1551 = vpop.permute.xlu0 %1550
      %1552 = vrot.lane.b32.xlu0 %v1489, 32
      %v1553 = vpop.permute.xlu0 %1552
      %vm1586 = vcmask 31744
      %v1587 = vsel %vm1586, %v569, %v712
      %v1588 = vsel %vm1586, %v570, %v714
      %v1589 = vsel %vm1586, %v502, %v716
      %v1590 = vsel %vm1586, %v503, %v718
      %v1591 = vsel %vm1586, %v532, %v720
      %v1592 = vsel %vm1586, %v533, %v722
      %v1593 = vsel %vm1586, %v505, %v724
      %v1594 = vsel %vm1586, %v506, %v726
      %v1595 = vsel %vm1586, %v535, %v728
      %v1596 = vsel %vm1586, %v536, %v730
      %v1597 = vsel %vm1586, %v508, %v732
      %v1598 = vsel %vm1586, %v509, %v734
      %v1599 = vsel %vm1586, %v538, %v736
      %v1600 = vsel %vm1586, %v539, %v738
      %v1601 = vsel %vm1586, %v511, %v740
      %v1602 = vsel %vm1586, %v512, %v742
      %v1603 = vsel %vm1586, %v541, %v744
      %v1604 = vsel %vm1586, %v542, %v746
      %v1605 = vsel %vm1586, %v514, %v748
      %v1606 = vsel %vm1586, %v515, %v750
      %v1607 = vsel %vm1586, %v544, %v752
      %v1608 = vsel %vm1586, %v545, %v754
      %v1609 = vsel %vm1586, %v517, %v756
      %v1610 = vsel %vm1586, %v518, %v758
      %v1611 = vsel %vm1586, %v547, %v760
      %v1612 = vsel %vm1586, %v548, %v762
      %v1613 = vsel %vm1586, %v520, %v764
      %v1614 = vsel %vm1586, %v521, %v766
      %v1615 = vsel %vm1586, %v550, %v768
      %v1616 = vsel %vm1586, %v551, %v770
      %v1617 = vsel %vm1586, %v523, %v772
      %v1618 = vsel %vm1586, %v524, %v774
      %vm1619 = vcmask 64512
      %v1620 = vsel %vm1619, %v1587, %v889
      %v1621 = vsel %vm1619, %v1588, %v891
      %v1622 = vsel %vm1619, %v1589, %v893
      %v1623 = vsel %vm1619, %v1590, %v895
      %v1624 = vsel %vm1619, %v1591, %v897
      %v1625 = vsel %vm1619, %v1592, %v899
      %v1626 = vsel %vm1619, %v1593, %v901
      %v1627 = vsel %vm1619, %v1594, %v903
      %v1628 = vsel %vm1619, %v1595, %v905
      %v1629 = vsel %vm1619, %v1596, %v907
      %v1630 = vsel %vm1619, %v1597, %v909
      %v1631 = vsel %vm1619, %v1598, %v911
      %v1632 = vsel %vm1619, %v1599, %v913
      %v1633 = vsel %vm1619, %v1600, %v915
      %v1634 = vsel %vm1619, %v1601, %v917
      %v1635 = vsel %vm1619, %v1602, %v919
      %v1636 = vsel %vm1619, %v1603, %v921
      %v1637 = vsel %vm1619, %v1604, %v923
      %v1638 = vsel %vm1619, %v1605, %v925
      %v1639 = vsel %vm1619, %v1606, %v927
      %v1640 = vsel %vm1619, %v1607, %v929
      %v1641 = vsel %vm1619, %v1608, %v931
      %v1642 = vsel %vm1619, %v1609, %v933
      %v1643 = vsel %vm1619, %v1610, %v935
      %v1644 = vsel %vm1619, %v1611, %v937
      %v1645 = vsel %vm1619, %v1612, %v939
      %v1646 = vsel %vm1619, %v1613, %v941
      %v1647 = vsel %vm1619, %v1614, %v943
      %v1648 = vsel %vm1619, %v1615, %v945
      %v1649 = vsel %vm1619, %v1616, %v947
      %v1650 = vsel %vm1619, %v1617, %v949
      %v1651 = vsel %vm1619, %v1618, %v951
      %vm1652 = vcmask 97280
      %v1653 = vsel %vm1652, %v1620, %v987
      %v1654 = vsel %vm1652, %v1621, %v989
      %v1655 = vsel %vm1652, %v1622, %v991
      %v1656 = vsel %vm1652, %v1623, %v993
      %v1657 = vsel %vm1652, %v1624, %v995
      %v1658 = vsel %vm1652, %v1625, %v997
      %v1659 = vsel %vm1652, %v1626, %v999
      %v1660 = vsel %vm1652, %v1627, %v1001
      %v1661 = vsel %vm1652, %v1628, %v1003
      %v1662 = vsel %vm1652, %v1629, %v1005
      %v1663 = vsel %vm1652, %v1630, %v1007
      %v1664 = vsel %vm1652, %v1631, %v1009
      %v1665 = vsel %vm1652, %v1632, %v1011
      %v1666 = vsel %vm1652, %v1633, %v1013
      %v1667 = vsel %vm1652, %v1634, %v1015
      %v1668 = vsel %vm1652, %v1635, %v1017
      %v1669 = vsel %vm1652, %v1636, %v1019
      %v1670 = vsel %vm1652, %v1637, %v1021
      %v1671 = vsel %vm1652, %v1638, %v1023
      %v1672 = vsel %vm1652, %v1639, %v1025
      %v1673 = vsel %vm1652, %v1640, %v1027
      %v1674 = vsel %vm1652, %v1641, %v1029
      %v1675 = vsel %vm1652, %v1642, %v1031
      %v1676 = vsel %vm1652, %v1643, %v1033
      %v1677 = vsel %vm1652, %v1644, %v1035
      %v1678 = vsel %vm1652, %v1645, %v1037
      %v1679 = vsel %vm1652, %v1646, %v1039
      %v1680 = vsel %vm1652, %v1647, %v1041
      %v1681 = vsel %vm1652, %v1648, %v1043
      %v1682 = vsel %vm1652, %v1649, %v1045
      %v1683 = vsel %vm1652, %v1650, %v1047
      %v1684 = vsel %vm1652, %v1651, %v1049
      %vm1685 = vcmask 130048
      %v1686 = vsel %vm1685, %v1653, %v1089
      %v1687 = vsel %vm1685, %v1654, %v1091
      %v1688 = vsel %vm1685, %v1655, %v1093
      %v1689 = vsel %vm1685, %v1656, %v1095
      %v1690 = vsel %vm1685, %v1657, %v1097
      %v1691 = vsel %vm1685, %v1658, %v1099
      %v1692 = vsel %vm1685, %v1659, %v1101
      %v1693 = vsel %vm1685, %v1660, %v1103
      %v1694 = vsel %vm1685, %v1661, %v1105
      %v1695 = vsel %vm1685, %v1662, %v1107
      %v1696 = vsel %vm1685, %v1663, %v1109
      %v1697 = vsel %vm1685, %v1664, %v1111
      %v1698 = vsel %vm1685, %v1665, %v1113
      %v1699 = vsel %vm1685, %v1666, %v1115
      %v1700 = vsel %vm1685, %v1667, %v1117
      %v1701 = vsel %vm1685, %v1668, %v1119
      %v1702 = vsel %vm1685, %v1669, %v1121
      %v1703 = vsel %vm1685, %v1670, %v1123
      %v1704 = vsel %vm1685, %v1671, %v1125
      %v1705 = vsel %vm1685, %v1672, %v1127
      %v1706 = vsel %vm1685, %v1673, %v1129
      %v1707 = vsel %vm1685, %v1674, %v1131
      %v1708 = vsel %vm1685, %v1675, %v1133
      %v1709 = vsel %vm1685, %v1676, %v1135
      %v1710 = vsel %vm1685, %v1677, %v1137
      %v1711 = vsel %vm1685, %v1678, %v1139
      %v1712 = vsel %vm1685, %v1679, %v1141
      %v1713 = vsel %vm1685, %v1680, %v1143
      %v1714 = vsel %vm1685, %v1681, %v1145
      %v1715 = vsel %vm1685, %v1682, %v1147
      %v1716 = vsel %vm1685, %v1683, %v1149
      %v1717 = vsel %vm1685, %v1684, %v1151
      %vm1718 = vcmask 162816
      %v1719 = vsel %vm1718, %v1686, %v1190
      %v1720 = vsel %vm1718, %v1687, %v1192
      %v1721 = vsel %vm1718, %v1688, %v1194
      %v1722 = vsel %vm1718, %v1689, %v1196
      %v1723 = vsel %vm1718, %v1690, %v1198
      %v1724 = vsel %vm1718, %v1691, %v1200
      %v1725 = vsel %vm1718, %v1692, %v1202
      %v1726 = vsel %vm1718, %v1693, %v1204
      %v1727 = vsel %vm1718, %v1694, %v1206
      %v1728 = vsel %vm1718, %v1695, %v1208
      %v1729 = vsel %vm1718, %v1696, %v1210
      %v1730 = vsel %vm1718, %v1697, %v1212
      %v1731 = vsel %vm1718, %v1698, %v1214
      %v1732 = vsel %vm1718, %v1699, %v1216
      %v1733 = vsel %vm1718, %v1700, %v1218
      %v1734 = vsel %vm1718, %v1701, %v1220
      %v1735 = vsel %vm1718, %v1702, %v1222
      %v1736 = vsel %vm1718, %v1703, %v1224
      %v1737 = vsel %vm1718, %v1704, %v1226
      %v1738 = vsel %vm1718, %v1705, %v1228
      %v1739 = vsel %vm1718, %v1706, %v1230
      %v1740 = vsel %vm1718, %v1707, %v1232
      %v1741 = vsel %vm1718, %v1708, %v1234
      %v1742 = vsel %vm1718, %v1709, %v1236
      %v1743 = vsel %vm1718, %v1710, %v1238
      %v1744 = vsel %vm1718, %v1711, %v1240
      %v1745 = vsel %vm1718, %v1712, %v1242
      %v1746 = vsel %vm1718, %v1713, %v1244
      %v1747 = vsel %vm1718, %v1714, %v1246
      %v1748 = vsel %vm1718, %v1715, %v1248
      %v1749 = vsel %vm1718, %v1716, %v1250
      %v1750 = vsel %vm1718, %v1717, %v1252
      %vm1751 = vcmask 195584
      %v1752 = vsel %vm1751, %v1719, %v1288
      %v1753 = vsel %vm1751, %v1720, %v1290
      %v1754 = vsel %vm1751, %v1721, %v1292
      %v1755 = vsel %vm1751, %v1722, %v1294
      %v1756 = vsel %vm1751, %v1723, %v1296
      %v1757 = vsel %vm1751, %v1724, %v1298
      %v1758 = vsel %vm1751, %v1725, %v1300
      %v1759 = vsel %vm1751, %v1726, %v1302
      %v1760 = vsel %vm1751, %v1727, %v1304
      %v1761 = vsel %vm1751, %v1728, %v1306
      %v1762 = vsel %vm1751, %v1729, %v1308
      %v1763 = vsel %vm1751, %v1730, %v1310
      %v1764 = vsel %vm1751, %v1731, %v1312
      %v1765 = vsel %vm1751, %v1732, %v1314
      %v1766 = vsel %vm1751, %v1733, %v1316
      %v1767 = vsel %vm1751, %v1734, %v1318
      %v1768 = vsel %vm1751, %v1735, %v1320
      %v1769 = vsel %vm1751, %v1736, %v1322
      %v1770 = vsel %vm1751, %v1737, %v1324
      %v1771 = vsel %vm1751, %v1738, %v1326
      %v1772 = vsel %vm1751, %v1739, %v1328
      %v1773 = vsel %vm1751, %v1740, %v1330
      %v1774 = vsel %vm1751, %v1741, %v1332
      %v1775 = vsel %vm1751, %v1742, %v1334
      %v1776 = vsel %vm1751, %v1743, %v1336
      %v1777 = vsel %vm1751, %v1744, %v1338
      %v1778 = vsel %vm1751, %v1745, %v1340
      %v1779 = vsel %vm1751, %v1746, %v1342
      %v1780 = vsel %vm1751, %v1747, %v1344
      %v1781 = vsel %vm1751, %v1748, %v1346
      %v1782 = vsel %vm1751, %v1749, %v1348
      %v1783 = vsel %vm1751, %v1750, %v1350
      %vm1784 = vcmask 228352
      %v1785 = vsel %vm1784, %v1752, %v1390
      %v1786 = vsel %vm1784, %v1753, %v1392
      %v1787 = vsel %vm1784, %v1754, %v1394
      %v1788 = vsel %vm1784, %v1755, %v1396
      %v1789 = vsel %vm1784, %v1756, %v1398
      %v1790 = vsel %vm1784, %v1757, %v1400
      %v1791 = vsel %vm1784, %v1758, %v1402
      %v1792 = vsel %vm1784, %v1759, %v1404
      %v1793 = vsel %vm1784, %v1760, %v1406
      %v1794 = vsel %vm1784, %v1761, %v1408
      %v1795 = vsel %vm1784, %v1762, %v1410
      %v1796 = vsel %vm1784, %v1763, %v1412
      %v1797 = vsel %vm1784, %v1764, %v1414
      %v1798 = vsel %vm1784, %v1765, %v1416
      %v1799 = vsel %vm1784, %v1766, %v1418
      %v1800 = vsel %vm1784, %v1767, %v1420
      %v1801 = vsel %vm1784, %v1768, %v1422
      %v1802 = vsel %vm1784, %v1769, %v1424
      %v1803 = vsel %vm1784, %v1770, %v1426
      %v1804 = vsel %vm1784, %v1771, %v1428
      %v1805 = vsel %vm1784, %v1772, %v1430
      %v1806 = vsel %vm1784, %v1773, %v1432
      %v1807 = vsel %vm1784, %v1774, %v1434
      %v1808 = vsel %vm1784, %v1775, %v1436
      %v1809 = vsel %vm1784, %v1776, %v1438
      %v1810 = vsel %vm1784, %v1777, %v1440
      %v1811 = vsel %vm1784, %v1778, %v1442
      %v1812 = vsel %vm1784, %v1779, %v1444
      %v1813 = vsel %vm1784, %v1780, %v1446
      %v1814 = vsel %vm1784, %v1781, %v1448
      %v1815 = vsel %vm1784, %v1782, %v1450
      %v1816 = vsel %vm1784, %v1783, %v1452
      %vm1817 = vcmask 261120
      %v1818 = vsel %vm1817, %v1785, %v1491
      %v1819 = vsel %vm1817, %v1786, %v1493
      %v1820 = vsel %vm1817, %v1787, %v1495
      %v1821 = vsel %vm1817, %v1788, %v1497
      %v1822 = vsel %vm1817, %v1789, %v1499
      %v1823 = vsel %vm1817, %v1790, %v1501
      %v1824 = vsel %vm1817, %v1791, %v1503
      %v1825 = vsel %vm1817, %v1792, %v1505
      %v1826 = vsel %vm1817, %v1793, %v1507
      %v1827 = vsel %vm1817, %v1794, %v1509
      %v1828 = vsel %vm1817, %v1795, %v1511
      %v1829 = vsel %vm1817, %v1796, %v1513
      %v1830 = vsel %vm1817, %v1797, %v1515
      %v1831 = vsel %vm1817, %v1798, %v1517
      %v1832 = vsel %vm1817, %v1799, %v1519
      %v1833 = vsel %vm1817, %v1800, %v1521
      %v1834 = vsel %vm1817, %v1801, %v1523
      %v1835 = vsel %vm1817, %v1802, %v1525
      %v1836 = vsel %vm1817, %v1803, %v1527
      %v1837 = vsel %vm1817, %v1804, %v1529
      %v1838 = vsel %vm1817, %v1805, %v1531
      %v1839 = vsel %vm1817, %v1806, %v1533
      %v1840 = vsel %vm1817, %v1807, %v1535
      %v1841 = vsel %vm1817, %v1808, %v1537
      %v1842 = vsel %vm1817, %v1809, %v1539
      %v1843 = vsel %vm1817, %v1810, %v1541
      %v1844 = vsel %vm1817, %v1811, %v1543
      %v1845 = vsel %vm1817, %v1812, %v1545
      %v1846 = vsel %vm1817, %v1813, %v1547
      %v1847 = vsel %vm1817, %v1814, %v1549
      %v1848 = vsel %vm1817, %v1815, %v1551
      %v1849 = vsel %vm1817, %v1816, %v1553
      %v1850 = vld [vmem:[%s3] sm:$0xff]
      %v1851 = vld [vmem:[%s3 + $0x8] sm:$0xff]
      %v1852 = vld [vmem:[%s3 + $0x10] sm:$0xff]
      %v1853 = vld [vmem:[%s3 + $0x18] sm:$0xff]
      %v1854 = vld [vmem:[%s3 + $0x20] sm:$0xf]
      %vm1855 = vcmask 293888
      %v1857 = vsel %vm1855, %v1818, 0
      %v1860 = vsel %vm1855, %v1819, 0
      %v1863 = vsel %vm1855, %v1820, 0
      %v1866 = vsel %vm1855, %v1821, 0
      %v1869 = vsel %vm1855, %v1822, 0
      %v1872 = vsel %vm1855, %v1823, 0
      %v1875 = vsel %vm1855, %v1824, 0
      %v1878 = vsel %vm1855, %v1825, 0
      %v1881 = vsel %vm1855, %v1826, 0
      %v1884 = vsel %vm1855, %v1827, 0
      %v1887 = vsel %vm1855, %v1828, 0
      %v1890 = vsel %vm1855, %v1829, 0
      %v1893 = vsel %vm1855, %v1830, 0
      %v1896 = vsel %vm1855, %v1831, 0
      %v1899 = vsel %vm1855, %v1832, 0
      %v1902 = vsel %vm1855, %v1833, 0
      %v1905 = vsel %vm1855, %v1834, 0
      %v1908 = vsel %vm1855, %v1835, 0
      %v1911 = vsel %vm1855, %v1836, 0
      %v1914 = vsel %vm1855, %v1837, 0
      %v1917 = vsel %vm1855, %v1838, 0
      %v1920 = vsel %vm1855, %v1839, 0
      %v1923 = vsel %vm1855, %v1840, 0
      %v1926 = vsel %vm1855, %v1841, 0
      %v1929 = vsel %vm1855, %v1842, 0
      %v1932 = vsel %vm1855, %v1843, 0
      %v1935 = vsel %vm1855, %v1844, 0
      %v1938 = vsel %vm1855, %v1845, 0
      %v1941 = vsel %vm1855, %v1846, 0
      %v1944 = vsel %vm1855, %v1847, 0
      %v1947 = vsel %vm1855, %v1848, 0
      %v1950 = vsel %vm1855, %v1849, 0
      %vm1952 = vcmask 1043456
      %v1954 = vsel %vm1952, %v1854, 0
      %1956 = vmatprep.subr.mxu0 0.0
      %v1957 = vand.u32 %v1850, 4294901760
      %1958 = vmatpush1.msra.mxu0 %v1957
      %1959 = vmatprep.subr.mxu0 0.0
      %v1960 = vand.u32 %v1851, 4294901760
      %1961 = vmatpush1.msra.mxu0 %v1960
      %1962 = vmatprep.subr.mxu0 0.0
      %v1963 = vand.u32 %v1852, 4294901760
      %1964 = vmatpush1.msra.mxu0 %v1963
      %1965 = vmatprep.subr.mxu0 0.0
      %v1966 = vand.u32 %v1853, 4294901760
      %1967 = vmatpush1.msra.mxu0 %v1966
      %1968 = vmatprep.subr.mxu0 0.0
      %v1969 = vand.u32 %v1954, 4294901760
      %1970 = vmatpush1.msra.mxu0 %v1969
      %1971 = vmatprep.subr.mxu0 0.0
      %1972 = vmatpush1.msra.mxu0 0.0
      %1973 = vmatprep.subr.mxu0 0.0
      %1974 = vmatpush1.msra.mxu0 0.0
      %1975 = vmatprep.subr.mxu0 0.0
      %1976 = vmatpush1.msra.mxu0 0.0
      %1977 = vmatprep.subr.mxu0 0.0
      %1978 = vmatpush1.msra.mxu0 0.0
      %1979 = vmatprep.subr.mxu0 0.0
      %1980 = vmatpush1.msra.mxu0 0.0
      %1981 = vmatprep.subr.mxu0 0.0
      %1982 = vmatpush1.msra.mxu0 0.0
      %1983 = vmatprep.subr.mxu0 0.0
      %1984 = vmatpush1.msra.mxu0 0.0
      %1985 = vmatprep.subr.mxu0 0.0
      %1986 = vmatpush1.msra.mxu0 0.0
      %1987 = vmatprep.subr.mxu0 0.0
      %1988 = vmatpush1.msra.mxu0 0.0
      %1989 = vmatprep.subr.mxu0 0.0
      %1990 = vmatpush1.msra.mxu0 0.0
      %1991 = vmatprep.subr.mxu0 0.0
      %1992 = vmatpush1.msra.mxu0 0.0
      %1993 = vmatprep.subr.mxu0 0.0
      %1994 = vmatpush1.msra.mxu0 0.0
      %1995 = vmatprep.subr.mxu0 0.0
      %1996 = vmatpush1.msra.mxu0 0.0
      %1997 = vmatprep.subr.mxu0 0.0
      %1998 = vmatpush1.msra.mxu0 0.0
      %1999 = vmatprep.subr.mxu0 0.0
      %2000 = vmatpush1.msra.mxu0 0.0
      %2001 = vmatprep.subr.mxu0 0.0
      %2002 = vmatpush1.msra.mxu0 0.0
      %2003 = vmatprep.subr.mxu0 0.0
      %2004 = vmatpush1.msra.mxu0 0.0
      %2005 = vmatprep.subr.mxu0 0.0
      %2006 = vmatpush1.msra.mxu0 0.0
      %2007 = vmatprep.subr.mxu0 0.0
      %2008 = vmatpush1.msra.mxu0 0.0
      %2009 = vmatprep.subr.mxu0 0.0
      %2010 = vmatpush1.msra.mxu0 0.0
      %2011 = vmatprep.subr.mxu0 0.0
      %2012 = vmatpush1.msra.mxu0 0.0
      %2013 = vmatprep.subr.mxu0 0.0
      %2014 = vmatpush1.msra.mxu0 0.0
      %2015 = vmatprep.subr.mxu0 0.0
      %2016 = vmatpush1.msra.mxu0 0.0
      %2017 = vmatprep.subr.mxu0 0.0
      %2018 = vmatpush1.msra.mxu0 0.0
      %2019 = vmatprep.subr.mxu0 0.0
      %2020 = vmatpush1.msra.mxu0 0.0
      %2021 = vmatprep.subr.mxu0 0.0
      %2022 = vmatpush1.msra.mxu0 0.0
      %2023 = vmatprep.subr.mxu0 0.0
      %2024 = vmatpush1.msra.mxu0 0.0
      %2025 = vmatprep.mubr.f32.mxu0 0.0
      %v2026 = vand.u32 %v1857, 4294901760
      %v2027 = vsub.f32 %v1857, %v2026
      %v2028 = vand.u32 %v2027, 4294901760
      %v2029 = vsub.f32 %v2027, %v2028
      %v2030 = vand.u32 %v2029, 4294901760
      %2031 = vmatmul.mubr.f32.gmra.mrb[0].mxu0 %v2030
      %v2032 = vpop.f32.mrb[0].mxu0
      %v2033 = vadd.f32 0.0, %v2032
      %v2034 = vpop.f32.mrb[0].mxu0
      %2035 = vmatprep.mubr.f32.mxu0 0.0
      %v2036 = vand.u32 %v1860, 4294901760
      %v2037 = vsub.f32 %v1860, %v2036
      %v2038 = vand.u32 %v2037, 4294901760
      %v2039 = vsub.f32 %v2037, %v2038
      %v2040 = vand.u32 %v2039, 4294901760
      %2041 = vmatmul.mubr.f32.gmra.mrb[0].mxu0 %v2040
      %v2042 = vpop.f32.mrb[0].mxu0
      %v2043 = vadd.f32 0.0, %v2042
      %v2044 = vpop.f32.mrb[0].mxu0
      %2045 = vmatprep.mubr.f32.mxu0 0.0
      %v2046 = vand.u32 %v1863, 4294901760
      %v2047 = vsub.f32 %v1863, %v2046
      %v2048 = vand.u32 %v2047, 4294901760
      %v2049 = vsub.f32 %v2047, %v2048
      %v2050 = vand.u32 %v2049, 4294901760
      %2051 = vmatmul.mubr.f32.gmra.mrb[0].mxu0 %v2050
      %v2052 = vpop.f32.mrb[0].mxu0
      %v2053 = vadd.f32 0.0, %v2052
      %v2054 = vpop.f32.mrb[0].mxu0
      %2055 = vmatprep.mubr.f32.mxu0 0.0
      %v2056 = vand.u32 %v1866, 4294901760
      %v2057 = vsub.f32 %v1866, %v2056
      %v2058 = vand.u32 %v2057, 4294901760
      %v2059 = vsub.f32 %v2057, %v2058
      %v2060 = vand.u32 %v2059, 4294901760
      %2061 = vmatmul.mubr.f32.gmra.mrb[0].mxu0 %v2060
      %v2062 = vpop.f32.mrb[0].mxu0
      %v2063 = vadd.f32 0.0, %v2062
      %v2064 = vpop.f32.mrb[0].mxu0
      %2065 = vmatprep.mubr.f32.mxu0 0.0
      %v2066 = vand.u32 %v1869, 4294901760
      %v2067 = vsub.f32 %v1869, %v2066
      %v2068 = vand.u32 %v2067, 4294901760
      %v2069 = vsub.f32 %v2067, %v2068
      %v2070 = vand.u32 %v2069, 4294901760
      %2071 = vmatmul.mubr.f32.gmra.mrb[0].mxu0 %v2070
      %v2072 = vpop.f32.mrb[0].mxu0
      %v2073 = vadd.f32 0.0, %v2072
      %v2074 = vpop.f32.mrb[0].mxu0
      %2075 = vmatprep.mubr.f32.mxu0 0.0
      %v2076 = vand.u32 %v1872, 4294901760
      %v2077 = vsub.f32 %v1872, %v2076
      %v2078 = vand.u32 %v2077, 4294901760
      %v2079 = vsub.f32 %v2077, %v2078
      %v2080 = vand.u32 %v2079, 4294901760
      %2081 = vmatmul.mubr.f32.gmra.mrb[0].mxu0 %v2080
      %v2082 = vpop.f32.mrb[0].mxu0
      %v2083 = vadd.f32 0.0, %v2082
      %v2084 = vpop.f32.mrb[0].mxu0
      %2085 = vmatprep.mubr.f32.mxu0 0.0
      %v2086 = vand.u32 %v1875, 4294901760
      %v2087 = vsub.f32 %v1875, %v2086
      %v2088 = vand.u32 %v2087, 4294901760
      %v2089 = vsub.f32 %v2087, %v2088
      %v2090 = vand.u32 %v2089, 4294901760
      %2091 = vmatmul.mubr.f32.gmra.mrb[0].mxu0 %v2090
      %v2092 = vpop.f32.mrb[0].mxu0
      %v2093 = vadd.f32 0.0, %v2092
      %v2094 = vpop.f32.mrb[0].mxu0
      %2095 = vmatprep.mubr.f32.mxu0 0.0
      %v2096 = vand.u32 %v1878, 4294901760
      %v2097 = vsub.f32 %v1878, %v2096
      %v2098 = vand.u32 %v2097, 4294901760
      %v2099 = vsub.f32 %v2097, %v2098
      %v2100 = vand.u32 %v2099, 4294901760
      %2101 = vmatmul.mubr.f32.gmra.mrb[0].mxu0 %v2100
      %v2102 = vpop.f32.mrb[0].mxu0
      %v2103 = vadd.f32 0.0, %v2102
      %v2104 = vpop.f32.mrb[0].mxu0
      %2105 = vmatprep.mubr.f32.mxu0 0.0
      %v2106 = vand.u32 %v1881, 4294901760
      %v2107 = vsub.f32 %v1881, %v2106
      %v2108 = vand.u32 %v2107, 4294901760
      %v2109 = vsub.f32 %v2107, %v2108
      %v2110 = vand.u32 %v2109, 4294901760
      %2111 = vmatmul.mubr.f32.gmra.mrb[0].mxu0 %v2110
      %v2112 = vpop.f32.mrb[0].mxu0
      %v2113 = vadd.f32 0.0, %v2112
      %v2114 = vpop.f32.mrb[0].mxu0
      %2115 = vmatprep.mubr.f32.mxu0 0.0
      %v2116 = vand.u32 %v1884, 4294901760
      %v2117 = vsub.f32 %v1884, %v2116
      %v2118 = vand.u32 %v2117, 4294901760
      %v2119 = vsub.f32 %v2117, %v2118
      %v2120 = vand.u32 %v2119, 4294901760
      %2121 = vmatmul.mubr.f32.gmra.mrb[0].mxu0 %v2120
      %v2122 = vpop.f32.mrb[0].mxu0
      %v2123 = vadd.f32 0.0, %v2122
      %v2124 = vpop.f32.mrb[0].mxu0
      %2125 = vmatprep.mubr.f32.mxu0 0.0
      %v2126 = vand.u32 %v1887, 4294901760
      %v2127 = vsub.f32 %v1887, %v2126
      %v2128 = vand.u32 %v2127, 4294901760
      %v2129 = vsub.f32 %v2127, %v2128
      %v2130 = vand.u32 %v2129, 4294901760
      %2131 = vmatmul.mubr.f32.gmra.mrb[0].mxu0 %v2130
      %v2132 = vpop.f32.mrb[0].mxu0
      %v2133 = vadd.f32 0.0, %v2132
      %v2134 = vpop.f32.mrb[0].mxu0
      %2135 = vmatprep.mubr.f32.mxu0 0.0
      %v2136 = vand.u32 %v1890, 4294901760
      %v2137 = vsub.f32 %v1890, %v2136
      %v2138 = vand.u32 %v2137, 4294901760
      %v2139 = vsub.f32 %v2137, %v2138
      %v2140 = vand.u32 %v2139, 4294901760
      %2141 = vmatmul.mubr.f32.gmra.mrb[0].mxu0 %v2140
      %v2142 = vpop.f32.mrb[0].mxu0
      %v2143 = vadd.f32 0.0, %v2142
      %v2144 = vpop.f32.mrb[0].mxu0
      %2145 = vmatprep.mubr.f32.mxu0 0.0
      %v2146 = vand.u32 %v1893, 4294901760
      %v2147 = vsub.f32 %v1893, %v2146
      %v2148 = vand.u32 %v2147, 4294901760
      %v2149 = vsub.f32 %v2147, %v2148
      %v2150 = vand.u32 %v2149, 4294901760
      %2151 = vmatmul.mubr.f32.gmra.mrb[0].mxu0 %v2150
      %v2152 = vpop.f32.mrb[0].mxu0
      %v2153 = vadd.f32 0.0, %v2152
      %v2154 = vpop.f32.mrb[0].mxu0
      %2155 = vmatprep.mubr.f32.mxu0 0.0
      %v2156 = vand.u32 %v1896, 4294901760
      %v2157 = vsub.f32 %v1896, %v2156
      %v2158 = vand.u32 %v2157, 4294901760
      %v2159 = vsub.f32 %v2157, %v2158
      %v2160 = vand.u32 %v2159, 4294901760
      %2161 = vmatmul.mubr.f32.gmra.mrb[0].mxu0 %v2160
      %v2162 = vpop.f32.mrb[0].mxu0
      %v2163 = vadd.f32 0.0, %v2162
      %v2164 = vpop.f32.mrb[0].mxu0
      %2165 = vmatprep.mubr.f32.mxu0 0.0
      %v2166 = vand.u32 %v1899, 4294901760
      %v2167 = vsub.f32 %v1899, %v2166
      %v2168 = vand.u32 %v2167, 4294901760
      %v2169 = vsub.f32 %v2167, %v2168
      %v2170 = vand.u32 %v2169, 4294901760
      %2171 = vmatmul.mubr.f32.gmra.mrb[0].mxu0 %v2170
      %v2172 = vpop.f32.mrb[0].mxu0
      %v2173 = vadd.f32 0.0, %v2172
      %v2174 = vpop.f32.mrb[0].mxu0
      %2175 = vmatprep.mubr.f32.mxu0 0.0
      %v2176 = vand.u32 %v1902, 4294901760
      %v2177 = vsub.f32 %v1902, %v2176
      %v2178 = vand.u32 %v2177, 4294901760
      %v2179 = vsub.f32 %v2177, %v2178
      %v2180 = vand.u32 %v2179, 4294901760
      %2181 = vmatmul.mubr.f32.gmra.mrb[0].mxu0 %v2180
      %v2182 = vpop.f32.mrb[0].mxu0
      %v2183 = vadd.f32 0.0, %v2182
      %v2184 = vpop.f32.mrb[0].mxu0
      %2185 = vmatprep.mubr.f32.mxu0 0.0
      %v2186 = vand.u32 %v1905, 4294901760
      %v2187 = vsub.f32 %v1905, %v2186
      %v2188 = vand.u32 %v2187, 4294901760
      %v2189 = vsub.f32 %v2187, %v2188
      %v2190 = vand.u32 %v2189, 4294901760
      %2191 = vmatmul.mubr.f32.gmra.mrb[0].mxu0 %v2190
      %v2192 = vpop.f32.mrb[0].mxu0
      %v2193 = vadd.f32 0.0, %v2192
      %v2194 = vpop.f32.mrb[0].mxu0
      %2195 = vmatprep.mubr.f32.mxu0 0.0
      %v2196 = vand.u32 %v1908, 4294901760
      %v2197 = vsub.f32 %v1908, %v2196
      %v2198 = vand.u32 %v2197, 4294901760
      %v2199 = vsub.f32 %v2197, %v2198
      %v2200 = vand.u32 %v2199, 4294901760
      %2201 = vmatmul.mubr.f32.gmra.mrb[0].mxu0 %v2200
      %v2202 = vpop.f32.mrb[0].mxu0
      %v2203 = vadd.f32 0.0, %v2202
      %v2204 = vpop.f32.mrb[0].mxu0
      %2205 = vmatprep.mubr.f32.mxu0 0.0
      %v2206 = vand.u32 %v1911, 4294901760
      %v2207 = vsub.f32 %v1911, %v2206
      %v2208 = vand.u32 %v2207, 4294901760
      %v2209 = vsub.f32 %v2207, %v2208
      %v2210 = vand.u32 %v2209, 4294901760
      %2211 = vmatmul.mubr.f32.gmra.mrb[0].mxu0 %v2210
      %v2212 = vpop.f32.mrb[0].mxu0
      %v2213 = vadd.f32 0.0, %v2212
      %v2214 = vpop.f32.mrb[0].mxu0
      %2215 = vmatprep.mubr.f32.mxu0 0.0
      %v2216 = vand.u32 %v1914, 4294901760
      %v2217 = vsub.f32 %v1914, %v2216
      %v2218 = vand.u32 %v2217, 4294901760
      %v2219 = vsub.f32 %v2217, %v2218
      %v2220 = vand.u32 %v2219, 4294901760
      %2221 = vmatmul.mubr.f32.gmra.mrb[0].mxu0 %v2220
      %v2222 = vpop.f32.mrb[0].mxu0
      %v2223 = vadd.f32 0.0, %v2222
      %v2224 = vpop.f32.mrb[0].mxu0
      %2225 = vmatprep.mubr.f32.mxu0 0.0
      %v2226 = vand.u32 %v1917, 4294901760
      %v2227 = vsub.f32 %v1917, %v2226
      %v2228 = vand.u32 %v2227, 4294901760
      %v2229 = vsub.f32 %v2227, %v2228
      %v2230 = vand.u32 %v2229, 4294901760
      %2231 = vmatmul.mubr.f32.gmra.mrb[0].mxu0 %v2230
      %v2232 = vpop.f32.mrb[0].mxu0
      %v2233 = vadd.f32 0.0, %v2232
      %v2234 = vpop.f32.mrb[0].mxu0
      %2235 = vmatprep.mubr.f32.mxu0 0.0
      %v2236 = vand.u32 %v1920, 4294901760
      %v2237 = vsub.f32 %v1920, %v2236
      %v2238 = vand.u32 %v2237, 4294901760
      %v2239 = vsub.f32 %v2237, %v2238
      %v2240 = vand.u32 %v2239, 4294901760
      %2241 = vmatmul.mubr.f32.gmra.mrb[0].mxu0 %v2240
      %v2242 = vpop.f32.mrb[0].mxu0
      %v2243 = vadd.f32 0.0, %v2242
      %v2244 = vpop.f32.mrb[0].mxu0
      %2245 = vmatprep.mubr.f32.mxu0 0.0
      %v2246 = vand.u32 %v1923, 4294901760
      %v2247 = vsub.f32 %v1923, %v2246
      %v2248 = vand.u32 %v2247, 4294901760
      %v2249 = vsub.f32 %v2247, %v2248
      %v2250 = vand.u32 %v2249, 4294901760
      %2251 = vmatmul.mubr.f32.gmra.mrb[0].mxu0 %v2250
      %v2252 = vpop.f32.mrb[0].mxu0
      %v2253 = vadd.f32 0.0, %v2252
      %v2254 = vpop.f32.mrb[0].mxu0
      %2255 = vmatprep.mubr.f32.mxu0 0.0
      %v2256 = vand.u32 %v1926, 4294901760
      %v2257 = vsub.f32 %v1926, %v2256
      %v2258 = vand.u32 %v2257, 4294901760
      %v2259 = vsub.f32 %v2257, %v2258
      %v2260 = vand.u32 %v2259, 4294901760
      %2261 = vmatmul.mubr.f32.gmra.mrb[0].mxu0 %v2260
      %v2262 = vpop.f32.mrb[0].mxu0
      %v2263 = vadd.f32 0.0, %v2262
      %v2264 = vpop.f32.mrb[0].mxu0
      %2265 = vmatprep.mubr.f32.mxu0 0.0
      %v2266 = vand.u32 %v1929, 4294901760
      %v2267 = vsub.f32 %v1929, %v2266
      %v2268 = vand.u32 %v2267, 4294901760
      %v2269 = vsub.f32 %v2267, %v2268
      %v2270 = vand.u32 %v2269, 4294901760
      %2271 = vmatmul.mubr.f32.gmra.mrb[0].mxu0 %v2270
      %v2272 = vpop.f32.mrb[0].mxu0
      %v2273 = vadd.f32 0.0, %v2272
      %v2274 = vpop.f32.mrb[0].mxu0
      %2275 = vmatprep.mubr.f32.mxu0 0.0
      %v2276 = vand.u32 %v1932, 4294901760
      %v2277 = vsub.f32 %v1932, %v2276
      %v2278 = vand.u32 %v2277, 4294901760
      %v2279 = vsub.f32 %v2277, %v2278
      %v2280 = vand.u32 %v2279, 4294901760
      %2281 = vmatmul.mubr.f32.gmra.mrb[0].mxu0 %v2280
      %v2282 = vpop.f32.mrb[0].mxu0
      %v2283 = vadd.f32 0.0, %v2282
      %v2284 = vpop.f32.mrb[0].mxu0
      %2285 = vmatprep.mubr.f32.mxu0 0.0
      %v2286 = vand.u32 %v1935, 4294901760
      %v2287 = vsub.f32 %v1935, %v2286
      %v2288 = vand.u32 %v2287, 4294901760
      %v2289 = vsub.f32 %v2287, %v2288
      %v2290 = vand.u32 %v2289, 4294901760
      %2291 = vmatmul.mubr.f32.gmra.mrb[0].mxu0 %v2290
      %v2292 = vpop.f32.mrb[0].mxu0
      %v2293 = vadd.f32 0.0, %v2292
      %v2294 = vpop.f32.mrb[0].mxu0
      %2295 = vmatprep.mubr.f32.mxu0 0.0
      %v2296 = vand.u32 %v1938, 4294901760
      %v2297 = vsub.f32 %v1938, %v2296
      %v2298 = vand.u32 %v2297, 4294901760
      %v2299 = vsub.f32 %v2297, %v2298
      %v2300 = vand.u32 %v2299, 4294901760
      %2301 = vmatmul.mubr.f32.gmra.mrb[0].mxu0 %v2300
      %v2302 = vpop.f32.mrb[0].mxu0
      %v2303 = vadd.f32 0.0, %v2302
      %v2304 = vpop.f32.mrb[0].mxu0
      %2305 = vmatprep.mubr.f32.mxu0 0.0
      %v2306 = vand.u32 %v1941, 4294901760
      %v2307 = vsub.f32 %v1941, %v2306
      %v2308 = vand.u32 %v2307, 4294901760
      %v2309 = vsub.f32 %v2307, %v2308
      %v2310 = vand.u32 %v2309, 4294901760
      %2311 = vmatmul.mubr.f32.gmra.mrb[0].mxu0 %v2310
      %v2312 = vpop.f32.mrb[0].mxu0
      %v2313 = vadd.f32 0.0, %v2312
      %v2314 = vpop.f32.mrb[0].mxu0
      %2315 = vmatprep.mubr.f32.mxu0 0.0
      %v2316 = vand.u32 %v1944, 4294901760
      %v2317 = vsub.f32 %v1944, %v2316
      %v2318 = vand.u32 %v2317, 4294901760
      %v2319 = vsub.f32 %v2317, %v2318
      %v2320 = vand.u32 %v2319, 4294901760
      %2321 = vmatmul.mubr.f32.gmra.mrb[0].mxu0 %v2320
      %v2322 = vpop.f32.mrb[0].mxu0
      %v2323 = vadd.f32 0.0, %v2322
      %v2324 = vpop.f32.mrb[0].mxu0
      %2325 = vmatprep.mubr.f32.mxu0 0.0
      %v2326 = vand.u32 %v1947, 4294901760
      %v2327 = vsub.f32 %v1947, %v2326
      %v2328 = vand.u32 %v2327, 4294901760
      %v2329 = vsub.f32 %v2327, %v2328
      %v2330 = vand.u32 %v2329, 4294901760
      %2331 = vmatmul.mubr.f32.gmra.mrb[0].mxu0 %v2330
      %v2332 = vpop.f32.mrb[0].mxu0
      %v2333 = vadd.f32 0.0, %v2332
      %v2334 = vpop.f32.mrb[0].mxu0
      %2335 = vmatprep.mubr.f32.mxu0 0.0
      %v2336 = vand.u32 %v1950, 4294901760
      %v2337 = vsub.f32 %v1950, %v2336
      %v2338 = vand.u32 %v2337, 4294901760
      %v2339 = vsub.f32 %v2337, %v2338
      %v2340 = vand.u32 %v2339, 4294901760
      %2341 = vmatmul.mubr.f32.gmra.mrb[0].mxu0 %v2340
      %v2342 = vpop.f32.mrb[0].mxu0
      %v2343 = vadd.f32 0.0, %v2342
      %v2344 = vpop.f32.mrb[0].mxu0
      %2345 = vdwg.mxu0
      %2346 = vmatprep.subr.mxu0 0.0
      %v2347 = vand.u32 %v1850, 4294901760
      %v2348 = vsub.f32 %v1850, %v2347
      %v2349 = vand.u32 %v2348, 4294901760
      %v2350 = vsub.f32 %v2348, %v2349
      %v2351 = vand.u32 %v2350, 4294901760
      %2352 = vmatpush1.msra.mxu0 %v2351
      %2353 = vmatprep.subr.mxu0 0.0
      %v2354 = vand.u32 %v1851, 4294901760
      %v2355 = vsub.f32 %v1851, %v2354
      %v2356 = vand.u32 %v2355, 4294901760
      %v2357 = vsub.f32 %v2355, %v2356
      %v2358 = vand.u32 %v2357, 4294901760
      %2359 = vmatpush1.msra.mxu0 %v2358
      %2360 = vmatprep.subr.mxu0 0.0
      %v2361 = vand.u32 %v1852, 4294901760
      %v2362 = vsub.f32 %v1852, %v2361
      %v2363 = vand.u32 %v2362, 4294901760
      %v2364 = vsub.f32 %v2362, %v2363
      %v2365 = vand.u32 %v2364, 4294901760
      %2366 = vmatpush1.msra.mxu0 %v2365
      %2367 = vmatprep.subr.mxu0 0.0
      %v2368 = vand.u32 %v1853, 4294901760
      %v2369 = vsub.f32 %v1853, %v2368
      %v2370 = vand.u32 %v2369, 4294901760
      %v2371 = vsub.f32 %v2369, %v2370
      %v2372 = vand.u32 %v2371, 4294901760
      %2373 = vmatpush1.msra.mxu0 %v2372
      %2374 = vmatprep.subr.mxu0 0.0
      %v2375 = vand.u32 %v1954, 4294901760
      %v2376 = vsub.f32 %v1954, %v2375
      %v2377 = vand.u32 %v2376, 4294901760
      %v2378 = vsub.f32 %v2376, %v2377
      %v2379 = vand.u32 %v2378, 4294901760
      %2380 = vmatpush1.msra.mxu0 %v2379
      %2381 = vmatprep.subr.mxu0 0.0
      %2382 = vmatpush1.msra.mxu0 0.0
      %2383 = vmatprep.subr.mxu0 0.0
      %2384 = vmatpush1.msra.mxu0 0.0
      %2385 = vmatprep.subr.mxu0 0.0
      %2386 = vmatpush1.msra.mxu0 0.0
      %2387 = vmatprep.subr.mxu0 0.0
      %2388 = vmatpush1.msra.mxu0 0.0
      %2389 = vmatprep.subr.mxu0 0.0
      %2390 = vmatpush1.msra.mxu0 0.0
      %2391 = vmatprep.subr.mxu0 0.0
      %2392 = vmatpush1.msra.mxu0 0.0
      %2393 = vmatprep.subr.mxu0 0.0
      %2394 = vmatpush1.msra.mxu0 0.0
      %2395 = vmatprep.subr.mxu0 0.0
      %2396 = vmatpush1.msra.mxu0 0.0
      %2397 = vmatprep.subr.mxu0 0.0
      %2398 = vmatpush1.msra.mxu0 0.0
      %2399 = vmatprep.subr.mxu0 0.0
      %2400 = vmatpush1.msra.mxu0 0.0
      %2401 = vmatprep.subr.mxu0 0.0
      %2402 = vmatpush1.msra.mxu0 0.0
      %2403 = vmatprep.subr.mxu0 0.0
      %2404 = vmatpush1.msra.mxu0 0.0
      %2405 = vmatprep.subr.mxu0 0.0
      %2406 = vmatpush1.msra.mxu0 0.0
      %2407 = vmatprep.subr.mxu0 0.0
      %2408 = vmatpush1.msra.mxu0 0.0
      %2409 = vmatprep.subr.mxu0 0.0
      %2410 = vmatpush1.msra.mxu0 0.0
      %2411 = vmatprep.subr.mxu0 0.0
      %2412 = vmatpush1.msra.mxu0 0.0
      %2413 = vmatprep.subr.mxu0 0.0
      %2414 = vmatpush1.msra.mxu0 0.0
      %2415 = vmatprep.subr.mxu0 0.0
      %2416 = vmatpush1.msra.mxu0 0.0
      %2417 = vmatprep.subr.mxu0 0.0
      %2418 = vmatpush1.msra.mxu0 0.0
      %2419 = vmatprep.subr.mxu0 0.0
      %2420 = vmatpush1.msra.mxu0 0.0
      %2421 = vmatprep.subr.mxu0 0.0
      %2422 = vmatpush1.msra.mxu0 0.0
      %2423 = vmatprep.subr.mxu0 0.0
      %2424 = vmatpush1.msra.mxu0 0.0
      %2425 = vmatprep.subr.mxu0 0.0
      %2426 = vmatpush1.msra.mxu0 0.0
      %2427 = vmatprep.subr.mxu0 0.0
      %2428 = vmatpush1.msra.mxu0 0.0
      %2429 = vmatprep.subr.mxu0 0.0
      %2430 = vmatpush1.msra.mxu0 0.0
      %2431 = vmatprep.subr.mxu0 0.0
      %2432 = vmatpush1.msra.mxu0 0.0
      %2433 = vmatprep.subr.mxu0 0.0
      %2434 = vmatpush1.msra.mxu0 0.0
      %2435 = vmatprep.mubr.f32.mxu0 0.0
      %v2436 = vand.u32 %v1857, 4294901760
      %2437 = vmatmul.mubr.f32.gmra.mrb[0].mxu0 %v2436
      %v2438 = vpop.f32.mrb[0].mxu0
      %v2439 = vadd.f32 %v2033, %v2438
      %v2440 = vpop.f32.mrb[0].mxu0
      %2441 = vmatprep.mubr.f32.mxu0 0.0
      %v2442 = vand.u32 %v1860, 4294901760
      %2443 = vmatmul.mubr.f32.gmra.mrb[0].mxu0 %v2442
      %v2444 = vpop.f32.mrb[0].mxu0
      %v2445 = vadd.f32 %v2043, %v2444
      %v2446 = vpop.f32.mrb[0].mxu0
      %2447 = vmatprep.mubr.f32.mxu0 0.0
      %v2448 = vand.u32 %v1863, 4294901760
      %2449 = vmatmul.mubr.f32.gmra.mrb[0].mxu0 %v2448
      %v2450 = vpop.f32.mrb[0].mxu0
      %v2451 = vadd.f32 %v2053, %v2450
      %v2452 = vpop.f32.mrb[0].mxu0
      %2453 = vmatprep.mubr.f32.mxu0 0.0
      %v2454 = vand.u32 %v1866, 4294901760
      %2455 = vmatmul.mubr.f32.gmra.mrb[0].mxu0 %v2454
      %v2456 = vpop.f32.mrb[0].mxu0
      %v2457 = vadd.f32 %v2063, %v2456
      %v2458 = vpop.f32.mrb[0].mxu0
      %2459 = vmatprep.mubr.f32.mxu0 0.0
      %v2460 = vand.u32 %v1869, 4294901760
      %2461 = vmatmul.mubr.f32.gmra.mrb[0].mxu0 %v2460
      %v2462 = vpop.f32.mrb[0].mxu0
      %v2463 = vadd.f32 %v2073, %v2462
      %v2464 = vpop.f32.mrb[0].mxu0
      %2465 = vmatprep.mubr.f32.mxu0 0.0
      %v2466 = vand.u32 %v1872, 4294901760
      %2467 = vmatmul.mubr.f32.gmra.mrb[0].mxu0 %v2466
      %v2468 = vpop.f32.mrb[0].mxu0
      %v2469 = vadd.f32 %v2083, %v2468
      %v2470 = vpop.f32.mrb[0].mxu0
      %2471 = vmatprep.mubr.f32.mxu0 0.0
      %v2472 = vand.u32 %v1875, 4294901760
      %2473 = vmatmul.mubr.f32.gmra.mrb[0].mxu0 %v2472
      %v2474 = vpop.f32.mrb[0].mxu0
      %v2475 = vadd.f32 %v2093, %v2474
      %v2476 = vpop.f32.mrb[0].mxu0
      %2477 = vmatprep.mubr.f32.mxu0 0.0
      %v2478 = vand.u32 %v1878, 4294901760
      %2479 = vmatmul.mubr.f32.gmra.mrb[0].mxu0 %v2478
      %v2480 = vpop.f32.mrb[0].mxu0
      %v2481 = vadd.f32 %v2103, %v2480
      %v2482 = vpop.f32.mrb[0].mxu0
      %2483 = vmatprep.mubr.f32.mxu0 0.0
      %v2484 = vand.u32 %v1881, 4294901760
      %2485 = vmatmul.mubr.f32.gmra.mrb[0].mxu0 %v2484
      %v2486 = vpop.f32.mrb[0].mxu0
      %v2487 = vadd.f32 %v2113, %v2486
      %v2488 = vpop.f32.mrb[0].mxu0
      %2489 = vmatprep.mubr.f32.mxu0 0.0
      %v2490 = vand.u32 %v1884, 4294901760
      %2491 = vmatmul.mubr.f32.gmra.mrb[0].mxu0 %v2490
      %v2492 = vpop.f32.mrb[0].mxu0
      %v2493 = vadd.f32 %v2123, %v2492
      %v2494 = vpop.f32.mrb[0].mxu0
      %2495 = vmatprep.mubr.f32.mxu0 0.0
      %v2496 = vand.u32 %v1887, 4294901760
      %2497 = vmatmul.mubr.f32.gmra.mrb[0].mxu0 %v2496
      %v2498 = vpop.f32.mrb[0].mxu0
      %v2499 = vadd.f32 %v2133, %v2498
      %v2500 = vpop.f32.mrb[0].mxu0
      %2501 = vmatprep.mubr.f32.mxu0 0.0
      %v2502 = vand.u32 %v1890, 4294901760
      %2503 = vmatmul.mubr.f32.gmra.mrb[0].mxu0 %v2502
      %v2504 = vpop.f32.mrb[0].mxu0
      %v2505 = vadd.f32 %v2143, %v2504
      %v2506 = vpop.f32.mrb[0].mxu0
      %2507 = vmatprep.mubr.f32.mxu0 0.0
      %v2508 = vand.u32 %v1893, 4294901760
      %2509 = vmatmul.mubr.f32.gmra.mrb[0].mxu0 %v2508
      %v2510 = vpop.f32.mrb[0].mxu0
      %v2511 = vadd.f32 %v2153, %v2510
      %v2512 = vpop.f32.mrb[0].mxu0
      %2513 = vmatprep.mubr.f32.mxu0 0.0
      %v2514 = vand.u32 %v1896, 4294901760
      %2515 = vmatmul.mubr.f32.gmra.mrb[0].mxu0 %v2514
      %v2516 = vpop.f32.mrb[0].mxu0
      %v2517 = vadd.f32 %v2163, %v2516
      %v2518 = vpop.f32.mrb[0].mxu0
      %2519 = vmatprep.mubr.f32.mxu0 0.0
      %v2520 = vand.u32 %v1899, 4294901760
      %2521 = vmatmul.mubr.f32.gmra.mrb[0].mxu0 %v2520
      %v2522 = vpop.f32.mrb[0].mxu0
      %v2523 = vadd.f32 %v2173, %v2522
      %v2524 = vpop.f32.mrb[0].mxu0
      %2525 = vmatprep.mubr.f32.mxu0 0.0
      %v2526 = vand.u32 %v1902, 4294901760
      %2527 = vmatmul.mubr.f32.gmra.mrb[0].mxu0 %v2526
      %v2528 = vpop.f32.mrb[0].mxu0
      %v2529 = vadd.f32 %v2183, %v2528
      %v2530 = vpop.f32.mrb[0].mxu0
      %2531 = vmatprep.mubr.f32.mxu0 0.0
      %v2532 = vand.u32 %v1905, 4294901760
      %2533 = vmatmul.mubr.f32.gmra.mrb[0].mxu0 %v2532
      %v2534 = vpop.f32.mrb[0].mxu0
      %v2535 = vadd.f32 %v2193, %v2534
      %v2536 = vpop.f32.mrb[0].mxu0
      %2537 = vmatprep.mubr.f32.mxu0 0.0
      %v2538 = vand.u32 %v1908, 4294901760
      %2539 = vmatmul.mubr.f32.gmra.mrb[0].mxu0 %v2538
      %v2540 = vpop.f32.mrb[0].mxu0
      %v2541 = vadd.f32 %v2203, %v2540
      %v2542 = vpop.f32.mrb[0].mxu0
      %2543 = vmatprep.mubr.f32.mxu0 0.0
      %v2544 = vand.u32 %v1911, 4294901760
      %2545 = vmatmul.mubr.f32.gmra.mrb[0].mxu0 %v2544
      %v2546 = vpop.f32.mrb[0].mxu0
      %v2547 = vadd.f32 %v2213, %v2546
      %v2548 = vpop.f32.mrb[0].mxu0
      %2549 = vmatprep.mubr.f32.mxu0 0.0
      %v2550 = vand.u32 %v1914, 4294901760
      %2551 = vmatmul.mubr.f32.gmra.mrb[0].mxu0 %v2550
      %v2552 = vpop.f32.mrb[0].mxu0
      %v2553 = vadd.f32 %v2223, %v2552
      %v2554 = vpop.f32.mrb[0].mxu0
      %2555 = vmatprep.mubr.f32.mxu0 0.0
      %v2556 = vand.u32 %v1917, 4294901760
      %2557 = vmatmul.mubr.f32.gmra.mrb[0].mxu0 %v2556
      %v2558 = vpop.f32.mrb[0].mxu0
      %v2559 = vadd.f32 %v2233, %v2558
      %v2560 = vpop.f32.mrb[0].mxu0
      %2561 = vmatprep.mubr.f32.mxu0 0.0
      %v2562 = vand.u32 %v1920, 4294901760
      %2563 = vmatmul.mubr.f32.gmra.mrb[0].mxu0 %v2562
      %v2564 = vpop.f32.mrb[0].mxu0
      %v2565 = vadd.f32 %v2243, %v2564
      %v2566 = vpop.f32.mrb[0].mxu0
      %2567 = vmatprep.mubr.f32.mxu0 0.0
      %v2568 = vand.u32 %v1923, 4294901760
      %2569 = vmatmul.mubr.f32.gmra.mrb[0].mxu0 %v2568
      %v2570 = vpop.f32.mrb[0].mxu0
      %v2571 = vadd.f32 %v2253, %v2570
      %v2572 = vpop.f32.mrb[0].mxu0
      %2573 = vmatprep.mubr.f32.mxu0 0.0
      %v2574 = vand.u32 %v1926, 4294901760
      %2575 = vmatmul.mubr.f32.gmra.mrb[0].mxu0 %v2574
      %v2576 = vpop.f32.mrb[0].mxu0
      %v2577 = vadd.f32 %v2263, %v2576
      %v2578 = vpop.f32.mrb[0].mxu0
      %2579 = vmatprep.mubr.f32.mxu0 0.0
      %v2580 = vand.u32 %v1929, 4294901760
      %2581 = vmatmul.mubr.f32.gmra.mrb[0].mxu0 %v2580
      %v2582 = vpop.f32.mrb[0].mxu0
      %v2583 = vadd.f32 %v2273, %v2582
      %v2584 = vpop.f32.mrb[0].mxu0
      %2585 = vmatprep.mubr.f32.mxu0 0.0
      %v2586 = vand.u32 %v1932, 4294901760
      %2587 = vmatmul.mubr.f32.gmra.mrb[0].mxu0 %v2586
      %v2588 = vpop.f32.mrb[0].mxu0
      %v2589 = vadd.f32 %v2283, %v2588
      %v2590 = vpop.f32.mrb[0].mxu0
      %2591 = vmatprep.mubr.f32.mxu0 0.0
      %v2592 = vand.u32 %v1935, 4294901760
      %2593 = vmatmul.mubr.f32.gmra.mrb[0].mxu0 %v2592
      %v2594 = vpop.f32.mrb[0].mxu0
      %v2595 = vadd.f32 %v2293, %v2594
      %v2596 = vpop.f32.mrb[0].mxu0
      %2597 = vmatprep.mubr.f32.mxu0 0.0
      %v2598 = vand.u32 %v1938, 4294901760
      %2599 = vmatmul.mubr.f32.gmra.mrb[0].mxu0 %v2598
      %v2600 = vpop.f32.mrb[0].mxu0
      %v2601 = vadd.f32 %v2303, %v2600
      %v2602 = vpop.f32.mrb[0].mxu0
      %2603 = vmatprep.mubr.f32.mxu0 0.0
      %v2604 = vand.u32 %v1941, 4294901760
      %2605 = vmatmul.mubr.f32.gmra.mrb[0].mxu0 %v2604
      %v2606 = vpop.f32.mrb[0].mxu0
      %v2607 = vadd.f32 %v2313, %v2606
      %v2608 = vpop.f32.mrb[0].mxu0
      %2609 = vmatprep.mubr.f32.mxu0 0.0
      %v2610 = vand.u32 %v1944, 4294901760
      %2611 = vmatmul.mubr.f32.gmra.mrb[0].mxu0 %v2610
      %v2612 = vpop.f32.mrb[0].mxu0
      %v2613 = vadd.f32 %v2323, %v2612
      %v2614 = vpop.f32.mrb[0].mxu0
      %2615 = vmatprep.mubr.f32.mxu0 0.0
      %v2616 = vand.u32 %v1947, 4294901760
      %2617 = vmatmul.mubr.f32.gmra.mrb[0].mxu0 %v2616
      %v2618 = vpop.f32.mrb[0].mxu0
      %v2619 = vadd.f32 %v2333, %v2618
      %v2620 = vpop.f32.mrb[0].mxu0
      %2621 = vmatprep.mubr.f32.mxu0 0.0
      %v2622 = vand.u32 %v1950, 4294901760
      %2623 = vmatmul.mubr.f32.gmra.mrb[0].mxu0 %v2622
      %v2624 = vpop.f32.mrb[0].mxu0
      %v2625 = vadd.f32 %v2343, %v2624
      %v2626 = vpop.f32.mrb[0].mxu0
      %2627 = vdwg.mxu0
      %2628 = vmatprep.subr.mxu0 0.0
      %v2629 = vand.u32 %v1850, 4294901760
      %v2630 = vsub.f32 %v1850, %v2629
      %2631 = vmatpush1.msra.mxu0 %v2630
      %2632 = vmatprep.subr.mxu0 0.0
      %v2633 = vand.u32 %v1851, 4294901760
      %v2634 = vsub.f32 %v1851, %v2633
      %2635 = vmatpush1.msra.mxu0 %v2634
      %2636 = vmatprep.subr.mxu0 0.0
      %v2637 = vand.u32 %v1852, 4294901760
      %v2638 = vsub.f32 %v1852, %v2637
      %2639 = vmatpush1.msra.mxu0 %v2638
      %2640 = vmatprep.subr.mxu0 0.0
      %v2641 = vand.u32 %v1853, 4294901760
      %v2642 = vsub.f32 %v1853, %v2641
      %2643 = vmatpush1.msra.mxu0 %v2642
      %2644 = vmatprep.subr.mxu0 0.0
      %v2645 = vand.u32 %v1954, 4294901760
      %v2646 = vsub.f32 %v1954, %v2645
      %2647 = vmatpush1.msra.mxu0 %v2646
      %2648 = vmatprep.subr.mxu0 0.0
      %2649 = vmatpush1.msra.mxu0 0.0
      %2650 = vmatprep.subr.mxu0 0.0
      %2651 = vmatpush1.msra.mxu0 0.0
      %2652 = vmatprep.subr.mxu0 0.0
      %2653 = vmatpush1.msra.mxu0 0.0
      %2654 = vmatprep.subr.mxu0 0.0
      %2655 = vmatpush1.msra.mxu0 0.0
      %2656 = vmatprep.subr.mxu0 0.0
      %2657 = vmatpush1.msra.mxu0 0.0
      %2658 = vmatprep.subr.mxu0 0.0
      %2659 = vmatpush1.msra.mxu0 0.0
      %2660 = vmatprep.subr.mxu0 0.0
      %2661 = vmatpush1.msra.mxu0 0.0
      %2662 = vmatprep.subr.mxu0 0.0
      %2663 = vmatpush1.msra.mxu0 0.0
      %2664 = vmatprep.subr.mxu0 0.0
      %2665 = vmatpush1.msra.mxu0 0.0
      %2666 = vmatprep.subr.mxu0 0.0
      %2667 = vmatpush1.msra.mxu0 0.0
      %2668 = vmatprep.subr.mxu0 0.0
      %2669 = vmatpush1.msra.mxu0 0.0
      %2670 = vmatprep.subr.mxu0 0.0
      %2671 = vmatpush1.msra.mxu0 0.0
      %2672 = vmatprep.subr.mxu0 0.0
      %2673 = vmatpush1.msra.mxu0 0.0
      %2674 = vmatprep.subr.mxu0 0.0
      %2675 = vmatpush1.msra.mxu0 0.0
      %2676 = vmatprep.subr.mxu0 0.0
      %2677 = vmatpush1.msra.mxu0 0.0
      %2678 = vmatprep.subr.mxu0 0.0
      %2679 = vmatpush1.msra.mxu0 0.0
      %2680 = vmatprep.subr.mxu0 0.0
      %2681 = vmatpush1.msra.mxu0 0.0
      %2682 = vmatprep.subr.mxu0 0.0
      %2683 = vmatpush1.msra.mxu0 0.0
      %2684 = vmatprep.subr.mxu0 0.0
      %2685 = vmatpush1.msra.mxu0 0.0
      %2686 = vmatprep.subr.mxu0 0.0
      %2687 = vmatpush1.msra.mxu0 0.0
      %2688 = vmatprep.subr.mxu0 0.0
      %2689 = vmatpush1.msra.mxu0 0.0
      %2690 = vmatprep.subr.mxu0 0.0
      %2691 = vmatpush1.msra.mxu0 0.0
      %2692 = vmatprep.subr.mxu0 0.0
      %2693 = vmatpush1.msra.mxu0 0.0
      %2694 = vmatprep.subr.mxu0 0.0
      %2695 = vmatpush1.msra.mxu0 0.0
      %2696 = vmatprep.subr.mxu0 0.0
      %2697 = vmatpush1.msra.mxu0 0.0
      %2698 = vmatprep.subr.mxu0 0.0
      %2699 = vmatpush1.msra.mxu0 0.0
      %2700 = vmatprep.subr.mxu0 0.0
      %2701 = vmatpush1.msra.mxu0 0.0
      %2702 = vmatprep.mubr.f32.mxu0 0.0
      %v2703 = vand.u32 %v1857, 4294901760
      %v2704 = vsub.f32 %v1857, %v2703
      %2705 = vmatmul.mubr.f32.gmra.mrb[0].mxu0 %v2704
      %v2706 = vpop.f32.mrb[0].mxu0
      %v2707 = vadd.f32 %v2439, %v2706
      %v2708 = vpop.f32.mrb[0].mxu0
      %2709 = vmatprep.mubr.f32.mxu0 0.0
      %v2710 = vand.u32 %v1860, 4294901760
      %v2711 = vsub.f32 %v1860, %v2710
      %2712 = vmatmul.mubr.f32.gmra.mrb[0].mxu0 %v2711
      %v2713 = vpop.f32.mrb[0].mxu0
      %v2714 = vadd.f32 %v2445, %v2713
      %v2715 = vpop.f32.mrb[0].mxu0
      %2716 = vmatprep.mubr.f32.mxu0 0.0
      %v2717 = vand.u32 %v1863, 4294901760
      %v2718 = vsub.f32 %v1863, %v2717
      %2719 = vmatmul.mubr.f32.gmra.mrb[0].mxu0 %v2718
      %v2720 = vpop.f32.mrb[0].mxu0
      %v2721 = vadd.f32 %v2451, %v2720
      %v2722 = vpop.f32.mrb[0].mxu0
      %2723 = vmatprep.mubr.f32.mxu0 0.0
      %v2724 = vand.u32 %v1866, 4294901760
      %v2725 = vsub.f32 %v1866, %v2724
      %2726 = vmatmul.mubr.f32.gmra.mrb[0].mxu0 %v2725
      %v2727 = vpop.f32.mrb[0].mxu0
      %v2728 = vadd.f32 %v2457, %v2727
      %v2729 = vpop.f32.mrb[0].mxu0
      %2730 = vmatprep.mubr.f32.mxu0 0.0
      %v2731 = vand.u32 %v1869, 4294901760
      %v2732 = vsub.f32 %v1869, %v2731
      %2733 = vmatmul.mubr.f32.gmra.mrb[0].mxu0 %v2732
      %v2734 = vpop.f32.mrb[0].mxu0
      %v2735 = vadd.f32 %v2463, %v2734
      %v2736 = vpop.f32.mrb[0].mxu0
      %2737 = vmatprep.mubr.f32.mxu0 0.0
      %v2738 = vand.u32 %v1872, 4294901760
      %v2739 = vsub.f32 %v1872, %v2738
      %2740 = vmatmul.mubr.f32.gmra.mrb[0].mxu0 %v2739
      %v2741 = vpop.f32.mrb[0].mxu0
      %v2742 = vadd.f32 %v2469, %v2741
      %v2743 = vpop.f32.mrb[0].mxu0
      %2744 = vmatprep.mubr.f32.mxu0 0.0
      %v2745 = vand.u32 %v1875, 4294901760
      %v2746 = vsub.f32 %v1875, %v2745
      %2747 = vmatmul.mubr.f32.gmra.mrb[0].mxu0 %v2746
      %v2748 = vpop.f32.mrb[0].mxu0
      %v2749 = vadd.f32 %v2475, %v2748
      %v2750 = vpop.f32.mrb[0].mxu0
      %2751 = vmatprep.mubr.f32.mxu0 0.0
      %v2752 = vand.u32 %v1878, 4294901760
      %v2753 = vsub.f32 %v1878, %v2752
      %2754 = vmatmul.mubr.f32.gmra.mrb[0].mxu0 %v2753
      %v2755 = vpop.f32.mrb[0].mxu0
      %v2756 = vadd.f32 %v2481, %v2755
      %v2757 = vpop.f32.mrb[0].mxu0
      %2758 = vmatprep.mubr.f32.mxu0 0.0
      %v2759 = vand.u32 %v1881, 4294901760
      %v2760 = vsub.f32 %v1881, %v2759
      %2761 = vmatmul.mubr.f32.gmra.mrb[0].mxu0 %v2760
      %v2762 = vpop.f32.mrb[0].mxu0
      %v2763 = vadd.f32 %v2487, %v2762
      %v2764 = vpop.f32.mrb[0].mxu0
      %2765 = vmatprep.mubr.f32.mxu0 0.0
      %v2766 = vand.u32 %v1884, 4294901760
      %v2767 = vsub.f32 %v1884, %v2766
      %2768 = vmatmul.mubr.f32.gmra.mrb[0].mxu0 %v2767
      %v2769 = vpop.f32.mrb[0].mxu0
      %v2770 = vadd.f32 %v2493, %v2769
      %v2771 = vpop.f32.mrb[0].mxu0
      %2772 = vmatprep.mubr.f32.mxu0 0.0
      %v2773 = vand.u32 %v1887, 4294901760
      %v2774 = vsub.f32 %v1887, %v2773
      %2775 = vmatmul.mubr.f32.gmra.mrb[0].mxu0 %v2774
      %v2776 = vpop.f32.mrb[0].mxu0
      %v2777 = vadd.f32 %v2499, %v2776
      %v2778 = vpop.f32.mrb[0].mxu0
      %2779 = vmatprep.mubr.f32.mxu0 0.0
      %v2780 = vand.u32 %v1890, 4294901760
      %v2781 = vsub.f32 %v1890, %v2780
      %2782 = vmatmul.mubr.f32.gmra.mrb[0].mxu0 %v2781
      %v2783 = vpop.f32.mrb[0].mxu0
      %v2784 = vadd.f32 %v2505, %v2783
      %v2785 = vpop.f32.mrb[0].mxu0
      %2786 = vmatprep.mubr.f32.mxu0 0.0
      %v2787 = vand.u32 %v1893, 4294901760
      %v2788 = vsub.f32 %v1893, %v2787
      %2789 = vmatmul.mubr.f32.gmra.mrb[0].mxu0 %v2788
      %v2790 = vpop.f32.mrb[0].mxu0
      %v2791 = vadd.f32 %v2511, %v2790
      %v2792 = vpop.f32.mrb[0].mxu0
      %2793 = vmatprep.mubr.f32.mxu0 0.0
      %v2794 = vand.u32 %v1896, 4294901760
      %v2795 = vsub.f32 %v1896, %v2794
      %2796 = vmatmul.mubr.f32.gmra.mrb[0].mxu0 %v2795
      %v2797 = vpop.f32.mrb[0].mxu0
      %v2798 = vadd.f32 %v2517, %v2797
      %v2799 = vpop.f32.mrb[0].mxu0
      %2800 = vmatprep.mubr.f32.mxu0 0.0
      %v2801 = vand.u32 %v1899, 4294901760
      %v2802 = vsub.f32 %v1899, %v2801
      %2803 = vmatmul.mubr.f32.gmra.mrb[0].mxu0 %v2802
      %v2804 = vpop.f32.mrb[0].mxu0
      %v2805 = vadd.f32 %v2523, %v2804
      %v2806 = vpop.f32.mrb[0].mxu0
      %2807 = vmatprep.mubr.f32.mxu0 0.0
      %v2808 = vand.u32 %v1902, 4294901760
      %v2809 = vsub.f32 %v1902, %v2808
      %2810 = vmatmul.mubr.f32.gmra.mrb[0].mxu0 %v2809
      %v2811 = vpop.f32.mrb[0].mxu0
      %v2812 = vadd.f32 %v2529, %v2811
      %v2813 = vpop.f32.mrb[0].mxu0
      %2814 = vmatprep.mubr.f32.mxu0 0.0
      %v2815 = vand.u32 %v1905, 4294901760
      %v2816 = vsub.f32 %v1905, %v2815
      %2817 = vmatmul.mubr.f32.gmra.mrb[0].mxu0 %v2816
      %v2818 = vpop.f32.mrb[0].mxu0
      %v2819 = vadd.f32 %v2535, %v2818
      %v2820 = vpop.f32.mrb[0].mxu0
      %2821 = vmatprep.mubr.f32.mxu0 0.0
      %v2822 = vand.u32 %v1908, 4294901760
      %v2823 = vsub.f32 %v1908, %v2822
      %2824 = vmatmul.mubr.f32.gmra.mrb[0].mxu0 %v2823
      %v2825 = vpop.f32.mrb[0].mxu0
      %v2826 = vadd.f32 %v2541, %v2825
      %v2827 = vpop.f32.mrb[0].mxu0
      %2828 = vmatprep.mubr.f32.mxu0 0.0
      %v2829 = vand.u32 %v1911, 4294901760
      %v2830 = vsub.f32 %v1911, %v2829
      %2831 = vmatmul.mubr.f32.gmra.mrb[0].mxu0 %v2830
      %v2832 = vpop.f32.mrb[0].mxu0
      %v2833 = vadd.f32 %v2547, %v2832
      %v2834 = vpop.f32.mrb[0].mxu0
      %2835 = vmatprep.mubr.f32.mxu0 0.0
      %v2836 = vand.u32 %v1914, 4294901760
      %v2837 = vsub.f32 %v1914, %v2836
      %2838 = vmatmul.mubr.f32.gmra.mrb[0].mxu0 %v2837
      %v2839 = vpop.f32.mrb[0].mxu0
      %v2840 = vadd.f32 %v2553, %v2839
      %v2841 = vpop.f32.mrb[0].mxu0
      %2842 = vmatprep.mubr.f32.mxu0 0.0
      %v2843 = vand.u32 %v1917, 4294901760
      %v2844 = vsub.f32 %v1917, %v2843
      %2845 = vmatmul.mubr.f32.gmra.mrb[0].mxu0 %v2844
      %v2846 = vpop.f32.mrb[0].mxu0
      %v2847 = vadd.f32 %v2559, %v2846
      %v2848 = vpop.f32.mrb[0].mxu0
      %2849 = vmatprep.mubr.f32.mxu0 0.0
      %v2850 = vand.u32 %v1920, 4294901760
      %v2851 = vsub.f32 %v1920, %v2850
      %2852 = vmatmul.mubr.f32.gmra.mrb[0].mxu0 %v2851
      %v2853 = vpop.f32.mrb[0].mxu0
      %v2854 = vadd.f32 %v2565, %v2853
      %v2855 = vpop.f32.mrb[0].mxu0
      %2856 = vmatprep.mubr.f32.mxu0 0.0
      %v2857 = vand.u32 %v1923, 4294901760
      %v2858 = vsub.f32 %v1923, %v2857
      %2859 = vmatmul.mubr.f32.gmra.mrb[0].mxu0 %v2858
      %v2860 = vpop.f32.mrb[0].mxu0
      %v2861 = vadd.f32 %v2571, %v2860
      %v2862 = vpop.f32.mrb[0].mxu0
      %2863 = vmatprep.mubr.f32.mxu0 0.0
      %v2864 = vand.u32 %v1926, 4294901760
      %v2865 = vsub.f32 %v1926, %v2864
      %2866 = vmatmul.mubr.f32.gmra.mrb[0].mxu0 %v2865
      %v2867 = vpop.f32.mrb[0].mxu0
      %v2868 = vadd.f32 %v2577, %v2867
      %v2869 = vpop.f32.mrb[0].mxu0
      %2870 = vmatprep.mubr.f32.mxu0 0.0
      %v2871 = vand.u32 %v1929, 4294901760
      %v2872 = vsub.f32 %v1929, %v2871
      %2873 = vmatmul.mubr.f32.gmra.mrb[0].mxu0 %v2872
      %v2874 = vpop.f32.mrb[0].mxu0
      %v2875 = vadd.f32 %v2583, %v2874
      %v2876 = vpop.f32.mrb[0].mxu0
      %2877 = vmatprep.mubr.f32.mxu0 0.0
      %v2878 = vand.u32 %v1932, 4294901760
      %v2879 = vsub.f32 %v1932, %v2878
      %2880 = vmatmul.mubr.f32.gmra.mrb[0].mxu0 %v2879
      %v2881 = vpop.f32.mrb[0].mxu0
      %v2882 = vadd.f32 %v2589, %v2881
      %v2883 = vpop.f32.mrb[0].mxu0
      %2884 = vmatprep.mubr.f32.mxu0 0.0
      %v2885 = vand.u32 %v1935, 4294901760
      %v2886 = vsub.f32 %v1935, %v2885
      %2887 = vmatmul.mubr.f32.gmra.mrb[0].mxu0 %v2886
      %v2888 = vpop.f32.mrb[0].mxu0
      %v2889 = vadd.f32 %v2595, %v2888
      %v2890 = vpop.f32.mrb[0].mxu0
      %2891 = vmatprep.mubr.f32.mxu0 0.0
      %v2892 = vand.u32 %v1938, 4294901760
      %v2893 = vsub.f32 %v1938, %v2892
      %2894 = vmatmul.mubr.f32.gmra.mrb[0].mxu0 %v2893
      %v2895 = vpop.f32.mrb[0].mxu0
      %v2896 = vadd.f32 %v2601, %v2895
      %v2897 = vpop.f32.mrb[0].mxu0
      %2898 = vmatprep.mubr.f32.mxu0 0.0
      %v2899 = vand.u32 %v1941, 4294901760
      %v2900 = vsub.f32 %v1941, %v2899
      %2901 = vmatmul.mubr.f32.gmra.mrb[0].mxu0 %v2900
      %v2902 = vpop.f32.mrb[0].mxu0
      %v2903 = vadd.f32 %v2607, %v2902
      %v2904 = vpop.f32.mrb[0].mxu0
      %2905 = vmatprep.mubr.f32.mxu0 0.0
      %v2906 = vand.u32 %v1944, 4294901760
      %v2907 = vsub.f32 %v1944, %v2906
      %2908 = vmatmul.mubr.f32.gmra.mrb[0].mxu0 %v2907
      %v2909 = vpop.f32.mrb[0].mxu0
      %v2910 = vadd.f32 %v2613, %v2909
      %v2911 = vpop.f32.mrb[0].mxu0
      %2912 = vmatprep.mubr.f32.mxu0 0.0
      %v2913 = vand.u32 %v1947, 4294901760
      %v2914 = vsub.f32 %v1947, %v2913
      %2915 = vmatmul.mubr.f32.gmra.mrb[0].mxu0 %v2914
      %v2916 = vpop.f32.mrb[0].mxu0
      %v2917 = vadd.f32 %v2619, %v2916
      %v2918 = vpop.f32.mrb[0].mxu0
      %2919 = vmatprep.mubr.f32.mxu0 0.0
      %v2920 = vand.u32 %v1950, 4294901760
      %v2921 = vsub.f32 %v1950, %v2920
      %2922 = vmatmul.mubr.f32.gmra.mrb[0].mxu0 %v2921
      %v2923 = vpop.f32.mrb[0].mxu0
      %v2924 = vadd.f32 %v2625, %v2923
      %v2925 = vpop.f32.mrb[0].mxu0
      %2926 = vdwg.mxu0
      %2927 = vmatprep.subr.mxu0 0.0
      %v2928 = vand.u32 %v1850, 4294901760
      %2929 = vmatpush1.msra.mxu0 %v2928
      %2930 = vmatprep.subr.mxu0 0.0
      %v2931 = vand.u32 %v1851, 4294901760
      %2932 = vmatpush1.msra.mxu0 %v2931
      %2933 = vmatprep.subr.mxu0 0.0
      %v2934 = vand.u32 %v1852, 4294901760
      %2935 = vmatpush1.msra.mxu0 %v2934
      %2936 = vmatprep.subr.mxu0 0.0
      %v2937 = vand.u32 %v1853, 4294901760
      %2938 = vmatpush1.msra.mxu0 %v2937
      %2939 = vmatprep.subr.mxu0 0.0
      %v2940 = vand.u32 %v1954, 4294901760
      %2941 = vmatpush1.msra.mxu0 %v2940
      %2942 = vmatprep.subr.mxu0 0.0
      %2943 = vmatpush1.msra.mxu0 0.0
      %2944 = vmatprep.subr.mxu0 0.0
      %2945 = vmatpush1.msra.mxu0 0.0
      %2946 = vmatprep.subr.mxu0 0.0
      %2947 = vmatpush1.msra.mxu0 0.0
      %2948 = vmatprep.subr.mxu0 0.0
      %2949 = vmatpush1.msra.mxu0 0.0
      %2950 = vmatprep.subr.mxu0 0.0
      %2951 = vmatpush1.msra.mxu0 0.0
      %2952 = vmatprep.subr.mxu0 0.0
      %2953 = vmatpush1.msra.mxu0 0.0
      %2954 = vmatprep.subr.mxu0 0.0
      %2955 = vmatpush1.msra.mxu0 0.0
      %2956 = vmatprep.subr.mxu0 0.0
      %2957 = vmatpush1.msra.mxu0 0.0
      %2958 = vmatprep.subr.mxu0 0.0
      %2959 = vmatpush1.msra.mxu0 0.0
      %2960 = vmatprep.subr.mxu0 0.0
      %2961 = vmatpush1.msra.mxu0 0.0
      %2962 = vmatprep.subr.mxu0 0.0
      %2963 = vmatpush1.msra.mxu0 0.0
      %2964 = vmatprep.subr.mxu0 0.0
      %2965 = vmatpush1.msra.mxu0 0.0
      %2966 = vmatprep.subr.mxu0 0.0
      %2967 = vmatpush1.msra.mxu0 0.0
      %2968 = vmatprep.subr.mxu0 0.0
      %2969 = vmatpush1.msra.mxu0 0.0
      %2970 = vmatprep.subr.mxu0 0.0
      %2971 = vmatpush1.msra.mxu0 0.0
      %2972 = vmatprep.subr.mxu0 0.0
      %2973 = vmatpush1.msra.mxu0 0.0
      %2974 = vmatprep.subr.mxu0 0.0
      %2975 = vmatpush1.msra.mxu0 0.0
      %2976 = vmatprep.subr.mxu0 0.0
      %2977 = vmatpush1.msra.mxu0 0.0
      %2978 = vmatprep.subr.mxu0 0.0
      %2979 = vmatpush1.msra.mxu0 0.0
      %2980 = vmatprep.subr.mxu0 0.0
      %2981 = vmatpush1.msra.mxu0 0.0
      %2982 = vmatprep.subr.mxu0 0.0
      %2983 = vmatpush1.msra.mxu0 0.0
      %2984 = vmatprep.subr.mxu0 0.0
      %2985 = vmatpush1.msra.mxu0 0.0
      %2986 = vmatprep.subr.mxu0 0.0
      %2987 = vmatpush1.msra.mxu0 0.0
      %2988 = vmatprep.subr.mxu0 0.0
      %2989 = vmatpush1.msra.mxu0 0.0
      %2990 = vmatprep.subr.mxu0 0.0
      %2991 = vmatpush1.msra.mxu0 0.0
      %2992 = vmatprep.subr.mxu0 0.0
      %2993 = vmatpush1.msra.mxu0 0.0
      %2994 = vmatprep.subr.mxu0 0.0
      %2995 = vmatpush1.msra.mxu0 0.0
      %2996 = vmatprep.mubr.f32.mxu0 0.0
      %v2997 = vand.u32 %v1857, 4294901760
      %v2998 = vsub.f32 %v1857, %v2997
      %v2999 = vand.u32 %v2998, 4294901760
      %3000 = vmatmul.mubr.f32.gmra.mrb[0].mxu0 %v2999
      %v3001 = vpop.f32.mrb[0].mxu0
      %v3002 = vadd.f32 %v2707, %v3001
      %v3003 = vpop.f32.mrb[0].mxu0
      %3004 = vmatprep.mubr.f32.mxu0 0.0
      %v3005 = vand.u32 %v1860, 4294901760
      %v3006 = vsub.f32 %v1860, %v3005
      %v3007 = vand.u32 %v3006, 4294901760
      %3008 = vmatmul.mubr.f32.gmra.mrb[0].mxu0 %v3007
      %v3009 = vpop.f32.mrb[0].mxu0
      %v3010 = vadd.f32 %v2714, %v3009
      %v3011 = vpop.f32.mrb[0].mxu0
      %3012 = vmatprep.mubr.f32.mxu0 0.0
      %v3013 = vand.u32 %v1863, 4294901760
      %v3014 = vsub.f32 %v1863, %v3013
      %v3015 = vand.u32 %v3014, 4294901760
      %3016 = vmatmul.mubr.f32.gmra.mrb[0].mxu0 %v3015
      %v3017 = vpop.f32.mrb[0].mxu0
      %v3018 = vadd.f32 %v2721, %v3017
      %v3019 = vpop.f32.mrb[0].mxu0
      %3020 = vmatprep.mubr.f32.mxu0 0.0
      %v3021 = vand.u32 %v1866, 4294901760
      %v3022 = vsub.f32 %v1866, %v3021
      %v3023 = vand.u32 %v3022, 4294901760
      %3024 = vmatmul.mubr.f32.gmra.mrb[0].mxu0 %v3023
      %v3025 = vpop.f32.mrb[0].mxu0
      %v3026 = vadd.f32 %v2728, %v3025
      %v3027 = vpop.f32.mrb[0].mxu0
      %3028 = vmatprep.mubr.f32.mxu0 0.0
      %v3029 = vand.u32 %v1869, 4294901760
      %v3030 = vsub.f32 %v1869, %v3029
      %v3031 = vand.u32 %v3030, 4294901760
      %3032 = vmatmul.mubr.f32.gmra.mrb[0].mxu0 %v3031
      %v3033 = vpop.f32.mrb[0].mxu0
      %v3034 = vadd.f32 %v2735, %v3033
      %v3035 = vpop.f32.mrb[0].mxu0
      %3036 = vmatprep.mubr.f32.mxu0 0.0
      %v3037 = vand.u32 %v1872, 4294901760
      %v3038 = vsub.f32 %v1872, %v3037
      %v3039 = vand.u32 %v3038, 4294901760
      %3040 = vmatmul.mubr.f32.gmra.mrb[0].mxu0 %v3039
      %v3041 = vpop.f32.mrb[0].mxu0
      %v3042 = vadd.f32 %v2742, %v3041
      %v3043 = vpop.f32.mrb[0].mxu0
      %3044 = vmatprep.mubr.f32.mxu0 0.0
      %v3045 = vand.u32 %v1875, 4294901760
      %v3046 = vsub.f32 %v1875, %v3045
      %v3047 = vand.u32 %v3046, 4294901760
      %3048 = vmatmul.mubr.f32.gmra.mrb[0].mxu0 %v3047
      %v3049 = vpop.f32.mrb[0].mxu0
      %v3050 = vadd.f32 %v2749, %v3049
      %v3051 = vpop.f32.mrb[0].mxu0
      %3052 = vmatprep.mubr.f32.mxu0 0.0
      %v3053 = vand.u32 %v1878, 4294901760
      %v3054 = vsub.f32 %v1878, %v3053
      %v3055 = vand.u32 %v3054, 4294901760
      %3056 = vmatmul.mubr.f32.gmra.mrb[0].mxu0 %v3055
      %v3057 = vpop.f32.mrb[0].mxu0
      %v3058 = vadd.f32 %v2756, %v3057
      %v3059 = vpop.f32.mrb[0].mxu0
      %3060 = vmatprep.mubr.f32.mxu0 0.0
      %v3061 = vand.u32 %v1881, 4294901760
      %v3062 = vsub.f32 %v1881, %v3061
      %v3063 = vand.u32 %v3062, 4294901760
      %3064 = vmatmul.mubr.f32.gmra.mrb[0].mxu0 %v3063
      %v3065 = vpop.f32.mrb[0].mxu0
      %v3066 = vadd.f32 %v2763, %v3065
      %v3067 = vpop.f32.mrb[0].mxu0
      %3068 = vmatprep.mubr.f32.mxu0 0.0
      %v3069 = vand.u32 %v1884, 4294901760
      %v3070 = vsub.f32 %v1884, %v3069
      %v3071 = vand.u32 %v3070, 4294901760
      %3072 = vmatmul.mubr.f32.gmra.mrb[0].mxu0 %v3071
      %v3073 = vpop.f32.mrb[0].mxu0
      %v3074 = vadd.f32 %v2770, %v3073
      %v3075 = vpop.f32.mrb[0].mxu0
      %3076 = vmatprep.mubr.f32.mxu0 0.0
      %v3077 = vand.u32 %v1887, 4294901760
      %v3078 = vsub.f32 %v1887, %v3077
      %v3079 = vand.u32 %v3078, 4294901760
      %3080 = vmatmul.mubr.f32.gmra.mrb[0].mxu0 %v3079
      %v3081 = vpop.f32.mrb[0].mxu0
      %v3082 = vadd.f32 %v2777, %v3081
      %v3083 = vpop.f32.mrb[0].mxu0
      %3084 = vmatprep.mubr.f32.mxu0 0.0
      %v3085 = vand.u32 %v1890, 4294901760
      %v3086 = vsub.f32 %v1890, %v3085
      %v3087 = vand.u32 %v3086, 4294901760
      %3088 = vmatmul.mubr.f32.gmra.mrb[0].mxu0 %v3087
      %v3089 = vpop.f32.mrb[0].mxu0
      %v3090 = vadd.f32 %v2784, %v3089
      %v3091 = vpop.f32.mrb[0].mxu0
      %3092 = vmatprep.mubr.f32.mxu0 0.0
      %v3093 = vand.u32 %v1893, 4294901760
      %v3094 = vsub.f32 %v1893, %v3093
      %v3095 = vand.u32 %v3094, 4294901760
      %3096 = vmatmul.mubr.f32.gmra.mrb[0].mxu0 %v3095
      %v3097 = vpop.f32.mrb[0].mxu0
      %v3098 = vadd.f32 %v2791, %v3097
      %v3099 = vpop.f32.mrb[0].mxu0
      %3100 = vmatprep.mubr.f32.mxu0 0.0
      %v3101 = vand.u32 %v1896, 4294901760
      %v3102 = vsub.f32 %v1896, %v3101
      %v3103 = vand.u32 %v3102, 4294901760
      %3104 = vmatmul.mubr.f32.gmra.mrb[0].mxu0 %v3103
      %v3105 = vpop.f32.mrb[0].mxu0
      %v3106 = vadd.f32 %v2798, %v3105
      %v3107 = vpop.f32.mrb[0].mxu0
      %3108 = vmatprep.mubr.f32.mxu0 0.0
      %v3109 = vand.u32 %v1899, 4294901760
      %v3110 = vsub.f32 %v1899, %v3109
      %v3111 = vand.u32 %v3110, 4294901760
      %3112 = vmatmul.mubr.f32.gmra.mrb[0].mxu0 %v3111
      %v3113 = vpop.f32.mrb[0].mxu0
      %v3114 = vadd.f32 %v2805, %v3113
      %v3115 = vpop.f32.mrb[0].mxu0
      %3116 = vmatprep.mubr.f32.mxu0 0.0
      %v3117 = vand.u32 %v1902, 4294901760
      %v3118 = vsub.f32 %v1902, %v3117
      %v3119 = vand.u32 %v3118, 4294901760
      %3120 = vmatmul.mubr.f32.gmra.mrb[0].mxu0 %v3119
      %v3121 = vpop.f32.mrb[0].mxu0
      %v3122 = vadd.f32 %v2812, %v3121
      %v3123 = vpop.f32.mrb[0].mxu0
      %3124 = vmatprep.mubr.f32.mxu0 0.0
      %v3125 = vand.u32 %v1905, 4294901760
      %v3126 = vsub.f32 %v1905, %v3125
      %v3127 = vand.u32 %v3126, 4294901760
      %3128 = vmatmul.mubr.f32.gmra.mrb[0].mxu0 %v3127
      %v3129 = vpop.f32.mrb[0].mxu0
      %v3130 = vadd.f32 %v2819, %v3129
      %v3131 = vpop.f32.mrb[0].mxu0
      %3132 = vmatprep.mubr.f32.mxu0 0.0
      %v3133 = vand.u32 %v1908, 4294901760
      %v3134 = vsub.f32 %v1908, %v3133
      %v3135 = vand.u32 %v3134, 4294901760
      %3136 = vmatmul.mubr.f32.gmra.mrb[0].mxu0 %v3135
      %v3137 = vpop.f32.mrb[0].mxu0
      %v3138 = vadd.f32 %v2826, %v3137
      %v3139 = vpop.f32.mrb[0].mxu0
      %3140 = vmatprep.mubr.f32.mxu0 0.0
      %v3141 = vand.u32 %v1911, 4294901760
      %v3142 = vsub.f32 %v1911, %v3141
      %v3143 = vand.u32 %v3142, 4294901760
      %3144 = vmatmul.mubr.f32.gmra.mrb[0].mxu0 %v3143
      %v3145 = vpop.f32.mrb[0].mxu0
      %v3146 = vadd.f32 %v2833, %v3145
      %v3147 = vpop.f32.mrb[0].mxu0
      %3148 = vmatprep.mubr.f32.mxu0 0.0
      %v3149 = vand.u32 %v1914, 4294901760
      %v3150 = vsub.f32 %v1914, %v3149
      %v3151 = vand.u32 %v3150, 4294901760
      %3152 = vmatmul.mubr.f32.gmra.mrb[0].mxu0 %v3151
      %v3153 = vpop.f32.mrb[0].mxu0
      %v3154 = vadd.f32 %v2840, %v3153
      %v3155 = vpop.f32.mrb[0].mxu0
      %3156 = vmatprep.mubr.f32.mxu0 0.0
      %v3157 = vand.u32 %v1917, 4294901760
      %v3158 = vsub.f32 %v1917, %v3157
      %v3159 = vand.u32 %v3158, 4294901760
      %3160 = vmatmul.mubr.f32.gmra.mrb[0].mxu0 %v3159
      %v3161 = vpop.f32.mrb[0].mxu0
      %v3162 = vadd.f32 %v2847, %v3161
      %v3163 = vpop.f32.mrb[0].mxu0
      %3164 = vmatprep.mubr.f32.mxu0 0.0
      %v3165 = vand.u32 %v1920, 4294901760
      %v3166 = vsub.f32 %v1920, %v3165
      %v3167 = vand.u32 %v3166, 4294901760
      %3168 = vmatmul.mubr.f32.gmra.mrb[0].mxu0 %v3167
      %v3169 = vpop.f32.mrb[0].mxu0
      %v3170 = vadd.f32 %v2854, %v3169
      %v3171 = vpop.f32.mrb[0].mxu0
      %3172 = vmatprep.mubr.f32.mxu0 0.0
      %v3173 = vand.u32 %v1923, 4294901760
      %v3174 = vsub.f32 %v1923, %v3173
      %v3175 = vand.u32 %v3174, 4294901760
      %3176 = vmatmul.mubr.f32.gmra.mrb[0].mxu0 %v3175
      %v3177 = vpop.f32.mrb[0].mxu0
      %v3178 = vadd.f32 %v2861, %v3177
      %v3179 = vpop.f32.mrb[0].mxu0
      %3180 = vmatprep.mubr.f32.mxu0 0.0
      %v3181 = vand.u32 %v1926, 4294901760
      %v3182 = vsub.f32 %v1926, %v3181
      %v3183 = vand.u32 %v3182, 4294901760
      %3184 = vmatmul.mubr.f32.gmra.mrb[0].mxu0 %v3183
      %v3185 = vpop.f32.mrb[0].mxu0
      %v3186 = vadd.f32 %v2868, %v3185
      %v3187 = vpop.f32.mrb[0].mxu0
      %3188 = vmatprep.mubr.f32.mxu0 0.0
      %v3189 = vand.u32 %v1929, 4294901760
      %v3190 = vsub.f32 %v1929, %v3189
      %v3191 = vand.u32 %v3190, 4294901760
      %3192 = vmatmul.mubr.f32.gmra.mrb[0].mxu0 %v3191
      %v3193 = vpop.f32.mrb[0].mxu0
      %v3194 = vadd.f32 %v2875, %v3193
      %v3195 = vpop.f32.mrb[0].mxu0
      %3196 = vmatprep.mubr.f32.mxu0 0.0
      %v3197 = vand.u32 %v1932, 4294901760
      %v3198 = vsub.f32 %v1932, %v3197
      %v3199 = vand.u32 %v3198, 4294901760
      %3200 = vmatmul.mubr.f32.gmra.mrb[0].mxu0 %v3199
      %v3201 = vpop.f32.mrb[0].mxu0
      %v3202 = vadd.f32 %v2882, %v3201
      %v3203 = vpop.f32.mrb[0].mxu0
      %3204 = vmatprep.mubr.f32.mxu0 0.0
      %v3205 = vand.u32 %v1935, 4294901760
      %v3206 = vsub.f32 %v1935, %v3205
      %v3207 = vand.u32 %v3206, 4294901760
      %3208 = vmatmul.mubr.f32.gmra.mrb[0].mxu0 %v3207
      %v3209 = vpop.f32.mrb[0].mxu0
      %v3210 = vadd.f32 %v2889, %v3209
      %v3211 = vpop.f32.mrb[0].mxu0
      %3212 = vmatprep.mubr.f32.mxu0 0.0
      %v3213 = vand.u32 %v1938, 4294901760
      %v3214 = vsub.f32 %v1938, %v3213
      %v3215 = vand.u32 %v3214, 4294901760
      %3216 = vmatmul.mubr.f32.gmra.mrb[0].mxu0 %v3215
      %v3217 = vpop.f32.mrb[0].mxu0
      %v3218 = vadd.f32 %v2896, %v3217
      %v3219 = vpop.f32.mrb[0].mxu0
      %3220 = vmatprep.mubr.f32.mxu0 0.0
      %v3221 = vand.u32 %v1941, 4294901760
      %v3222 = vsub.f32 %v1941, %v3221
      %v3223 = vand.u32 %v3222, 4294901760
      %3224 = vmatmul.mubr.f32.gmra.mrb[0].mxu0 %v3223
      %v3225 = vpop.f32.mrb[0].mxu0
      %v3226 = vadd.f32 %v2903, %v3225
      %v3227 = vpop.f32.mrb[0].mxu0
      %3228 = vmatprep.mubr.f32.mxu0 0.0
      %v3229 = vand.u32 %v1944, 4294901760
      %v3230 = vsub.f32 %v1944, %v3229
      %v3231 = vand.u32 %v3230, 4294901760
      %3232 = vmatmul.mubr.f32.gmra.mrb[0].mxu0 %v3231
      %v3233 = vpop.f32.mrb[0].mxu0
      %v3234 = vadd.f32 %v2910, %v3233
      %v3235 = vpop.f32.mrb[0].mxu0
      %3236 = vmatprep.mubr.f32.mxu0 0.0
      %v3237 = vand.u32 %v1947, 4294901760
      %v3238 = vsub.f32 %v1947, %v3237
      %v3239 = vand.u32 %v3238, 4294901760
      %3240 = vmatmul.mubr.f32.gmra.mrb[0].mxu0 %v3239
      %v3241 = vpop.f32.mrb[0].mxu0
      %v3242 = vadd.f32 %v2917, %v3241
      %v3243 = vpop.f32.mrb[0].mxu0
      %3244 = vmatprep.mubr.f32.mxu0 0.0
      %v3245 = vand.u32 %v1950, 4294901760
      %v3246 = vsub.f32 %v1950, %v3245
      %v3247 = vand.u32 %v3246, 4294901760
      %3248 = vmatmul.mubr.f32.gmra.mrb[0].mxu0 %v3247
      %v3249 = vpop.f32.mrb[0].mxu0
      %v3250 = vadd.f32 %v2924, %v3249
      %v3251 = vpop.f32.mrb[0].mxu0
      %3252 = vdwg.mxu0
      %3253 = vmatprep.subr.mxu0 0.0
      %v3254 = vand.u32 %v1850, 4294901760
      %v3255 = vsub.f32 %v1850, %v3254
      %v3256 = vand.u32 %v3255, 4294901760
      %3257 = vmatpush1.msra.mxu0 %v3256
      %3258 = vmatprep.subr.mxu0 0.0
      %v3259 = vand.u32 %v1851, 4294901760
      %v3260 = vsub.f32 %v1851, %v3259
      %v3261 = vand.u32 %v3260, 4294901760
      %3262 = vmatpush1.msra.mxu0 %v3261
      %3263 = vmatprep.subr.mxu0 0.0
      %v3264 = vand.u32 %v1852, 4294901760
      %v3265 = vsub.f32 %v1852, %v3264
      %v3266 = vand.u32 %v3265, 4294901760
      %3267 = vmatpush1.msra.mxu0 %v3266
      %3268 = vmatprep.subr.mxu0 0.0
      %v3269 = vand.u32 %v1853, 4294901760
      %v3270 = vsub.f32 %v1853, %v3269
      %v3271 = vand.u32 %v3270, 4294901760
      %3272 = vmatpush1.msra.mxu0 %v3271
      %3273 = vmatprep.subr.mxu0 0.0
      %v3274 = vand.u32 %v1954, 4294901760
      %v3275 = vsub.f32 %v1954, %v3274
      %v3276 = vand.u32 %v3275, 4294901760
      %3277 = vmatpush1.msra.mxu0 %v3276
      %3278 = vmatprep.subr.mxu0 0.0
      %3279 = vmatpush1.msra.mxu0 0.0
      %3280 = vmatprep.subr.mxu0 0.0
      %3281 = vmatpush1.msra.mxu0 0.0
      %3282 = vmatprep.subr.mxu0 0.0
      %3283 = vmatpush1.msra.mxu0 0.0
      %3284 = vmatprep.subr.mxu0 0.0
      %3285 = vmatpush1.msra.mxu0 0.0
      %3286 = vmatprep.subr.mxu0 0.0
      %3287 = vmatpush1.msra.mxu0 0.0
      %3288 = vmatprep.subr.mxu0 0.0
      %3289 = vmatpush1.msra.mxu0 0.0
      %3290 = vmatprep.subr.mxu0 0.0
      %3291 = vmatpush1.msra.mxu0 0.0
      %3292 = vmatprep.subr.mxu0 0.0
      %3293 = vmatpush1.msra.mxu0 0.0
      %3294 = vmatprep.subr.mxu0 0.0
      %3295 = vmatpush1.msra.mxu0 0.0
      %3296 = vmatprep.subr.mxu0 0.0
      %3297 = vmatpush1.msra.mxu0 0.0
      %3298 = vmatprep.subr.mxu0 0.0
      %3299 = vmatpush1.msra.mxu0 0.0
      %3300 = vmatprep.subr.mxu0 0.0
      %3301 = vmatpush1.msra.mxu0 0.0
      %3302 = vmatprep.subr.mxu0 0.0
      %3303 = vmatpush1.msra.mxu0 0.0
      %3304 = vmatprep.subr.mxu0 0.0
      %3305 = vmatpush1.msra.mxu0 0.0
      %3306 = vmatprep.subr.mxu0 0.0
      %3307 = vmatpush1.msra.mxu0 0.0
      %3308 = vmatprep.subr.mxu0 0.0
      %3309 = vmatpush1.msra.mxu0 0.0
      %3310 = vmatprep.subr.mxu0 0.0
      %3311 = vmatpush1.msra.mxu0 0.0
      %3312 = vmatprep.subr.mxu0 0.0
      %3313 = vmatpush1.msra.mxu0 0.0
      %3314 = vmatprep.subr.mxu0 0.0
      %3315 = vmatpush1.msra.mxu0 0.0
      %3316 = vmatprep.subr.mxu0 0.0
      %3317 = vmatpush1.msra.mxu0 0.0
      %3318 = vmatprep.subr.mxu0 0.0
      %3319 = vmatpush1.msra.mxu0 0.0
      %3320 = vmatprep.subr.mxu0 0.0
      %3321 = vmatpush1.msra.mxu0 0.0
      %3322 = vmatprep.subr.mxu0 0.0
      %3323 = vmatpush1.msra.mxu0 0.0
      %3324 = vmatprep.subr.mxu0 0.0
      %3325 = vmatpush1.msra.mxu0 0.0
      %3326 = vmatprep.subr.mxu0 0.0
      %3327 = vmatpush1.msra.mxu0 0.0
      %3328 = vmatprep.subr.mxu0 0.0
      %3329 = vmatpush1.msra.mxu0 0.0
      %3330 = vmatprep.subr.mxu0 0.0
      %3331 = vmatpush1.msra.mxu0 0.0
      %3332 = vmatprep.mubr.f32.mxu0 0.0
      %v3333 = vand.u32 %v1857, 4294901760
      %3334 = vmatmul.mubr.f32.gmra.mrb[0].mxu0 %v3333
      %v3335 = vpop.f32.mrb[0].mxu0
      %v3336 = vadd.f32 %v3002, %v3335
      %v3337 = vpop.f32.mrb[0].mxu0
      %3338 = vmatprep.mubr.f32.mxu0 0.0
      %v3339 = vand.u32 %v1860, 4294901760
      %3340 = vmatmul.mubr.f32.gmra.mrb[0].mxu0 %v3339
      %v3341 = vpop.f32.mrb[0].mxu0
      %v3342 = vadd.f32 %v3010, %v3341
      %v3343 = vpop.f32.mrb[0].mxu0
      %3344 = vmatprep.mubr.f32.mxu0 0.0
      %v3345 = vand.u32 %v1863, 4294901760
      %3346 = vmatmul.mubr.f32.gmra.mrb[0].mxu0 %v3345
      %v3347 = vpop.f32.mrb[0].mxu0
      %v3348 = vadd.f32 %v3018, %v3347
      %v3349 = vpop.f32.mrb[0].mxu0
      %3350 = vmatprep.mubr.f32.mxu0 0.0
      %v3351 = vand.u32 %v1866, 4294901760
      %3352 = vmatmul.mubr.f32.gmra.mrb[0].mxu0 %v3351
      %v3353 = vpop.f32.mrb[0].mxu0
      %v3354 = vadd.f32 %v3026, %v3353
      %v3355 = vpop.f32.mrb[0].mxu0
      %3356 = vmatprep.mubr.f32.mxu0 0.0
      %v3357 = vand.u32 %v1869, 4294901760
      %3358 = vmatmul.mubr.f32.gmra.mrb[0].mxu0 %v3357
      %v3359 = vpop.f32.mrb[0].mxu0
      %v3360 = vadd.f32 %v3034, %v3359
      %v3361 = vpop.f32.mrb[0].mxu0
      %3362 = vmatprep.mubr.f32.mxu0 0.0
      %v3363 = vand.u32 %v1872, 4294901760
      %3364 = vmatmul.mubr.f32.gmra.mrb[0].mxu0 %v3363
      %v3365 = vpop.f32.mrb[0].mxu0
      %v3366 = vadd.f32 %v3042, %v3365
      %v3367 = vpop.f32.mrb[0].mxu0
      %3368 = vmatprep.mubr.f32.mxu0 0.0
      %v3369 = vand.u32 %v1875, 4294901760
      %3370 = vmatmul.mubr.f32.gmra.mrb[0].mxu0 %v3369
      %v3371 = vpop.f32.mrb[0].mxu0
      %v3372 = vadd.f32 %v3050, %v3371
      %v3373 = vpop.f32.mrb[0].mxu0
      %3374 = vmatprep.mubr.f32.mxu0 0.0
      %v3375 = vand.u32 %v1878, 4294901760
      %3376 = vmatmul.mubr.f32.gmra.mrb[0].mxu0 %v3375
      %v3377 = vpop.f32.mrb[0].mxu0
      %v3378 = vadd.f32 %v3058, %v3377
      %v3379 = vpop.f32.mrb[0].mxu0
      %3380 = vmatprep.mubr.f32.mxu0 0.0
      %v3381 = vand.u32 %v1881, 4294901760
      %3382 = vmatmul.mubr.f32.gmra.mrb[0].mxu0 %v3381
      %v3383 = vpop.f32.mrb[0].mxu0
      %v3384 = vadd.f32 %v3066, %v3383
      %v3385 = vpop.f32.mrb[0].mxu0
      %3386 = vmatprep.mubr.f32.mxu0 0.0
      %v3387 = vand.u32 %v1884, 4294901760
      %3388 = vmatmul.mubr.f32.gmra.mrb[0].mxu0 %v3387
      %v3389 = vpop.f32.mrb[0].mxu0
      %v3390 = vadd.f32 %v3074, %v3389
      %v3391 = vpop.f32.mrb[0].mxu0
      %3392 = vmatprep.mubr.f32.mxu0 0.0
      %v3393 = vand.u32 %v1887, 4294901760
      %3394 = vmatmul.mubr.f32.gmra.mrb[0].mxu0 %v3393
      %v3395 = vpop.f32.mrb[0].mxu0
      %v3396 = vadd.f32 %v3082, %v3395
      %v3397 = vpop.f32.mrb[0].mxu0
      %3398 = vmatprep.mubr.f32.mxu0 0.0
      %v3399 = vand.u32 %v1890, 4294901760
      %3400 = vmatmul.mubr.f32.gmra.mrb[0].mxu0 %v3399
      %v3401 = vpop.f32.mrb[0].mxu0
      %v3402 = vadd.f32 %v3090, %v3401
      %v3403 = vpop.f32.mrb[0].mxu0
      %3404 = vmatprep.mubr.f32.mxu0 0.0
      %v3405 = vand.u32 %v1893, 4294901760
      %3406 = vmatmul.mubr.f32.gmra.mrb[0].mxu0 %v3405
      %v3407 = vpop.f32.mrb[0].mxu0
      %v3408 = vadd.f32 %v3098, %v3407
      %v3409 = vpop.f32.mrb[0].mxu0
      %3410 = vmatprep.mubr.f32.mxu0 0.0
      %v3411 = vand.u32 %v1896, 4294901760
      %3412 = vmatmul.mubr.f32.gmra.mrb[0].mxu0 %v3411
      %v3413 = vpop.f32.mrb[0].mxu0
      %v3414 = vadd.f32 %v3106, %v3413
      %v3415 = vpop.f32.mrb[0].mxu0
      %3416 = vmatprep.mubr.f32.mxu0 0.0
      %v3417 = vand.u32 %v1899, 4294901760
      %3418 = vmatmul.mubr.f32.gmra.mrb[0].mxu0 %v3417
      %v3419 = vpop.f32.mrb[0].mxu0
      %v3420 = vadd.f32 %v3114, %v3419
      %v3421 = vpop.f32.mrb[0].mxu0
      %3422 = vmatprep.mubr.f32.mxu0 0.0
      %v3423 = vand.u32 %v1902, 4294901760
      %3424 = vmatmul.mubr.f32.gmra.mrb[0].mxu0 %v3423
      %v3425 = vpop.f32.mrb[0].mxu0
      %v3426 = vadd.f32 %v3122, %v3425
      %v3427 = vpop.f32.mrb[0].mxu0
      %3428 = vmatprep.mubr.f32.mxu0 0.0
      %v3429 = vand.u32 %v1905, 4294901760
      %3430 = vmatmul.mubr.f32.gmra.mrb[0].mxu0 %v3429
      %v3431 = vpop.f32.mrb[0].mxu0
      %v3432 = vadd.f32 %v3130, %v3431
      %v3433 = vpop.f32.mrb[0].mxu0
      %3434 = vmatprep.mubr.f32.mxu0 0.0
      %v3435 = vand.u32 %v1908, 4294901760
      %3436 = vmatmul.mubr.f32.gmra.mrb[0].mxu0 %v3435
      %v3437 = vpop.f32.mrb[0].mxu0
      %v3438 = vadd.f32 %v3138, %v3437
      %v3439 = vpop.f32.mrb[0].mxu0
      %3440 = vmatprep.mubr.f32.mxu0 0.0
      %v3441 = vand.u32 %v1911, 4294901760
      %3442 = vmatmul.mubr.f32.gmra.mrb[0].mxu0 %v3441
      %v3443 = vpop.f32.mrb[0].mxu0
      %v3444 = vadd.f32 %v3146, %v3443
      %v3445 = vpop.f32.mrb[0].mxu0
      %3446 = vmatprep.mubr.f32.mxu0 0.0
      %v3447 = vand.u32 %v1914, 4294901760
      %3448 = vmatmul.mubr.f32.gmra.mrb[0].mxu0 %v3447
      %v3449 = vpop.f32.mrb[0].mxu0
      %v3450 = vadd.f32 %v3154, %v3449
      %v3451 = vpop.f32.mrb[0].mxu0
      %3452 = vmatprep.mubr.f32.mxu0 0.0
      %v3453 = vand.u32 %v1917, 4294901760
      %3454 = vmatmul.mubr.f32.gmra.mrb[0].mxu0 %v3453
      %v3455 = vpop.f32.mrb[0].mxu0
      %v3456 = vadd.f32 %v3162, %v3455
      %v3457 = vpop.f32.mrb[0].mxu0
      %3458 = vmatprep.mubr.f32.mxu0 0.0
      %v3459 = vand.u32 %v1920, 4294901760
      %3460 = vmatmul.mubr.f32.gmra.mrb[0].mxu0 %v3459
      %v3461 = vpop.f32.mrb[0].mxu0
      %v3462 = vadd.f32 %v3170, %v3461
      %v3463 = vpop.f32.mrb[0].mxu0
      %3464 = vmatprep.mubr.f32.mxu0 0.0
      %v3465 = vand.u32 %v1923, 4294901760
      %3466 = vmatmul.mubr.f32.gmra.mrb[0].mxu0 %v3465
      %v3467 = vpop.f32.mrb[0].mxu0
      %v3468 = vadd.f32 %v3178, %v3467
      %v3469 = vpop.f32.mrb[0].mxu0
      %3470 = vmatprep.mubr.f32.mxu0 0.0
      %v3471 = vand.u32 %v1926, 4294901760
      %3472 = vmatmul.mubr.f32.gmra.mrb[0].mxu0 %v3471
      %v3473 = vpop.f32.mrb[0].mxu0
      %v3474 = vadd.f32 %v3186, %v3473
      %v3475 = vpop.f32.mrb[0].mxu0
      %3476 = vmatprep.mubr.f32.mxu0 0.0
      %v3477 = vand.u32 %v1929, 4294901760
      %3478 = vmatmul.mubr.f32.gmra.mrb[0].mxu0 %v3477
      %v3479 = vpop.f32.mrb[0].mxu0
      %v3480 = vadd.f32 %v3194, %v3479
      %v3481 = vpop.f32.mrb[0].mxu0
      %3482 = vmatprep.mubr.f32.mxu0 0.0
      %v3483 = vand.u32 %v1932, 4294901760
      %3484 = vmatmul.mubr.f32.gmra.mrb[0].mxu0 %v3483
      %v3485 = vpop.f32.mrb[0].mxu0
      %v3486 = vadd.f32 %v3202, %v3485
      %v3487 = vpop.f32.mrb[0].mxu0
      %3488 = vmatprep.mubr.f32.mxu0 0.0
      %v3489 = vand.u32 %v1935, 4294901760
      %3490 = vmatmul.mubr.f32.gmra.mrb[0].mxu0 %v3489
      %v3491 = vpop.f32.mrb[0].mxu0
      %v3492 = vadd.f32 %v3210, %v3491
      %v3493 = vpop.f32.mrb[0].mxu0
      %3494 = vmatprep.mubr.f32.mxu0 0.0
      %v3495 = vand.u32 %v1938, 4294901760
      %3496 = vmatmul.mubr.f32.gmra.mrb[0].mxu0 %v3495
      %v3497 = vpop.f32.mrb[0].mxu0
      %v3498 = vadd.f32 %v3218, %v3497
      %v3499 = vpop.f32.mrb[0].mxu0
      %3500 = vmatprep.mubr.f32.mxu0 0.0
      %v3501 = vand.u32 %v1941, 4294901760
      %3502 = vmatmul.mubr.f32.gmra.mrb[0].mxu0 %v3501
      %v3503 = vpop.f32.mrb[0].mxu0
      %v3504 = vadd.f32 %v3226, %v3503
      %v3505 = vpop.f32.mrb[0].mxu0
      %3506 = vmatprep.mubr.f32.mxu0 0.0
      %v3507 = vand.u32 %v1944, 4294901760
      %3508 = vmatmul.mubr.f32.gmra.mrb[0].mxu0 %v3507
      %v3509 = vpop.f32.mrb[0].mxu0
      %v3510 = vadd.f32 %v3234, %v3509
      %v3511 = vpop.f32.mrb[0].mxu0
      %3512 = vmatprep.mubr.f32.mxu0 0.0
      %v3513 = vand.u32 %v1947, 4294901760
      %3514 = vmatmul.mubr.f32.gmra.mrb[0].mxu0 %v3513
      %v3515 = vpop.f32.mrb[0].mxu0
      %v3516 = vadd.f32 %v3242, %v3515
      %v3517 = vpop.f32.mrb[0].mxu0
      %3518 = vmatprep.mubr.f32.mxu0 0.0
      %v3519 = vand.u32 %v1950, 4294901760
      %3520 = vmatmul.mubr.f32.gmra.mrb[0].mxu0 %v3519
      %v3521 = vpop.f32.mrb[0].mxu0
      %v3522 = vadd.f32 %v3250, %v3521
      %v3523 = vpop.f32.mrb[0].mxu0
      %3524 = vdwg.mxu0
      %3525 = vmatprep.subr.mxu0 0.0
      %v3526 = vand.u32 %v1850, 4294901760
      %3527 = vmatpush1.msra.mxu0 %v3526
      %3528 = vmatprep.subr.mxu0 0.0
      %v3529 = vand.u32 %v1851, 4294901760
      %3530 = vmatpush1.msra.mxu0 %v3529
      %3531 = vmatprep.subr.mxu0 0.0
      %v3532 = vand.u32 %v1852, 4294901760
      %3533 = vmatpush1.msra.mxu0 %v3532
      %3534 = vmatprep.subr.mxu0 0.0
      %v3535 = vand.u32 %v1853, 4294901760
      %3536 = vmatpush1.msra.mxu0 %v3535
      %3537 = vmatprep.subr.mxu0 0.0
      %v3538 = vand.u32 %v1954, 4294901760
      %3539 = vmatpush1.msra.mxu0 %v3538
      %3540 = vmatprep.subr.mxu0 0.0
      %3541 = vmatpush1.msra.mxu0 0.0
      %3542 = vmatprep.subr.mxu0 0.0
      %3543 = vmatpush1.msra.mxu0 0.0
      %3544 = vmatprep.subr.mxu0 0.0
      %3545 = vmatpush1.msra.mxu0 0.0
      %3546 = vmatprep.subr.mxu0 0.0
      %3547 = vmatpush1.msra.mxu0 0.0
      %3548 = vmatprep.subr.mxu0 0.0
      %3549 = vmatpush1.msra.mxu0 0.0
      %3550 = vmatprep.subr.mxu0 0.0
      %3551 = vmatpush1.msra.mxu0 0.0
      %3552 = vmatprep.subr.mxu0 0.0
      %3553 = vmatpush1.msra.mxu0 0.0
      %3554 = vmatprep.subr.mxu0 0.0
      %3555 = vmatpush1.msra.mxu0 0.0
      %3556 = vmatprep.subr.mxu0 0.0
      %3557 = vmatpush1.msra.mxu0 0.0
      %3558 = vmatprep.subr.mxu0 0.0
      %3559 = vmatpush1.msra.mxu0 0.0
      %3560 = vmatprep.subr.mxu0 0.0
      %3561 = vmatpush1.msra.mxu0 0.0
      %3562 = vmatprep.subr.mxu0 0.0
      %3563 = vmatpush1.msra.mxu0 0.0
      %3564 = vmatprep.subr.mxu0 0.0
      %3565 = vmatpush1.msra.mxu0 0.0
      %3566 = vmatprep.subr.mxu0 0.0
      %3567 = vmatpush1.msra.mxu0 0.0
      %3568 = vmatprep.subr.mxu0 0.0
      %3569 = vmatpush1.msra.mxu0 0.0
      %3570 = vmatprep.subr.mxu0 0.0
      %3571 = vmatpush1.msra.mxu0 0.0
      %3572 = vmatprep.subr.mxu0 0.0
      %3573 = vmatpush1.msra.mxu0 0.0
      %3574 = vmatprep.subr.mxu0 0.0
      %3575 = vmatpush1.msra.mxu0 0.0
      %3576 = vmatprep.subr.mxu0 0.0
      %3577 = vmatpush1.msra.mxu0 0.0
      %3578 = vmatprep.subr.mxu0 0.0
      %3579 = vmatpush1.msra.mxu0 0.0
      %3580 = vmatprep.subr.mxu0 0.0
      %3581 = vmatpush1.msra.mxu0 0.0
      %3582 = vmatprep.subr.mxu0 0.0
      %3583 = vmatpush1.msra.mxu0 0.0
      %3584 = vmatprep.subr.mxu0 0.0
      %3585 = vmatpush1.msra.mxu0 0.0
      %3586 = vmatprep.subr.mxu0 0.0
      %3587 = vmatpush1.msra.mxu0 0.0
      %3588 = vmatprep.subr.mxu0 0.0
      %3589 = vmatpush1.msra.mxu0 0.0
      %3590 = vmatprep.subr.mxu0 0.0
      %3591 = vmatpush1.msra.mxu0 0.0
      %3592 = vmatprep.subr.mxu0 0.0
      %3593 = vmatpush1.msra.mxu0 0.0
      %3594 = vmatprep.mubr.f32.mxu0 0.0
      %v3595 = vand.u32 %v1857, 4294901760
      %3596 = vmatmul.mubr.f32.gmra.mrb[0].mxu0 %v3595
      %v3597 = vpop.f32.mrb[0].mxu0
      %v3598 = vadd.f32 %v3336, %v3597
      %v3599 = vpop.f32.mrb[0].mxu0
      %3600 = vmatprep.mubr.f32.mxu0 0.0
      %v3601 = vand.u32 %v1860, 4294901760
      %3602 = vmatmul.mubr.f32.gmra.mrb[0].mxu0 %v3601
      %v3603 = vpop.f32.mrb[0].mxu0
      %v3604 = vadd.f32 %v3342, %v3603
      %v3605 = vpop.f32.mrb[0].mxu0
      %3606 = vmatprep.mubr.f32.mxu0 0.0
      %v3607 = vand.u32 %v1863, 4294901760
      %3608 = vmatmul.mubr.f32.gmra.mrb[0].mxu0 %v3607
      %v3609 = vpop.f32.mrb[0].mxu0
      %v3610 = vadd.f32 %v3348, %v3609
      %v3611 = vpop.f32.mrb[0].mxu0
      %3612 = vmatprep.mubr.f32.mxu0 0.0
      %v3613 = vand.u32 %v1866, 4294901760
      %3614 = vmatmul.mubr.f32.gmra.mrb[0].mxu0 %v3613
      %v3615 = vpop.f32.mrb[0].mxu0
      %v3616 = vadd.f32 %v3354, %v3615
      %v3617 = vpop.f32.mrb[0].mxu0
      %3618 = vmatprep.mubr.f32.mxu0 0.0
      %v3619 = vand.u32 %v1869, 4294901760
      %3620 = vmatmul.mubr.f32.gmra.mrb[0].mxu0 %v3619
      %v3621 = vpop.f32.mrb[0].mxu0
      %v3622 = vadd.f32 %v3360, %v3621
      %v3623 = vpop.f32.mrb[0].mxu0
      %3624 = vmatprep.mubr.f32.mxu0 0.0
      %v3625 = vand.u32 %v1872, 4294901760
      %3626 = vmatmul.mubr.f32.gmra.mrb[0].mxu0 %v3625
      %v3627 = vpop.f32.mrb[0].mxu0
      %v3628 = vadd.f32 %v3366, %v3627
      %v3629 = vpop.f32.mrb[0].mxu0
      %3630 = vmatprep.mubr.f32.mxu0 0.0
      %v3631 = vand.u32 %v1875, 4294901760
      %3632 = vmatmul.mubr.f32.gmra.mrb[0].mxu0 %v3631
      %v3633 = vpop.f32.mrb[0].mxu0
      %v3634 = vadd.f32 %v3372, %v3633
      %v3635 = vpop.f32.mrb[0].mxu0
      %3636 = vmatprep.mubr.f32.mxu0 0.0
      %v3637 = vand.u32 %v1878, 4294901760
      %3638 = vmatmul.mubr.f32.gmra.mrb[0].mxu0 %v3637
      %v3639 = vpop.f32.mrb[0].mxu0
      %v3640 = vadd.f32 %v3378, %v3639
      %v3641 = vpop.f32.mrb[0].mxu0
      %3642 = vmatprep.mubr.f32.mxu0 0.0
      %v3643 = vand.u32 %v1881, 4294901760
      %3644 = vmatmul.mubr.f32.gmra.mrb[0].mxu0 %v3643
      %v3645 = vpop.f32.mrb[0].mxu0
      %v3646 = vadd.f32 %v3384, %v3645
      %v3647 = vpop.f32.mrb[0].mxu0
      %3648 = vmatprep.mubr.f32.mxu0 0.0
      %v3649 = vand.u32 %v1884, 4294901760
      %3650 = vmatmul.mubr.f32.gmra.mrb[0].mxu0 %v3649
      %v3651 = vpop.f32.mrb[0].mxu0
      %v3652 = vadd.f32 %v3390, %v3651
      %v3653 = vpop.f32.mrb[0].mxu0
      %3654 = vmatprep.mubr.f32.mxu0 0.0
      %v3655 = vand.u32 %v1887, 4294901760
      %3656 = vmatmul.mubr.f32.gmra.mrb[0].mxu0 %v3655
      %v3657 = vpop.f32.mrb[0].mxu0
      %v3658 = vadd.f32 %v3396, %v3657
      %v3659 = vpop.f32.mrb[0].mxu0
      %3660 = vmatprep.mubr.f32.mxu0 0.0
      %v3661 = vand.u32 %v1890, 4294901760
      %3662 = vmatmul.mubr.f32.gmra.mrb[0].mxu0 %v3661
      %v3663 = vpop.f32.mrb[0].mxu0
      %v3664 = vadd.f32 %v3402, %v3663
      %v3665 = vpop.f32.mrb[0].mxu0
      %3666 = vmatprep.mubr.f32.mxu0 0.0
      %v3667 = vand.u32 %v1893, 4294901760
      %3668 = vmatmul.mubr.f32.gmra.mrb[0].mxu0 %v3667
      %v3669 = vpop.f32.mrb[0].mxu0
      %v3670 = vadd.f32 %v3408, %v3669
      %v3671 = vpop.f32.mrb[0].mxu0
      %3672 = vmatprep.mubr.f32.mxu0 0.0
      %v3673 = vand.u32 %v1896, 4294901760
      %3674 = vmatmul.mubr.f32.gmra.mrb[0].mxu0 %v3673
      %v3675 = vpop.f32.mrb[0].mxu0
      %v3676 = vadd.f32 %v3414, %v3675
      %v3677 = vpop.f32.mrb[0].mxu0
      %3678 = vmatprep.mubr.f32.mxu0 0.0
      %v3679 = vand.u32 %v1899, 4294901760
      %3680 = vmatmul.mubr.f32.gmra.mrb[0].mxu0 %v3679
      %v3681 = vpop.f32.mrb[0].mxu0
      %v3682 = vadd.f32 %v3420, %v3681
      %v3683 = vpop.f32.mrb[0].mxu0
      %3684 = vmatprep.mubr.f32.mxu0 0.0
      %v3685 = vand.u32 %v1902, 4294901760
      %3686 = vmatmul.mubr.f32.gmra.mrb[0].mxu0 %v3685
      %v3687 = vpop.f32.mrb[0].mxu0
      %v3688 = vadd.f32 %v3426, %v3687
      %v3689 = vpop.f32.mrb[0].mxu0
      %3690 = vmatprep.mubr.f32.mxu0 0.0
      %v3691 = vand.u32 %v1905, 4294901760
      %3692 = vmatmul.mubr.f32.gmra.mrb[0].mxu0 %v3691
      %v3693 = vpop.f32.mrb[0].mxu0
      %v3694 = vadd.f32 %v3432, %v3693
      %v3695 = vpop.f32.mrb[0].mxu0
      %3696 = vmatprep.mubr.f32.mxu0 0.0
      %v3697 = vand.u32 %v1908, 4294901760
      %3698 = vmatmul.mubr.f32.gmra.mrb[0].mxu0 %v3697
      %v3699 = vpop.f32.mrb[0].mxu0
      %v3700 = vadd.f32 %v3438, %v3699
      %v3701 = vpop.f32.mrb[0].mxu0
      %3702 = vmatprep.mubr.f32.mxu0 0.0
      %v3703 = vand.u32 %v1911, 4294901760
      %3704 = vmatmul.mubr.f32.gmra.mrb[0].mxu0 %v3703
      %v3705 = vpop.f32.mrb[0].mxu0
      %v3706 = vadd.f32 %v3444, %v3705
      %v3707 = vpop.f32.mrb[0].mxu0
      %3708 = vmatprep.mubr.f32.mxu0 0.0
      %v3709 = vand.u32 %v1914, 4294901760
      %3710 = vmatmul.mubr.f32.gmra.mrb[0].mxu0 %v3709
      %v3711 = vpop.f32.mrb[0].mxu0
      %v3712 = vadd.f32 %v3450, %v3711
      %v3713 = vpop.f32.mrb[0].mxu0
      %3714 = vmatprep.mubr.f32.mxu0 0.0
      %v3715 = vand.u32 %v1917, 4294901760
      %3716 = vmatmul.mubr.f32.gmra.mrb[0].mxu0 %v3715
      %v3717 = vpop.f32.mrb[0].mxu0
      %v3718 = vadd.f32 %v3456, %v3717
      %v3719 = vpop.f32.mrb[0].mxu0
      %3720 = vmatprep.mubr.f32.mxu0 0.0
      %v3721 = vand.u32 %v1920, 4294901760
      %3722 = vmatmul.mubr.f32.gmra.mrb[0].mxu0 %v3721
      %v3723 = vpop.f32.mrb[0].mxu0
      %v3724 = vadd.f32 %v3462, %v3723
      %v3725 = vpop.f32.mrb[0].mxu0
      %3726 = vmatprep.mubr.f32.mxu0 0.0
      %v3727 = vand.u32 %v1923, 4294901760
      %3728 = vmatmul.mubr.f32.gmra.mrb[0].mxu0 %v3727
      %v3729 = vpop.f32.mrb[0].mxu0
      %v3730 = vadd.f32 %v3468, %v3729
      %v3731 = vpop.f32.mrb[0].mxu0
      %3732 = vmatprep.mubr.f32.mxu0 0.0
      %v3733 = vand.u32 %v1926, 4294901760
      %3734 = vmatmul.mubr.f32.gmra.mrb[0].mxu0 %v3733
      %v3735 = vpop.f32.mrb[0].mxu0
      %v3736 = vadd.f32 %v3474, %v3735
      %v3737 = vpop.f32.mrb[0].mxu0
      %3738 = vmatprep.mubr.f32.mxu0 0.0
      %v3739 = vand.u32 %v1929, 4294901760
      %3740 = vmatmul.mubr.f32.gmra.mrb[0].mxu0 %v3739
      %v3741 = vpop.f32.mrb[0].mxu0
      %v3742 = vadd.f32 %v3480, %v3741
      %v3743 = vpop.f32.mrb[0].mxu0
      %3744 = vmatprep.mubr.f32.mxu0 0.0
      %v3745 = vand.u32 %v1932, 4294901760
      %3746 = vmatmul.mubr.f32.gmra.mrb[0].mxu0 %v3745
      %v3747 = vpop.f32.mrb[0].mxu0
      %v3748 = vadd.f32 %v3486, %v3747
      %v3749 = vpop.f32.mrb[0].mxu0
      %3750 = vmatprep.mubr.f32.mxu0 0.0
      %v3751 = vand.u32 %v1935, 4294901760
      %3752 = vmatmul.mubr.f32.gmra.mrb[0].mxu0 %v3751
      %v3753 = vpop.f32.mrb[0].mxu0
      %v3754 = vadd.f32 %v3492, %v3753
      %v3755 = vpop.f32.mrb[0].mxu0
      %3756 = vmatprep.mubr.f32.mxu0 0.0
      %v3757 = vand.u32 %v1938, 4294901760
      %3758 = vmatmul.mubr.f32.gmra.mrb[0].mxu0 %v3757
      %v3759 = vpop.f32.mrb[0].mxu0
      %v3760 = vadd.f32 %v3498, %v3759
      %v3761 = vpop.f32.mrb[0].mxu0
      %3762 = vmatprep.mubr.f32.mxu0 0.0
      %v3763 = vand.u32 %v1941, 4294901760
      %3764 = vmatmul.mubr.f32.gmra.mrb[0].mxu0 %v3763
      %v3765 = vpop.f32.mrb[0].mxu0
      %v3766 = vadd.f32 %v3504, %v3765
      %v3767 = vpop.f32.mrb[0].mxu0
      %3768 = vmatprep.mubr.f32.mxu0 0.0
      %v3769 = vand.u32 %v1944, 4294901760
      %3770 = vmatmul.mubr.f32.gmra.mrb[0].mxu0 %v3769
      %v3771 = vpop.f32.mrb[0].mxu0
      %v3772 = vadd.f32 %v3510, %v3771
      %v3773 = vpop.f32.mrb[0].mxu0
      %3774 = vmatprep.mubr.f32.mxu0 0.0
      %v3775 = vand.u32 %v1947, 4294901760
      %3776 = vmatmul.mubr.f32.gmra.mrb[0].mxu0 %v3775
      %v3777 = vpop.f32.mrb[0].mxu0
      %v3778 = vadd.f32 %v3516, %v3777
      %v3779 = vpop.f32.mrb[0].mxu0
      %3780 = vmatprep.mubr.f32.mxu0 0.0
      %v3781 = vand.u32 %v1950, 4294901760
      %3782 = vmatmul.mubr.f32.gmra.mrb[0].mxu0 %v3781
      %v3783 = vpop.f32.mrb[0].mxu0
      %v3784 = vadd.f32 %v3522, %v3783
      %v3785 = vpop.f32.mrb[0].mxu0
      %3786 = vdwg.mxu0
      %v3787 = vmul.f32 %v569, 0.75
      %v3788 = vmul.f32 %v502, 0.75
      %v3789 = vmul.f32 %v532, 0.75
      %v3790 = vmul.f32 %v505, 0.75
      %v3791 = vmul.f32 %v535, 0.75
      %v3792 = vmul.f32 %v508, 0.75
      %v3793 = vmul.f32 %v538, 0.75
      %v3794 = vmul.f32 %v511, 0.75
      %v3795 = vmul.f32 %v541, 0.75
      %v3796 = vmul.f32 %v514, 0.75
      %v3797 = vmul.f32 %v544, 0.75
      %v3798 = vmul.f32 %v517, 0.75
      %v3799 = vmul.f32 %v547, 0.75
      %v3800 = vmul.f32 %v520, 0.75
      %v3801 = vmul.f32 %v550, 0.75
      %v3802 = vmul.f32 %v523, 0.75
      %v3803 = vmul.f32 %v553, 0.75
      %v3804 = vmul.f32 %v579, 0.75
      %v3805 = vmul.f32 %v569, 0.25
      %v3806 = vmul.f32 %v502, 0.25
      %v3807 = vmul.f32 %v532, 0.25
      %v3808 = vmul.f32 %v505, 0.25
      %v3809 = vmul.f32 %v535, 0.25
      %v3810 = vmul.f32 %v508, 0.25
      %v3811 = vmul.f32 %v538, 0.25
      %v3812 = vmul.f32 %v511, 0.25
      %v3813 = vmul.f32 %v541, 0.25
      %v3814 = vmul.f32 %v514, 0.25
      %v3815 = vmul.f32 %v544, 0.25
      %v3816 = vmul.f32 %v517, 0.25
      %v3817 = vmul.f32 %v547, 0.25
      %v3818 = vmul.f32 %v520, 0.25
      %v3819 = vmul.f32 %v550, 0.25
      %v3820 = vmul.f32 %v523, 0.25
      %v3821 = vmul.f32 %v553, 0.25
      %v3822 = vmul.f32 %v579, 0.25
      %v3841 = vrot.slane %v3805, 1
      %v3842 = vrot.slane %v3806, 1
      %v3843 = vrot.slane %v3807, 1
      %v3844 = vrot.slane %v3808, 1
      %v3845 = vrot.slane %v3809, 1
      %v3846 = vrot.slane %v3810, 1
      %v3847 = vrot.slane %v3811, 1
      %v3848 = vrot.slane %v3812, 1
      %v3849 = vrot.slane %v3813, 1
      %v3850 = vrot.slane %v3814, 1
      %v3851 = vrot.slane %v3815, 1
      %v3852 = vrot.slane %v3816, 1
      %v3853 = vrot.slane %v3817, 1
      %v3854 = vrot.slane %v3818, 1
      %v3855 = vrot.slane %v3819, 1
      %v3856 = vrot.slane %v3820, 1
      %v3857 = vrot.slane %v3821, 1
      %v3858 = vrot.slane %v3822, 1
      %v3877 = vadd.f32 %v3787, %v3841
      %v3878 = vadd.f32 %v3788, %v3842
      %v3879 = vadd.f32 %v3789, %v3843
      %v3880 = vadd.f32 %v3790, %v3844
      %v3881 = vadd.f32 %v3791, %v3845
      %v3882 = vadd.f32 %v3792, %v3846
      %v3883 = vadd.f32 %v3793, %v3847
      %v3884 = vadd.f32 %v3794, %v3848
      %v3885 = vadd.f32 %v3795, %v3849
      %v3886 = vadd.f32 %v3796, %v3850
      %v3887 = vadd.f32 %v3797, %v3851
      %v3888 = vadd.f32 %v3798, %v3852
      %v3889 = vadd.f32 %v3799, %v3853
      %v3890 = vadd.f32 %v3800, %v3854
      %v3891 = vadd.f32 %v3801, %v3855
      %v3892 = vadd.f32 %v3802, %v3856
      %v3893 = vadd.f32 %v3803, %v3857
      %v3894 = vadd.f32 %v3804, %v3858
      %v3895 = vmul.f32 %v571, 0.25
      %v3896 = vmul.f32 %v504, 0.25
      %v3897 = vmul.f32 %v534, 0.25
      %v3898 = vmul.f32 %v507, 0.25
      %v3899 = vmul.f32 %v537, 0.25
      %v3900 = vmul.f32 %v510, 0.25
      %v3901 = vmul.f32 %v540, 0.25
      %v3902 = vmul.f32 %v513, 0.25
      %v3903 = vmul.f32 %v543, 0.25
      %v3904 = vmul.f32 %v516, 0.25
      %v3905 = vmul.f32 %v546, 0.25
      %v3906 = vmul.f32 %v519, 0.25
      %v3907 = vmul.f32 %v549, 0.25
      %v3908 = vmul.f32 %v522, 0.25
      %v3909 = vmul.f32 %v552, 0.25
      %v3910 = vmul.f32 %v525, 0.25
      %v3911 = vmul.f32 %v555, 0.25
      %v3912 = vmul.f32 %v581, 0.25
      %v3913 = vmul.f32 %v571, 0.75
      %v3914 = vmul.f32 %v504, 0.75
      %v3915 = vmul.f32 %v534, 0.75
      %v3916 = vmul.f32 %v507, 0.75
      %v3917 = vmul.f32 %v537, 0.75
      %v3918 = vmul.f32 %v510, 0.75
      %v3919 = vmul.f32 %v540, 0.75
      %v3920 = vmul.f32 %v513, 0.75
      %v3921 = vmul.f32 %v543, 0.75
      %v3922 = vmul.f32 %v516, 0.75
      %v3923 = vmul.f32 %v546, 0.75
      %v3924 = vmul.f32 %v519, 0.75
      %v3925 = vmul.f32 %v549, 0.75
      %v3926 = vmul.f32 %v522, 0.75
      %v3927 = vmul.f32 %v552, 0.75
      %v3928 = vmul.f32 %v525, 0.75
      %v3929 = vmul.f32 %v555, 0.75
      %v3930 = vmul.f32 %v581, 0.75
      %v3949 = vrot.slane %v3913, 1
      %v3950 = vrot.slane %v3914, 1
      %v3951 = vrot.slane %v3915, 1
      %v3952 = vrot.slane %v3916, 1
      %v3953 = vrot.slane %v3917, 1
      %v3954 = vrot.slane %v3918, 1
      %v3955 = vrot.slane %v3919, 1
      %v3956 = vrot.slane %v3920, 1
      %v3957 = vrot.slane %v3921, 1
      %v3958 = vrot.slane %v3922, 1
      %v3959 = vrot.slane %v3923, 1
      %v3960 = vrot.slane %v3924, 1
      %v3961 = vrot.slane %v3925, 1
      %v3962 = vrot.slane %v3926, 1
      %v3963 = vrot.slane %v3927, 1
      %v3964 = vrot.slane %v3928, 1
      %v3965 = vrot.slane %v3929, 1
      %v3966 = vrot.slane %v3930, 1
      %v3985 = vadd.f32 %v3895, %v3949
      %v3986 = vadd.f32 %v3896, %v3950
      %v3987 = vadd.f32 %v3897, %v3951
      %v3988 = vadd.f32 %v3898, %v3952
      %v3989 = vadd.f32 %v3899, %v3953
      %v3990 = vadd.f32 %v3900, %v3954
      %v3991 = vadd.f32 %v3901, %v3955
      %v3992 = vadd.f32 %v3902, %v3956
      %v3993 = vadd.f32 %v3903, %v3957
      %v3994 = vadd.f32 %v3904, %v3958
      %v3995 = vadd.f32 %v3905, %v3959
      %v3996 = vadd.f32 %v3906, %v3960
      %v3997 = vadd.f32 %v3907, %v3961
      %v3998 = vadd.f32 %v3908, %v3962
      %v3999 = vadd.f32 %v3909, %v3963
      %v4000 = vadd.f32 %v3910, %v3964
      %v4001 = vadd.f32 %v3911, %v3965
      %v4002 = vadd.f32 %v3912, %v3966
      %v4019 = vrot.slane %v3878, 7
      %vm4020 = vcmask 1041409
      %v4021 = vsel %vm4020, %v4019, %v3877
      %v4022 = vrot.slane %v3879, 6
      %vm4023 = vcmask 1042434
      %v4024 = vsel %vm4023, %v4022, %v4021
      %v4025 = vrot.slane %v3880, 5
      %vm4026 = vcmask 1043459
      %v4027 = vsel %vm4026, %v4025, %v4024
      %v4028 = vrot.slane %v3881, 4
      %vm4029 = vcmask 1044484
      %v4030 = vsel %vm4029, %v4028, %v4027
      %v4031 = vrot.slane %v3882, 3
      %vm4032 = vcmask 1045509
      %v4033 = vsel %vm4032, %v4031, %v4030
      %v4034 = vrot.slane %v3883, 2
      %vm4035 = vcmask 1046534
      %v4036 = vsel %vm4035, %v4034, %v4033
      %v4037 = vrot.slane %v3884, 1
      %vm4038 = vcmask 1047559
      %v4039 = vsel %vm4038, %v4037, %v4036
      %v4040 = vrot.slane %v3886, 7
      %v4041 = vsel %vm4020, %v4040, %v3885
      %v4042 = vrot.slane %v3887, 6
      %v4043 = vsel %vm4023, %v4042, %v4041
      %v4044 = vrot.slane %v3888, 5
      %v4045 = vsel %vm4026, %v4044, %v4043
      %v4046 = vrot.slane %v3889, 4
      %v4047 = vsel %vm4029, %v4046, %v4045
      %v4048 = vrot.slane %v3890, 3
      %v4049 = vsel %vm4032, %v4048, %v4047
      %v4050 = vrot.slane %v3891, 2
      %v4051 = vsel %vm4035, %v4050, %v4049
      %v4052 = vrot.slane %v3892, 1
      %v4053 = vsel %vm4038, %v4052, %v4051
      %v4057 = vrot.slane %v3879, 7
      %v4058 = vsel %vm4020, %v4057, %v3878
      %v4059 = vrot.slane %v3880, 6
      %v4060 = vsel %vm4023, %v4059, %v4058
      %v4061 = vrot.slane %v3881, 5
      %v4062 = vsel %vm4026, %v4061, %v4060
      %v4063 = vrot.slane %v3882, 4
      %v4064 = vsel %vm4029, %v4063, %v4062
      %v4065 = vrot.slane %v3883, 3
      %v4066 = vsel %vm4032, %v4065, %v4064
      %v4067 = vrot.slane %v3884, 2
      %v4068 = vsel %vm4035, %v4067, %v4066
      %v4069 = vrot.slane %v3885, 1
      %v4070 = vsel %vm4038, %v4069, %v4068
      %v4071 = vrot.slane %v3887, 7
      %v4072 = vsel %vm4020, %v4071, %v3886
      %v4073 = vrot.slane %v3888, 6
      %v4074 = vsel %vm4023, %v4073, %v4072
      %v4075 = vrot.slane %v3889, 5
      %v4076 = vsel %vm4026, %v4075, %v4074
      %v4077 = vrot.slane %v3890, 4
      %v4078 = vsel %vm4029, %v4077, %v4076
      %v4079 = vrot.slane %v3891, 3
      %v4080 = vsel %vm4032, %v4079, %v4078
      %v4081 = vrot.slane %v3892, 2
      %v4082 = vsel %vm4035, %v4081, %v4080
      %v4083 = vrot.slane %v3893, 1
      %v4084 = vsel %vm4038, %v4083, %v4082
      %4085 = vrot.lane.b32.xlu0 %v4070, 4
      %v4086 = vpop.permute.xlu0 %4085
      %4087 = vrot.lane.b32.xlu0 %v4084, 4
      %v4088 = vpop.permute.xlu0 %4087
      %v4092 = vrot.slane %v3880, 7
      %v4093 = vsel %vm4020, %v4092, %v3879
      %v4094 = vrot.slane %v3881, 6
      %v4095 = vsel %vm4023, %v4094, %v4093
      %v4096 = vrot.slane %v3882, 5
      %v4097 = vsel %vm4026, %v4096, %v4095
      %v4098 = vrot.slane %v3883, 4
      %v4099 = vsel %vm4029, %v4098, %v4097
      %v4100 = vrot.slane %v3884, 3
      %v4101 = vsel %vm4032, %v4100, %v4099
      %v4102 = vrot.slane %v3885, 2
      %v4103 = vsel %vm4035, %v4102, %v4101
      %v4104 = vrot.slane %v3886, 1
      %v4105 = vsel %vm4038, %v4104, %v4103
      %v4106 = vrot.slane %v3888, 7
      %v4107 = vsel %vm4020, %v4106, %v3887
      %v4108 = vrot.slane %v3889, 6
      %v4109 = vsel %vm4023, %v4108, %v4107
      %v4110 = vrot.slane %v3890, 5
      %v4111 = vsel %vm4026, %v4110, %v4109
      %v4112 = vrot.slane %v3891, 4
      %v4113 = vsel %vm4029, %v4112, %v4111
      %v4114 = vrot.slane %v3892, 3
      %v4115 = vsel %vm4032, %v4114, %v4113
      %v4116 = vrot.slane %v3893, 2
      %v4117 = vsel %vm4035, %v4116, %v4115
      %v4118 = vrot.slane %v3894, 1
      %v4119 = vsel %vm4038, %v4118, %v4117
      %4120 = vrot.lane.b32.xlu0 %v4105, 8
      %v4121 = vpop.permute.xlu0 %4120
      %4122 = vrot.lane.b32.xlu0 %v4119, 8
      %v4123 = vpop.permute.xlu0 %4122
      %v4142 = vrot.slane %v3986, 7
      %v4143 = vsel %vm4020, %v4142, %v3985
      %v4144 = vrot.slane %v3987, 6
      %v4145 = vsel %vm4023, %v4144, %v4143
      %v4146 = vrot.slane %v3988, 5
      %v4147 = vsel %vm4026, %v4146, %v4145
      %v4148 = vrot.slane %v3989, 4
      %v4149 = vsel %vm4029, %v4148, %v4147
      %v4150 = vrot.slane %v3990, 3
      %v4151 = vsel %vm4032, %v4150, %v4149
      %v4152 = vrot.slane %v3991, 2
      %v4153 = vsel %vm4035, %v4152, %v4151
      %v4154 = vrot.slane %v3992, 1
      %v4155 = vsel %vm4038, %v4154, %v4153
      %v4156 = vrot.slane %v3994, 7
      %v4157 = vsel %vm4020, %v4156, %v3993
      %v4158 = vrot.slane %v3995, 6
      %v4159 = vsel %vm4023, %v4158, %v4157
      %v4160 = vrot.slane %v3996, 5
      %v4161 = vsel %vm4026, %v4160, %v4159
      %v4162 = vrot.slane %v3997, 4
      %v4163 = vsel %vm4029, %v4162, %v4161
      %v4164 = vrot.slane %v3998, 3
      %v4165 = vsel %vm4032, %v4164, %v4163
      %v4166 = vrot.slane %v3999, 2
      %v4167 = vsel %vm4035, %v4166, %v4165
      %v4168 = vrot.slane %v4000, 1
      %v4169 = vsel %vm4038, %v4168, %v4167
      %4170 = vrot.lane.b32.xlu0 %v4155, 12
      %v4171 = vpop.permute.xlu0 %4170
      %4172 = vrot.lane.b32.xlu0 %v4169, 12
      %v4173 = vpop.permute.xlu0 %4172
      %v4177 = vrot.slane %v3987, 7
      %v4178 = vsel %vm4020, %v4177, %v3986
      %v4179 = vrot.slane %v3988, 6
      %v4180 = vsel %vm4023, %v4179, %v4178
      %v4181 = vrot.slane %v3989, 5
      %v4182 = vsel %vm4026, %v4181, %v4180
      %v4183 = vrot.slane %v3990, 4
      %v4184 = vsel %vm4029, %v4183, %v4182
      %v4185 = vrot.slane %v3991, 3
      %v4186 = vsel %vm4032, %v4185, %v4184
      %v4187 = vrot.slane %v3992, 2
      %v4188 = vsel %vm4035, %v4187, %v4186
      %v4189 = vrot.slane %v3993, 1
      %v4190 = vsel %vm4038, %v4189, %v4188
      %v4191 = vrot.slane %v3995, 7
      %v4192 = vsel %vm4020, %v4191, %v3994
      %v4193 = vrot.slane %v3996, 6
      %v4194 = vsel %vm4023, %v4193, %v4192
      %v4195 = vrot.slane %v3997, 5
      %v4196 = vsel %vm4026, %v4195, %v4194
      %v4197 = vrot.slane %v3998, 4
      %v4198 = vsel %vm4029, %v4197, %v4196
      %v4199 = vrot.slane %v3999, 3
      %v4200 = vsel %vm4032, %v4199, %v4198
      %v4201 = vrot.slane %v4000, 2
      %v4202 = vsel %vm4035, %v4201, %v4200
      %v4203 = vrot.slane %v4001, 1
      %v4204 = vsel %vm4038, %v4203, %v4202
      %4205 = vrot.lane.b32.xlu0 %v4190, 16
      %v4206 = vpop.permute.xlu0 %4205
      %4207 = vrot.lane.b32.xlu0 %v4204, 16
      %v4208 = vpop.permute.xlu0 %4207
      %v4212 = vrot.slane %v3988, 7
      %v4213 = vsel %vm4020, %v4212, %v3987
      %v4214 = vrot.slane %v3989, 6
      %v4215 = vsel %vm4023, %v4214, %v4213
      %v4216 = vrot.slane %v3990, 5
      %v4217 = vsel %vm4026, %v4216, %v4215
      %v4218 = vrot.slane %v3991, 4
      %v4219 = vsel %vm4029, %v4218, %v4217
      %v4220 = vrot.slane %v3992, 3
      %v4221 = vsel %vm4032, %v4220, %v4219
      %v4222 = vrot.slane %v3993, 2
      %v4223 = vsel %vm4035, %v4222, %v4221
      %v4224 = vrot.slane %v3994, 1
      %v4225 = vsel %vm4038, %v4224, %v4223
      %v4226 = vrot.slane %v3996, 7
      %v4227 = vsel %vm4020, %v4226, %v3995
      %v4228 = vrot.slane %v3997, 6
      %v4229 = vsel %vm4023, %v4228, %v4227
      %v4230 = vrot.slane %v3998, 5
      %v4231 = vsel %vm4026, %v4230, %v4229
      %v4232 = vrot.slane %v3999, 4
      %v4233 = vsel %vm4029, %v4232, %v4231
      %v4234 = vrot.slane %v4000, 3
      %v4235 = vsel %vm4032, %v4234, %v4233
      %v4236 = vrot.slane %v4001, 2
      %v4237 = vsel %vm4035, %v4236, %v4235
      %v4238 = vrot.slane %v4002, 1
      %v4239 = vsel %vm4038, %v4238, %v4237
      %4240 = vrot.lane.b32.xlu0 %v4225, 20
      %v4241 = vpop.permute.xlu0 %4240
      %4242 = vrot.lane.b32.xlu0 %v4239, 20
      %v4243 = vpop.permute.xlu0 %4242
      %v4246 = vsel %vm1586, %v4039, %v4086
      %v4247 = vsel %vm1586, %v4053, %v4088
      %v4248 = vsel %vm1619, %v4246, %v4121
      %v4249 = vsel %vm1619, %v4247, %v4123
      %v4250 = vsel %vm1652, %v4248, %v4171
      %v4251 = vsel %vm1652, %v4249, %v4173
      %v4252 = vsel %vm1685, %v4250, %v4206
      %v4253 = vsel %vm1685, %v4251, %v4208
      %v4254 = vsel %vm1718, %v4252, %v4241
      %v4255 = vsel %vm1718, %v4253, %v4243
      %v4256 = vld [vmem:[%s4] sm:$0xff]
      %v4257 = vld [vmem:[%s4 + $0x8] sm:$0xff]
      %v4258 = vld [vmem:[%s4 + $0x10] sm:$0xff]
      %v4260 = vsel %vm1751, %v4254, 0
      %v4263 = vsel %vm1751, %v4255, 0
      %4265 = vmatprep.subr.mxu0 0.0
      %v4266 = vand.u32 %v4256, 4294901760
      %4267 = vmatpush1.msra.mxu0 %v4266
      %4268 = vmatprep.subr.mxu0 0.0
      %v4269 = vand.u32 %v4257, 4294901760
      %4270 = vmatpush1.msra.mxu0 %v4269
      %4271 = vmatprep.subr.mxu0 0.0
      %v4272 = vand.u32 %v4258, 4294901760
      %4273 = vmatpush1.msra.mxu0 %v4272
      %4274 = vmatprep.subr.mxu0 0.0
      %4275 = vmatpush1.msra.mxu0 0.0
      %4276 = vmatprep.subr.mxu0 0.0
      %4277 = vmatpush1.msra.mxu0 0.0
      %4278 = vmatprep.subr.mxu0 0.0
      %4279 = vmatpush1.msra.mxu0 0.0
      %4280 = vmatprep.subr.mxu0 0.0
      %4281 = vmatpush1.msra.mxu0 0.0
      %4282 = vmatprep.subr.mxu0 0.0
      %4283 = vmatpush1.msra.mxu0 0.0
      %4284 = vmatprep.subr.mxu0 0.0
      %4285 = vmatpush1.msra.mxu0 0.0
      %4286 = vmatprep.subr.mxu0 0.0
      %4287 = vmatpush1.msra.mxu0 0.0
      %4288 = vmatprep.subr.mxu0 0.0
      %4289 = vmatpush1.msra.mxu0 0.0
      %4290 = vmatprep.subr.mxu0 0.0
      %4291 = vmatpush1.msra.mxu0 0.0
      %4292 = vmatprep.subr.mxu0 0.0
      %4293 = vmatpush1.msra.mxu0 0.0
      %4294 = vmatprep.subr.mxu0 0.0
      %4295 = vmatpush1.msra.mxu0 0.0
      %4296 = vmatprep.subr.mxu0 0.0
      %4297 = vmatpush1.msra.mxu0 0.0
      %4298 = vmatprep.subr.mxu0 0.0
      %4299 = vmatpush1.msra.mxu0 0.0
      %4300 = vmatprep.subr.mxu0 0.0
      %4301 = vmatpush1.msra.mxu0 0.0
      %4302 = vmatprep.subr.mxu0 0.0
      %4303 = vmatpush1.msra.mxu0 0.0
      %4304 = vmatprep.subr.mxu0 0.0
      %4305 = vmatpush1.msra.mxu0 0.0
      %4306 = vmatprep.subr.mxu0 0.0
      %4307 = vmatpush1.msra.mxu0 0.0
      %4308 = vmatprep.subr.mxu0 0.0
      %4309 = vmatpush1.msra.mxu0 0.0
      %4310 = vmatprep.subr.mxu0 0.0
      %4311 = vmatpush1.msra.mxu0 0.0
      %4312 = vmatprep.subr.mxu0 0.0
      %4313 = vmatpush1.msra.mxu0 0.0
      %4314 = vmatprep.subr.mxu0 0.0
      %4315 = vmatpush1.msra.mxu0 0.0
      %4316 = vmatprep.subr.mxu0 0.0
      %4317 = vmatpush1.msra.mxu0 0.0
      %4318 = vmatprep.subr.mxu0 0.0
      %4319 = vmatpush1.msra.mxu0 0.0
      %4320 = vmatprep.subr.mxu0 0.0
      %4321 = vmatpush1.msra.mxu0 0.0
      %4322 = vmatprep.subr.mxu0 0.0
      %4323 = vmatpush1.msra.mxu0 0.0
      %4324 = vmatprep.subr.mxu0 0.0
      %4325 = vmatpush1.msra.mxu0 0.0
      %4326 = vmatprep.subr.mxu0 0.0
      %4327 = vmatpush1.msra.mxu0 0.0
      %4328 = vmatprep.subr.mxu0 0.0
      %4329 = vmatpush1.msra.mxu0 0.0
      %4330 = vmatprep.subr.mxu0 0.0
      %4331 = vmatpush1.msra.mxu0 0.0
      %4332 = vmatprep.mubr.f32.mxu0 0.0
      %v4333 = vand.u32 %v4260, 4294901760
      %v4334 = vsub.f32 %v4260, %v4333
      %v4335 = vand.u32 %v4334, 4294901760
      %v4336 = vsub.f32 %v4334, %v4335
      %v4337 = vand.u32 %v4336, 4294901760
      %4338 = vmatmul.mubr.f32.gmra.mrb[0].mxu0 %v4337
      %v4339 = vpop.f32.mrb[0].mxu0
      %v4340 = vadd.f32 0.0, %v4339
      %v4341 = vpop.f32.mrb[0].mxu0
      %4342 = vmatprep.mubr.f32.mxu0 0.0
      %v4343 = vand.u32 %v4263, 4294901760
      %v4344 = vsub.f32 %v4263, %v4343
      %v4345 = vand.u32 %v4344, 4294901760
      %v4346 = vsub.f32 %v4344, %v4345
      %v4347 = vand.u32 %v4346, 4294901760
      %4348 = vmatmul.mubr.f32.gmra.mrb[0].mxu0 %v4347
      %v4349 = vpop.f32.mrb[0].mxu0
      %v4350 = vadd.f32 0.0, %v4349
      %v4351 = vpop.f32.mrb[0].mxu0
      %4352 = vdwg.mxu0
      %4353 = vmatprep.subr.mxu0 0.0
      %v4354 = vand.u32 %v4256, 4294901760
      %v4355 = vsub.f32 %v4256, %v4354
      %v4356 = vand.u32 %v4355, 4294901760
      %v4357 = vsub.f32 %v4355, %v4356
      %v4358 = vand.u32 %v4357, 4294901760
      %4359 = vmatpush1.msra.mxu0 %v4358
      %4360 = vmatprep.subr.mxu0 0.0
      %v4361 = vand.u32 %v4257, 4294901760
      %v4362 = vsub.f32 %v4257, %v4361
      %v4363 = vand.u32 %v4362, 4294901760
      %v4364 = vsub.f32 %v4362, %v4363
      %v4365 = vand.u32 %v4364, 4294901760
      %4366 = vmatpush1.msra.mxu0 %v4365
      %4367 = vmatprep.subr.mxu0 0.0
      %v4368 = vand.u32 %v4258, 4294901760
      %v4369 = vsub.f32 %v4258, %v4368
      %v4370 = vand.u32 %v4369, 4294901760
      %v4371 = vsub.f32 %v4369, %v4370
      %v4372 = vand.u32 %v4371, 4294901760
      %4373 = vmatpush1.msra.mxu0 %v4372
      %4374 = vmatprep.subr.mxu0 0.0
      %4375 = vmatpush1.msra.mxu0 0.0
      %4376 = vmatprep.subr.mxu0 0.0
      %4377 = vmatpush1.msra.mxu0 0.0
      %4378 = vmatprep.subr.mxu0 0.0
      %4379 = vmatpush1.msra.mxu0 0.0
      %4380 = vmatprep.subr.mxu0 0.0
      %4381 = vmatpush1.msra.mxu0 0.0
      %4382 = vmatprep.subr.mxu0 0.0
      %4383 = vmatpush1.msra.mxu0 0.0
      %4384 = vmatprep.subr.mxu0 0.0
      %4385 = vmatpush1.msra.mxu0 0.0
      %4386 = vmatprep.subr.mxu0 0.0
      %4387 = vmatpush1.msra.mxu0 0.0
      %4388 = vmatprep.subr.mxu0 0.0
      %4389 = vmatpush1.msra.mxu0 0.0
      %4390 = vmatprep.subr.mxu0 0.0
      %4391 = vmatpush1.msra.mxu0 0.0
      %4392 = vmatprep.subr.mxu0 0.0
      %4393 = vmatpush1.msra.mxu0 0.0
      %4394 = vmatprep.subr.mxu0 0.0
      %4395 = vmatpush1.msra.mxu0 0.0
      %4396 = vmatprep.subr.mxu0 0.0
      %4397 = vmatpush1.msra.mxu0 0.0
      %4398 = vmatprep.subr.mxu0 0.0
      %4399 = vmatpush1.msra.mxu0 0.0
      %4400 = vmatprep.subr.mxu0 0.0
      %4401 = vmatpush1.msra.mxu0 0.0
      %4402 = vmatprep.subr.mxu0 0.0
      %4403 = vmatpush1.msra.mxu0 0.0
      %4404 = vmatprep.subr.mxu0 0.0
      %4405 = vmatpush1.msra.mxu0 0.0
      %4406 = vmatprep.subr.mxu0 0.0
      %4407 = vmatpush1.msra.mxu0 0.0
      %4408 = vmatprep.subr.mxu0 0.0
      %4409 = vmatpush1.msra.mxu0 0.0
      %4410 = vmatprep.subr.mxu0 0.0
      %4411 = vmatpush1.msra.mxu0 0.0
      %4412 = vmatprep.subr.mxu0 0.0
      %4413 = vmatpush1.msra.mxu0 0.0
      %4414 = vmatprep.subr.mxu0 0.0
      %4415 = vmatpush1.msra.mxu0 0.0
      %4416 = vmatprep.subr.mxu0 0.0
      %4417 = vmatpush1.msra.mxu0 0.0
      %4418 = vmatprep.subr.mxu0 0.0
      %4419 = vmatpush1.msra.mxu0 0.0
      %4420 = vmatprep.subr.mxu0 0.0
      %4421 = vmatpush1.msra.mxu0 0.0
      %4422 = vmatprep.subr.mxu0 0.0
      %4423 = vmatpush1.msra.mxu0 0.0
      %4424 = vmatprep.subr.mxu0 0.0
      %4425 = vmatpush1.msra.mxu0 0.0
      %4426 = vmatprep.subr.mxu0 0.0
      %4427 = vmatpush1.msra.mxu0 0.0
      %4428 = vmatprep.subr.mxu0 0.0
      %4429 = vmatpush1.msra.mxu0 0.0
      %4430 = vmatprep.subr.mxu0 0.0
      %4431 = vmatpush1.msra.mxu0 0.0
      %4432 = vmatprep.mubr.f32.mxu0 0.0
      %v4433 = vand.u32 %v4260, 4294901760
      %4434 = vmatmul.mubr.f32.gmra.mrb[0].mxu0 %v4433
      %v4435 = vpop.f32.mrb[0].mxu0
      %v4436 = vadd.f32 %v4340, %v4435
      %v4437 = vpop.f32.mrb[0].mxu0
      %4438 = vmatprep.mubr.f32.mxu0 0.0
      %v4439 = vand.u32 %v4263, 4294901760
      %4440 = vmatmul.mubr.f32.gmra.mrb[0].mxu0 %v4439
      %v4441 = vpop.f32.mrb[0].mxu0
      %v4442 = vadd.f32 %v4350, %v4441
      %v4443 = vpop.f32.mrb[0].mxu0
      %4444 = vdwg.mxu0
      %4445 = vmatprep.subr.mxu0 0.0
      %v4446 = vand.u32 %v4256, 4294901760
      %v4447 = vsub.f32 %v4256, %v4446
      %4448 = vmatpush1.msra.mxu0 %v4447
      %4449 = vmatprep.subr.mxu0 0.0
      %v4450 = vand.u32 %v4257, 4294901760
      %v4451 = vsub.f32 %v4257, %v4450
      %4452 = vmatpush1.msra.mxu0 %v4451
      %4453 = vmatprep.subr.mxu0 0.0
      %v4454 = vand.u32 %v4258, 4294901760
      %v4455 = vsub.f32 %v4258, %v4454
      %4456 = vmatpush1.msra.mxu0 %v4455
      %4457 = vmatprep.subr.mxu0 0.0
      %4458 = vmatpush1.msra.mxu0 0.0
      %4459 = vmatprep.subr.mxu0 0.0
      %4460 = vmatpush1.msra.mxu0 0.0
      %4461 = vmatprep.subr.mxu0 0.0
      %4462 = vmatpush1.msra.mxu0 0.0
      %4463 = vmatprep.subr.mxu0 0.0
      %4464 = vmatpush1.msra.mxu0 0.0
      %4465 = vmatprep.subr.mxu0 0.0
      %4466 = vmatpush1.msra.mxu0 0.0
      %4467 = vmatprep.subr.mxu0 0.0
      %4468 = vmatpush1.msra.mxu0 0.0
      %4469 = vmatprep.subr.mxu0 0.0
      %4470 = vmatpush1.msra.mxu0 0.0
      %4471 = vmatprep.subr.mxu0 0.0
      %4472 = vmatpush1.msra.mxu0 0.0
      %4473 = vmatprep.subr.mxu0 0.0
      %4474 = vmatpush1.msra.mxu0 0.0
      %4475 = vmatprep.subr.mxu0 0.0
      %4476 = vmatpush1.msra.mxu0 0.0
      %4477 = vmatprep.subr.mxu0 0.0
      %4478 = vmatpush1.msra.mxu0 0.0
      %4479 = vmatprep.subr.mxu0 0.0
      %4480 = vmatpush1.msra.mxu0 0.0
      %4481 = vmatprep.subr.mxu0 0.0
      %4482 = vmatpush1.msra.mxu0 0.0
      %4483 = vmatprep.subr.mxu0 0.0
      %4484 = vmatpush1.msra.mxu0 0.0
      %4485 = vmatprep.subr.mxu0 0.0
      %4486 = vmatpush1.msra.mxu0 0.0
      %4487 = vmatprep.subr.mxu0 0.0
      %4488 = vmatpush1.msra.mxu0 0.0
      %4489 = vmatprep.subr.mxu0 0.0
      %4490 = vmatpush1.msra.mxu0 0.0
      %4491 = vmatprep.subr.mxu0 0.0
      %4492 = vmatpush1.msra.mxu0 0.0
      %4493 = vmatprep.subr.mxu0 0.0
      %4494 = vmatpush1.msra.mxu0 0.0
      %4495 = vmatprep.subr.mxu0 0.0
      %4496 = vmatpush1.msra.mxu0 0.0
      %4497 = vmatprep.subr.mxu0 0.0
      %4498 = vmatpush1.msra.mxu0 0.0
      %4499 = vmatprep.subr.mxu0 0.0
      %4500 = vmatpush1.msra.mxu0 0.0
      %4501 = vmatprep.subr.mxu0 0.0
      %4502 = vmatpush1.msra.mxu0 0.0
      %4503 = vmatprep.subr.mxu0 0.0
      %4504 = vmatpush1.msra.mxu0 0.0
      %4505 = vmatprep.subr.mxu0 0.0
      %4506 = vmatpush1.msra.mxu0 0.0
      %4507 = vmatprep.subr.mxu0 0.0
      %4508 = vmatpush1.msra.mxu0 0.0
      %4509 = vmatprep.subr.mxu0 0.0
      %4510 = vmatpush1.msra.mxu0 0.0
      %4511 = vmatprep.subr.mxu0 0.0
      %4512 = vmatpush1.msra.mxu0 0.0
      %4513 = vmatprep.subr.mxu0 0.0
      %4514 = vmatpush1.msra.mxu0 0.0
      %4515 = vmatprep.mubr.f32.mxu0 0.0
      %v4516 = vand.u32 %v4260, 4294901760
      %v4517 = vsub.f32 %v4260, %v4516
      %4518 = vmatmul.mubr.f32.gmra.mrb[0].mxu0 %v4517
      %v4519 = vpop.f32.mrb[0].mxu0
      %v4520 = vadd.f32 %v4436, %v4519
      %v4521 = vpop.f32.mrb[0].mxu0
      %4522 = vmatprep.mubr.f32.mxu0 0.0
      %v4523 = vand.u32 %v4263, 4294901760
      %v4524 = vsub.f32 %v4263, %v4523
      %4525 = vmatmul.mubr.f32.gmra.mrb[0].mxu0 %v4524
      %v4526 = vpop.f32.mrb[0].mxu0
      %v4527 = vadd.f32 %v4442, %v4526
      %v4528 = vpop.f32.mrb[0].mxu0
      %4529 = vdwg.mxu0
      %4530 = vmatprep.subr.mxu0 0.0
      %v4531 = vand.u32 %v4256, 4294901760
      %4532 = vmatpush1.msra.mxu0 %v4531
      %4533 = vmatprep.subr.mxu0 0.0
      %v4534 = vand.u32 %v4257, 4294901760
      %4535 = vmatpush1.msra.mxu0 %v4534
      %4536 = vmatprep.subr.mxu0 0.0
      %v4537 = vand.u32 %v4258, 4294901760
      %4538 = vmatpush1.msra.mxu0 %v4537
      %4539 = vmatprep.subr.mxu0 0.0
      %4540 = vmatpush1.msra.mxu0 0.0
      %4541 = vmatprep.subr.mxu0 0.0
      %4542 = vmatpush1.msra.mxu0 0.0
      %4543 = vmatprep.subr.mxu0 0.0
      %4544 = vmatpush1.msra.mxu0 0.0
      %4545 = vmatprep.subr.mxu0 0.0
      %4546 = vmatpush1.msra.mxu0 0.0
      %4547 = vmatprep.subr.mxu0 0.0
      %4548 = vmatpush1.msra.mxu0 0.0
      %4549 = vmatprep.subr.mxu0 0.0
      %4550 = vmatpush1.msra.mxu0 0.0
      %4551 = vmatprep.subr.mxu0 0.0
      %4552 = vmatpush1.msra.mxu0 0.0
      %4553 = vmatprep.subr.mxu0 0.0
      %4554 = vmatpush1.msra.mxu0 0.0
      %4555 = vmatprep.subr.mxu0 0.0
      %4556 = vmatpush1.msra.mxu0 0.0
      %4557 = vmatprep.subr.mxu0 0.0
      %4558 = vmatpush1.msra.mxu0 0.0
      %4559 = vmatprep.subr.mxu0 0.0
      %4560 = vmatpush1.msra.mxu0 0.0
      %4561 = vmatprep.subr.mxu0 0.0
      %4562 = vmatpush1.msra.mxu0 0.0
      %4563 = vmatprep.subr.mxu0 0.0
      %4564 = vmatpush1.msra.mxu0 0.0
      %4565 = vmatprep.subr.mxu0 0.0
      %4566 = vmatpush1.msra.mxu0 0.0
      %4567 = vmatprep.subr.mxu0 0.0
      %4568 = vmatpush1.msra.mxu0 0.0
      %4569 = vmatprep.subr.mxu0 0.0
      %4570 = vmatpush1.msra.mxu0 0.0
      %4571 = vmatprep.subr.mxu0 0.0
      %4572 = vmatpush1.msra.mxu0 0.0
      %4573 = vmatprep.subr.mxu0 0.0
      %4574 = vmatpush1.msra.mxu0 0.0
      %4575 = vmatprep.subr.mxu0 0.0
      %4576 = vmatpush1.msra.mxu0 0.0
      %4577 = vmatprep.subr.mxu0 0.0
      %4578 = vmatpush1.msra.mxu0 0.0
      %4579 = vmatprep.subr.mxu0 0.0
      %4580 = vmatpush1.msra.mxu0 0.0
      %4581 = vmatprep.subr.mxu0 0.0
      %4582 = vmatpush1.msra.mxu0 0.0
      %4583 = vmatprep.subr.mxu0 0.0
      %4584 = vmatpush1.msra.mxu0 0.0
      %4585 = vmatprep.subr.mxu0 0.0
      %4586 = vmatpush1.msra.mxu0 0.0
      %4587 = vmatprep.subr.mxu0 0.0
      %4588 = vmatpush1.msra.mxu0 0.0
      %4589 = vmatprep.subr.mxu0 0.0
      %4590 = vmatpush1.msra.mxu0 0.0
      %4591 = vmatprep.subr.mxu0 0.0
      %4592 = vmatpush1.msra.mxu0 0.0
      %4593 = vmatprep.subr.mxu0 0.0
      %4594 = vmatpush1.msra.mxu0 0.0
      %4595 = vmatprep.subr.mxu0 0.0
      %4596 = vmatpush1.msra.mxu0 0.0
      %4597 = vmatprep.mubr.f32.mxu0 0.0
      %v4598 = vand.u32 %v4260, 4294901760
      %v4599 = vsub.f32 %v4260, %v4598
      %v4600 = vand.u32 %v4599, 4294901760
      %4601 = vmatmul.mubr.f32.gmra.mrb[0].mxu0 %v4600
      %v4602 = vpop.f32.mrb[0].mxu0
      %v4603 = vadd.f32 %v4520, %v4602
      %v4604 = vpop.f32.mrb[0].mxu0
      %4605 = vmatprep.mubr.f32.mxu0 0.0
      %v4606 = vand.u32 %v4263, 4294901760
      %v4607 = vsub.f32 %v4263, %v4606
      %v4608 = vand.u32 %v4607, 4294901760
      %4609 = vmatmul.mubr.f32.gmra.mrb[0].mxu0 %v4608
      %v4610 = vpop.f32.mrb[0].mxu0
      %v4611 = vadd.f32 %v4527, %v4610
      %v4612 = vpop.f32.mrb[0].mxu0
      %4613 = vdwg.mxu0
      %4614 = vmatprep.subr.mxu0 0.0
      %v4615 = vand.u32 %v4256, 4294901760
      %v4616 = vsub.f32 %v4256, %v4615
      %v4617 = vand.u32 %v4616, 4294901760
      %4618 = vmatpush1.msra.mxu0 %v4617
      %4619 = vmatprep.subr.mxu0 0.0
      %v4620 = vand.u32 %v4257, 4294901760
      %v4621 = vsub.f32 %v4257, %v4620
      %v4622 = vand.u32 %v4621, 4294901760
      %4623 = vmatpush1.msra.mxu0 %v4622
      %4624 = vmatprep.subr.mxu0 0.0
      %v4625 = vand.u32 %v4258, 4294901760
      %v4626 = vsub.f32 %v4258, %v4625
      %v4627 = vand.u32 %v4626, 4294901760
      %4628 = vmatpush1.msra.mxu0 %v4627
      %4629 = vmatprep.subr.mxu0 0.0
      %4630 = vmatpush1.msra.mxu0 0.0
      %4631 = vmatprep.subr.mxu0 0.0
      %4632 = vmatpush1.msra.mxu0 0.0
      %4633 = vmatprep.subr.mxu0 0.0
      %4634 = vmatpush1.msra.mxu0 0.0
      %4635 = vmatprep.subr.mxu0 0.0
      %4636 = vmatpush1.msra.mxu0 0.0
      %4637 = vmatprep.subr.mxu0 0.0
      %4638 = vmatpush1.msra.mxu0 0.0
      %4639 = vmatprep.subr.mxu0 0.0
      %4640 = vmatpush1.msra.mxu0 0.0
      %4641 = vmatprep.subr.mxu0 0.0
      %4642 = vmatpush1.msra.mxu0 0.0
      %4643 = vmatprep.subr.mxu0 0.0
      %4644 = vmatpush1.msra.mxu0 0.0
      %4645 = vmatprep.subr.mxu0 0.0
      %4646 = vmatpush1.msra.mxu0 0.0
      %4647 = vmatprep.subr.mxu0 0.0
      %4648 = vmatpush1.msra.mxu0 0.0
      %4649 = vmatprep.subr.mxu0 0.0
      %4650 = vmatpush1.msra.mxu0 0.0
      %4651 = vmatprep.subr.mxu0 0.0
      %4652 = vmatpush1.msra.mxu0 0.0
      %4653 = vmatprep.subr.mxu0 0.0
      %4654 = vmatpush1.msra.mxu0 0.0
      %4655 = vmatprep.subr.mxu0 0.0
      %4656 = vmatpush1.msra.mxu0 0.0
      %4657 = vmatprep.subr.mxu0 0.0
      %4658 = vmatpush1.msra.mxu0 0.0
      %4659 = vmatprep.subr.mxu0 0.0
      %4660 = vmatpush1.msra.mxu0 0.0
      %4661 = vmatprep.subr.mxu0 0.0
      %4662 = vmatpush1.msra.mxu0 0.0
      %4663 = vmatprep.subr.mxu0 0.0
      %4664 = vmatpush1.msra.mxu0 0.0
      %4665 = vmatprep.subr.mxu0 0.0
      %4666 = vmatpush1.msra.mxu0 0.0
      %4667 = vmatprep.subr.mxu0 0.0
      %4668 = vmatpush1.msra.mxu0 0.0
      %4669 = vmatprep.subr.mxu0 0.0
      %4670 = vmatpush1.msra.mxu0 0.0
      %4671 = vmatprep.subr.mxu0 0.0
      %4672 = vmatpush1.msra.mxu0 0.0
      %4673 = vmatprep.subr.mxu0 0.0
      %4674 = vmatpush1.msra.mxu0 0.0
      %4675 = vmatprep.subr.mxu0 0.0
      %4676 = vmatpush1.msra.mxu0 0.0
      %4677 = vmatprep.subr.mxu0 0.0
      %4678 = vmatpush1.msra.mxu0 0.0
      %4679 = vmatprep.subr.mxu0 0.0
      %4680 = vmatpush1.msra.mxu0 0.0
      %4681 = vmatprep.subr.mxu0 0.0
      %4682 = vmatpush1.msra.mxu0 0.0
      %4683 = vmatprep.subr.mxu0 0.0
      %4684 = vmatpush1.msra.mxu0 0.0
      %4685 = vmatprep.subr.mxu0 0.0
      %4686 = vmatpush1.msra.mxu0 0.0
      %4687 = vmatprep.mubr.f32.mxu0 0.0
      %v4688 = vand.u32 %v4260, 4294901760
      %4689 = vmatmul.mubr.f32.gmra.mrb[0].mxu0 %v4688
      %v4690 = vpop.f32.mrb[0].mxu0
      %v4691 = vadd.f32 %v4603, %v4690
      %v4692 = vpop.f32.mrb[0].mxu0
      %4693 = vmatprep.mubr.f32.mxu0 0.0
      %v4694 = vand.u32 %v4263, 4294901760
      %4695 = vmatmul.mubr.f32.gmra.mrb[0].mxu0 %v4694
      %v4696 = vpop.f32.mrb[0].mxu0
      %v4697 = vadd.f32 %v4611, %v4696
      %v4698 = vpop.f32.mrb[0].mxu0
      %4699 = vdwg.mxu0
      %4700 = vmatprep.subr.mxu0 0.0
      %v4701 = vand.u32 %v4256, 4294901760
      %4702 = vmatpush1.msra.mxu0 %v4701
      %4703 = vmatprep.subr.mxu0 0.0
      %v4704 = vand.u32 %v4257, 4294901760
      %4705 = vmatpush1.msra.mxu0 %v4704
      %4706 = vmatprep.subr.mxu0 0.0
      %v4707 = vand.u32 %v4258, 4294901760
      %4708 = vmatpush1.msra.mxu0 %v4707
      %4709 = vmatprep.subr.mxu0 0.0
      %4710 = vmatpush1.msra.mxu0 0.0
      %4711 = vmatprep.subr.mxu0 0.0
      %4712 = vmatpush1.msra.mxu0 0.0
      %4713 = vmatprep.subr.mxu0 0.0
      %4714 = vmatpush1.msra.mxu0 0.0
      %4715 = vmatprep.subr.mxu0 0.0
      %4716 = vmatpush1.msra.mxu0 0.0
      %4717 = vmatprep.subr.mxu0 0.0
      %4718 = vmatpush1.msra.mxu0 0.0
      %4719 = vmatprep.subr.mxu0 0.0
      %4720 = vmatpush1.msra.mxu0 0.0
      %4721 = vmatprep.subr.mxu0 0.0
      %4722 = vmatpush1.msra.mxu0 0.0
      %4723 = vmatprep.subr.mxu0 0.0
      %4724 = vmatpush1.msra.mxu0 0.0
      %4725 = vmatprep.subr.mxu0 0.0
      %4726 = vmatpush1.msra.mxu0 0.0
      %4727 = vmatprep.subr.mxu0 0.0
      %4728 = vmatpush1.msra.mxu0 0.0
      %4729 = vmatprep.subr.mxu0 0.0
      %4730 = vmatpush1.msra.mxu0 0.0
      %4731 = vmatprep.subr.mxu0 0.0
      %4732 = vmatpush1.msra.mxu0 0.0
      %4733 = vmatprep.subr.mxu0 0.0
      %4734 = vmatpush1.msra.mxu0 0.0
      %4735 = vmatprep.subr.mxu0 0.0
      %4736 = vmatpush1.msra.mxu0 0.0
      %4737 = vmatprep.subr.mxu0 0.0
      %4738 = vmatpush1.msra.mxu0 0.0
      %4739 = vmatprep.subr.mxu0 0.0
      %4740 = vmatpush1.msra.mxu0 0.0
      %4741 = vmatprep.subr.mxu0 0.0
      %4742 = vmatpush1.msra.mxu0 0.0
      %4743 = vmatprep.subr.mxu0 0.0
      %4744 = vmatpush1.msra.mxu0 0.0
      %4745 = vmatprep.subr.mxu0 0.0
      %4746 = vmatpush1.msra.mxu0 0.0
      %4747 = vmatprep.subr.mxu0 0.0
      %4748 = vmatpush1.msra.mxu0 0.0
      %4749 = vmatprep.subr.mxu0 0.0
      %4750 = vmatpush1.msra.mxu0 0.0
      %4751 = vmatprep.subr.mxu0 0.0
      %4752 = vmatpush1.msra.mxu0 0.0
      %4753 = vmatprep.subr.mxu0 0.0
      %4754 = vmatpush1.msra.mxu0 0.0
      %4755 = vmatprep.subr.mxu0 0.0
      %4756 = vmatpush1.msra.mxu0 0.0
      %4757 = vmatprep.subr.mxu0 0.0
      %4758 = vmatpush1.msra.mxu0 0.0
      %4759 = vmatprep.subr.mxu0 0.0
      %4760 = vmatpush1.msra.mxu0 0.0
      %4761 = vmatprep.subr.mxu0 0.0
      %4762 = vmatpush1.msra.mxu0 0.0
      %4763 = vmatprep.subr.mxu0 0.0
      %4764 = vmatpush1.msra.mxu0 0.0
      %4765 = vmatprep.subr.mxu0 0.0
      %4766 = vmatpush1.msra.mxu0 0.0
      %4767 = vmatprep.mubr.f32.mxu0 0.0
      %v4768 = vand.u32 %v4260, 4294901760
      %4769 = vmatmul.mubr.f32.gmra.mrb[0].mxu0 %v4768
      %v4770 = vpop.f32.mrb[0].mxu0
      %v4771 = vadd.f32 %v4691, %v4770
      %v4772 = vpop.f32.mrb[0].mxu0
      %4773 = vmatprep.mubr.f32.mxu0 0.0
      %v4774 = vand.u32 %v4263, 4294901760
      %4775 = vmatmul.mubr.f32.gmra.mrb[0].mxu0 %v4774
      %v4776 = vpop.f32.mrb[0].mxu0
      %v4777 = vadd.f32 %v4697, %v4776
      %v4778 = vpop.f32.mrb[0].mxu0
      %4779 = vdwg.mxu0
      %v4780 = vlaneseq
      %v4781 = vshrl.u32 %v4780, 7
      %v4782 = vadd.s32 %v4781, 8
      %v4783 = vlaneseq
      %v4784 = vand.u32 %v4783, 127
      %vm4785 = vcmp.eq.s32.totalorder %v4781, 0
      %vm4786 = vcmp.eq.s32.totalorder %v4782, 0
      %vm4787 = vcmp.lt.s32.totalorder %v4784, 8
      %vm4788 = vmand %vm4785, %vm4787
      %vm4789 = vmand %vm4786, %vm4787
      %vm4790 = vcmp.eq.s32.totalorder %v4781, 15
      %vm4791 = vcmp.eq.s32.totalorder %v4782, 15
      %vm4792 = vcmp.ge.s32.totalorder %v4784, 8
      %vm4793 = vmand %vm4790, %vm4792
      %vm4794 = vmand %vm4791, %vm4792
      %vm4795 = vmor %vm4788, %vm4793
      %vm4796 = vmor %vm4789, %vm4794
      %v4797 = vsel %vm4795, 1, 0
      %v4798 = vsel %vm4796, 1, 0
      %v4799 = vcvt.s32.f32 %v4797
      %v4800 = vcvt.s32.f32 %v4798
      %v4803 = vcombine.high %v4771, %v4771
      %v4805 = vunpack.c.l.s4 1966171168
      %v4806 = vunpack.c.0.s8 %v4805
      %v4807 = vlaneseq
      %v4808 = vshrl.u32 %v4807, 7
      %v4809 = vsub.s32 %v4806, %v4808
      %v4810 = vrot.slane %v4771, %v4809
      %v4812 = vunpack.c.l.s4 1966171168
      %v4813 = vunpack.c.0.s8 %v4812
      %v4814 = vlaneseq
      %v4815 = vshrl.u32 %v4814, 7
      %v4816 = vsub.s32 %v4813, %v4815
      %v4817 = vrot.slane %v4803, %v4816
      %v4818 = vcombine.high %v4810, %v4810
      %v4819 = vcombine.high %v4817, %v4817
      %v4821 = vunpack.c.l.s4 1966171168
      %v4822 = vunpack.c.0.s8 %v4821
      %v4823 = vlaneseq
      %v4824 = vshrl.u32 %v4823, 7
      %v4825 = vsub.s32 %v4822, %v4824
      %v4826 = vrot.slane %v4810, %v4825
      %v4828 = vunpack.c.l.s4 1966171168
      %v4829 = vunpack.c.0.s8 %v4828
      %v4830 = vlaneseq
      %v4831 = vshrl.u32 %v4830, 7
      %v4832 = vsub.s32 %v4829, %v4831
      %v4833 = vrot.slane %v4817, %v4832
      %v4835 = vunpack.c.l.s4 1966171168
      %v4836 = vunpack.c.0.s8 %v4835
      %v4837 = vlaneseq
      %v4838 = vshrl.u32 %v4837, 7
      %v4839 = vsub.s32 %v4836, %v4838
      %v4840 = vrot.slane %v4818, %v4839
      %v4842 = vunpack.c.l.s4 1966171168
      %v4843 = vunpack.c.0.s8 %v4842
      %v4844 = vlaneseq
      %v4845 = vshrl.u32 %v4844, 7
      %v4846 = vsub.s32 %v4843, %v4845
      %v4847 = vrot.slane %v4819, %v4846
      %v4848 = vcombine.high %v4826, %v4826
      %v4849 = vcombine.high %v4833, %v4833
      %v4850 = vcombine.high %v4840, %v4840
      %v4851 = vcombine.high %v4847, %v4847
      %v4852 = vcombine.high %v4777, %v4777
      %v4854 = vunpack.c.l.s4 1966171168
      %v4855 = vunpack.c.0.s8 %v4854
      %v4856 = vlaneseq
      %v4857 = vshrl.u32 %v4856, 7
      %v4858 = vsub.s32 %v4855, %v4857
      %v4859 = vrot.slane %v4777, %v4858
      %v4861 = vunpack.c.l.s4 1966171168
      %v4862 = vunpack.c.0.s8 %v4861
      %v4863 = vlaneseq
      %v4864 = vshrl.u32 %v4863, 7
      %v4865 = vsub.s32 %v4862, %v4864
      %v4866 = vrot.slane %v4852, %v4865
      %v4867 = vcombine.high %v4859, %v4859
      %v4868 = vcombine.high %v4866, %v4866
      %v4870 = vunpack.c.l.s4 1966171168
      %v4871 = vunpack.c.0.s8 %v4870
      %v4872 = vlaneseq
      %v4873 = vshrl.u32 %v4872, 7
      %v4874 = vsub.s32 %v4871, %v4873
      %v4875 = vrot.slane %v4859, %v4874
      %v4877 = vunpack.c.l.s4 1966171168
      %v4878 = vunpack.c.0.s8 %v4877
      %v4879 = vlaneseq
      %v4880 = vshrl.u32 %v4879, 7
      %v4881 = vsub.s32 %v4878, %v4880
      %v4882 = vrot.slane %v4866, %v4881
      %v4884 = vunpack.c.l.s4 1966171168
      %v4885 = vunpack.c.0.s8 %v4884
      %v4886 = vlaneseq
      %v4887 = vshrl.u32 %v4886, 7
      %v4888 = vsub.s32 %v4885, %v4887
      %v4889 = vrot.slane %v4867, %v4888
      %v4891 = vunpack.c.l.s4 1966171168
      %v4892 = vunpack.c.0.s8 %v4891
      %v4893 = vlaneseq
      %v4894 = vshrl.u32 %v4893, 7
      %v4895 = vsub.s32 %v4892, %v4894
      %v4896 = vrot.slane %v4868, %v4895
      %v4897 = vcombine.high %v4875, %v4875
      %v4898 = vcombine.high %v4882, %v4882
      %v4899 = vcombine.high %v4889, %v4889
      %v4900 = vcombine.high %v4896, %v4896
      %v4901 = vlaneseq
      %v4902 = vshrl.u32 %v4901, 7
      %v4903 = vsub.s32 0, %v4902
      %v4904 = vrot.slane %v4826, %v4903
      %v4905 = vlaneseq
      %v4906 = vshrl.u32 %v4905, 7
      %v4907 = vsub.s32 0, %v4906
      %v4908 = vrot.slane %v4840, %v4907
      %v4909 = vlaneseq
      %v4910 = vshrl.u32 %v4909, 7
      %v4911 = vsub.s32 0, %v4910
      %v4912 = vrot.slane %v4848, %v4911
      %v4913 = vlaneseq
      %v4914 = vshrl.u32 %v4913, 7
      %v4915 = vsub.s32 0, %v4914
      %v4916 = vrot.slane %v4850, %v4915
      %v4917 = vlaneseq
      %v4918 = vshrl.u32 %v4917, 7
      %v4919 = vsub.s32 0, %v4918
      %v4920 = vrot.slane %v4833, %v4919
      %v4921 = vlaneseq
      %v4922 = vshrl.u32 %v4921, 7
      %v4923 = vsub.s32 0, %v4922
      %v4924 = vrot.slane %v4847, %v4923
      %v4925 = vlaneseq
      %v4926 = vshrl.u32 %v4925, 7
      %v4927 = vsub.s32 0, %v4926
      %v4928 = vrot.slane %v4849, %v4927
      %v4929 = vlaneseq
      %v4930 = vshrl.u32 %v4929, 7
      %v4931 = vsub.s32 0, %v4930
      %v4932 = vrot.slane %v4851, %v4931
      %v4933 = vlaneseq
      %v4934 = vshrl.u32 %v4933, 7
      %v4935 = vsub.s32 0, %v4934
      %v4936 = vrot.slane %v4875, %v4935
      %v4937 = vlaneseq
      %v4938 = vshrl.u32 %v4937, 7
      %v4939 = vsub.s32 0, %v4938
      %v4940 = vrot.slane %v4889, %v4939
      %v4941 = vlaneseq
      %v4942 = vshrl.u32 %v4941, 7
      %v4943 = vsub.s32 0, %v4942
      %v4944 = vrot.slane %v4897, %v4943
      %v4945 = vlaneseq
      %v4946 = vshrl.u32 %v4945, 7
      %v4947 = vsub.s32 0, %v4946
      %v4948 = vrot.slane %v4899, %v4947
      %v4949 = vlaneseq
      %v4950 = vshrl.u32 %v4949, 7
      %v4951 = vsub.s32 0, %v4950
      %v4952 = vrot.slane %v4882, %v4951
      %v4953 = vlaneseq
      %v4954 = vshrl.u32 %v4953, 7
      %v4955 = vsub.s32 0, %v4954
      %v4956 = vrot.slane %v4896, %v4955
      %v4957 = vlaneseq
      %v4958 = vshrl.u32 %v4957, 7
      %v4959 = vsub.s32 0, %v4958
      %v4960 = vrot.slane %v4898, %v4959
      %v4961 = vlaneseq
      %v4962 = vshrl.u32 %v4961, 7
      %v4963 = vsub.s32 0, %v4962
      %v4964 = vrot.slane %v4900, %v4963
      %v4981 = vmul.f32 %v4904, %v4799
      %v4982 = vmul.f32 %v4904, %v4800
      %v4983 = vmul.f32 %v4908, %v4799
      %v4984 = vmul.f32 %v4908, %v4800
      %v4985 = vmul.f32 %v4912, %v4799
      %v4986 = vmul.f32 %v4912, %v4800
      %v4987 = vmul.f32 %v4916, %v4799
      %v4988 = vmul.f32 %v4916, %v4800
      %v4989 = vmul.f32 %v4920, %v4799
      %v4990 = vmul.f32 %v4920, %v4800
      %v4991 = vmul.f32 %v4924, %v4799
      %v4992 = vmul.f32 %v4924, %v4800
      %v4993 = vmul.f32 %v4928, %v4799
      %v4994 = vmul.f32 %v4928, %v4800
      %v4995 = vmul.f32 %v4932, %v4799
      %v4996 = vmul.f32 %v4932, %v4800
      %v4997 = vmul.f32 %v4936, %v4799
      %v4998 = vmul.f32 %v4936, %v4800
      %v4999 = vmul.f32 %v4940, %v4799
      %v5000 = vmul.f32 %v4940, %v4800
      %v5001 = vmul.f32 %v4944, %v4799
      %v5002 = vmul.f32 %v4944, %v4800
      %v5003 = vmul.f32 %v4948, %v4799
      %v5004 = vmul.f32 %v4948, %v4800
      %v5005 = vmul.f32 %v4952, %v4799
      %v5006 = vmul.f32 %v4952, %v4800
      %v5007 = vmul.f32 %v4956, %v4799
      %v5008 = vmul.f32 %v4956, %v4800
      %v5009 = vmul.f32 %v4960, %v4799
      %v5010 = vmul.f32 %v4960, %v4800
      %v5011 = vmul.f32 %v4964, %v4799
      %v5012 = vmul.f32 %v4964, %v4800
      %v5013 = vsub.f32 %v3598, %v4981
      %v5014 = vsub.f32 %v3604, %v4982
      %v5015 = vsub.f32 %v3610, %v4983
      %v5016 = vsub.f32 %v3616, %v4984
      %v5017 = vsub.f32 %v3622, %v4985
      %v5018 = vsub.f32 %v3628, %v4986
      %v5019 = vsub.f32 %v3634, %v4987
      %v5020 = vsub.f32 %v3640, %v4988
      %v5021 = vsub.f32 %v3646, %v4989
      %v5022 = vsub.f32 %v3652, %v4990
      %v5023 = vsub.f32 %v3658, %v4991
      %v5024 = vsub.f32 %v3664, %v4992
      %v5025 = vsub.f32 %v3670, %v4993
      %v5026 = vsub.f32 %v3676, %v4994
      %v5027 = vsub.f32 %v3682, %v4995
      %v5028 = vsub.f32 %v3688, %v4996
      %v5029 = vsub.f32 %v3694, %v4997
      %v5030 = vsub.f32 %v3700, %v4998
      %v5031 = vsub.f32 %v3706, %v4999
      %v5032 = vsub.f32 %v3712, %v5000
      %v5033 = vsub.f32 %v3718, %v5001
      %v5034 = vsub.f32 %v3724, %v5002
      %v5035 = vsub.f32 %v3730, %v5003
      %v5036 = vsub.f32 %v3736, %v5004
      %v5037 = vsub.f32 %v3742, %v5005
      %v5038 = vsub.f32 %v3748, %v5006
      %v5039 = vsub.f32 %v3754, %v5007
      %v5040 = vsub.f32 %v3760, %v5008
      %v5041 = vsub.f32 %v3766, %v5009
      %v5042 = vsub.f32 %v3772, %v5010
      %v5043 = vsub.f32 %v3778, %v5011
      %v5044 = vsub.f32 %v3784, %v5012
      %v5045 = vld [vmem:[%s5] sm:$0x1]
      %v5047 = vlaneseq
      %v5048 = vshrl.u32 %v5047, 7
      %v5049 = vsub.s32 0, %v5048
      %v5050 = vrot.slane %v5045, %v5049
      %v5052 = vadd.f32 %v5013, %v5050
      %v5053 = vadd.f32 %v5014, %v5050
      %v5054 = vadd.f32 %v5015, %v5050
      %v5055 = vadd.f32 %v5016, %v5050
      %v5056 = vadd.f32 %v5017, %v5050
      %v5057 = vadd.f32 %v5018, %v5050
      %v5058 = vadd.f32 %v5019, %v5050
      %v5059 = vadd.f32 %v5020, %v5050
      %v5060 = vadd.f32 %v5021, %v5050
      %v5061 = vadd.f32 %v5022, %v5050
      %v5062 = vadd.f32 %v5023, %v5050
      %v5063 = vadd.f32 %v5024, %v5050
      %v5064 = vadd.f32 %v5025, %v5050
      %v5065 = vadd.f32 %v5026, %v5050
      %v5066 = vadd.f32 %v5027, %v5050
      %v5067 = vadd.f32 %v5028, %v5050
      %v5068 = vadd.f32 %v5029, %v5050
      %v5069 = vadd.f32 %v5030, %v5050
      %v5070 = vadd.f32 %v5031, %v5050
      %v5071 = vadd.f32 %v5032, %v5050
      %v5072 = vadd.f32 %v5033, %v5050
      %v5073 = vadd.f32 %v5034, %v5050
      %v5074 = vadd.f32 %v5035, %v5050
      %v5075 = vadd.f32 %v5036, %v5050
      %v5076 = vadd.f32 %v5037, %v5050
      %v5077 = vadd.f32 %v5038, %v5050
      %v5078 = vadd.f32 %v5039, %v5050
      %v5079 = vadd.f32 %v5040, %v5050
      %v5080 = vadd.f32 %v5041, %v5050
      %v5081 = vadd.f32 %v5042, %v5050
      %v5082 = vadd.f32 %v5043, %v5050
      %v5083 = vadd.f32 %v5044, %v5050
      %v5084 = vmax.f32 %v5052, 0.0
      %v5085 = vmax.f32 %v5053, 0.0
      %v5086 = vmax.f32 %v5054, 0.0
      %v5087 = vmax.f32 %v5055, 0.0
      %v5088 = vmax.f32 %v5056, 0.0
      %v5089 = vmax.f32 %v5057, 0.0
      %v5090 = vmax.f32 %v5058, 0.0
      %v5091 = vmax.f32 %v5059, 0.0
      %v5092 = vmax.f32 %v5060, 0.0
      %v5093 = vmax.f32 %v5061, 0.0
      %v5094 = vmax.f32 %v5062, 0.0
      %v5095 = vmax.f32 %v5063, 0.0
      %v5096 = vmax.f32 %v5064, 0.0
      %v5097 = vmax.f32 %v5065, 0.0
      %v5098 = vmax.f32 %v5066, 0.0
      %v5099 = vmax.f32 %v5067, 0.0
      %v5100 = vmax.f32 %v5068, 0.0
      %v5101 = vmax.f32 %v5069, 0.0
      %v5102 = vmax.f32 %v5070, 0.0
      %v5103 = vmax.f32 %v5071, 0.0
      %v5104 = vmax.f32 %v5072, 0.0
      %v5105 = vmax.f32 %v5073, 0.0
      %v5106 = vmax.f32 %v5074, 0.0
      %v5107 = vmax.f32 %v5075, 0.0
      %v5108 = vmax.f32 %v5076, 0.0
      %v5109 = vmax.f32 %v5077, 0.0
      %v5110 = vmax.f32 %v5078, 0.0
      %v5111 = vmax.f32 %v5079, 0.0
      %v5112 = vmax.f32 %v5080, 0.0
      %v5113 = vmax.f32 %v5081, 0.0
      %v5114 = vmax.f32 %v5082, 0.0
      %v5115 = vmax.f32 %v5083, 0.0
      %5116 = vst.msk [vmem:[%s422] sm:$0xff] %vm1685, %v5084
      %5117 = vst.msk [vmem:[%s422 + $0x8] sm:$0xff] %vm1685, %v5085
      %5118 = vst.msk [vmem:[%s422 + $0x10] sm:$0xff] %vm1685, %v5086
      %5119 = vst.msk [vmem:[%s422 + $0x18] sm:$0xff] %vm1685, %v5087
      %5120 = vst.msk [vmem:[%s422 + $0x20] sm:$0xff] %vm1685, %v5088
      %5121 = vst.msk [vmem:[%s422 + $0x28] sm:$0xff] %vm1685, %v5089
      %5122 = vst.msk [vmem:[%s422 + $0x30] sm:$0xff] %vm1685, %v5090
      %5123 = vst.msk [vmem:[%s422 + $0x38] sm:$0xff] %vm1685, %v5091
      %5124 = vst.msk [vmem:[%s422 + $0x40] sm:$0xff] %vm1685, %v5092
      %5125 = vst.msk [vmem:[%s422 + $0x48] sm:$0xff] %vm1685, %v5093
      %5126 = vst.msk [vmem:[%s422 + $0x50] sm:$0xff] %vm1685, %v5094
      %5127 = vst.msk [vmem:[%s422 + $0x58] sm:$0xff] %vm1685, %v5095
      %5128 = vst.msk [vmem:[%s422 + $0x60] sm:$0xff] %vm1685, %v5096
      %5129 = vst.msk [vmem:[%s422 + $0x68] sm:$0xff] %vm1685, %v5097
      %5130 = vst.msk [vmem:[%s422 + $0x70] sm:$0xff] %vm1685, %v5098
      %5131 = vst.msk [vmem:[%s422 + $0x78] sm:$0xff] %vm1685, %v5099
      %5132 = vst.msk [vmem:[%s422 + $0x80] sm:$0xff] %vm1685, %v5100
      %5133 = vst.msk [vmem:[%s422 + $0x88] sm:$0xff] %vm1685, %v5101
      %5134 = vst.msk [vmem:[%s422 + $0x90] sm:$0xff] %vm1685, %v5102
      %5135 = vst.msk [vmem:[%s422 + $0x98] sm:$0xff] %vm1685, %v5103
      %5136 = vst.msk [vmem:[%s422 + $0xa0] sm:$0xff] %vm1685, %v5104
      %5137 = vst.msk [vmem:[%s422 + $0xa8] sm:$0xff] %vm1685, %v5105
      %5138 = vst.msk [vmem:[%s422 + $0xb0] sm:$0xff] %vm1685, %v5106
      %5139 = vst.msk [vmem:[%s422 + $0xb8] sm:$0xff] %vm1685, %v5107
      %5140 = vst.msk [vmem:[%s422 + $0xc0] sm:$0xff] %vm1685, %v5108
      %5141 = vst.msk [vmem:[%s422 + $0xc8] sm:$0xff] %vm1685, %v5109
      %5142 = vst.msk [vmem:[%s422 + $0xd0] sm:$0xff] %vm1685, %v5110
      %5143 = vst.msk [vmem:[%s422 + $0xd8] sm:$0xff] %vm1685, %v5111
      %5144 = vst.msk [vmem:[%s422 + $0xe0] sm:$0xff] %vm1685, %v5112
      %5145 = vst.msk [vmem:[%s422 + $0xe8] sm:$0xff] %vm1685, %v5113
      %5146 = vst.msk [vmem:[%s422 + $0xf0] sm:$0xff] %vm1685, %v5114
      %5147 = vst.msk [vmem:[%s422 + $0xf8] sm:$0xff] %vm1685, %v5115
      %s5148 = smul.u32 16, %s22
      %p5149 = scmp.lt.s32.totalorder %s21, 1
      %s5150 = scalar_select %p5149, %s21, 1
      %p5151 = scmp.lt.s32.totalorder %s5148, 31
      %s5152 = scalar_select %p5151, %s5148, 31
      %s5153 = smul.addr %s5152, 2
      %s5154 = smul.addr %s5150, 64
      %s5155 = sadd.s32 %s5153, %s5154
      %s5156 = smul.addr %s5155, 8
      %s5157 = scalar_lea.vmem %s6, %s5156
      // Predicated region
      $region45: #{upconv_forward.1} parent=43 // pred_check
        %p5158 = pneg %p206
      $region46: #{upconv_forward.1} parent=43 // pred_check_branch
        %5160 = sbr.rel (%p5158) target = $region48
      $region47: #{upconv_forward.1} parent=43 // pred_region
        %s5161 = smul.u32 16, %s22
      $region48: #{upconv_forward.1} parent=43 // pred_fallthru
        _
    $region44: #{upconv_forward.1} parent=5 // pred_fallthru
      _
    %p5162 = scmp.le.s32.totalorder 2, %s12
    // Predicated region
    $region49: #{upconv_forward.1} parent=5 // pred_check
      %p5163 = pneg %p5162
    $region50: #{upconv_forward.1} parent=5 // pred_check_branch
      %5165 = sbr.rel (%p5163) target = $region52
    $region51: #{upconv_forward.1} parent=5 // pred_region
      %s5166 = ssub.s32 %s12, 2
      // Predicated region
      $region53: #{upconv_forward.1} parent=51 // pred_check
        %p5167 = pneg %p212
      $region54: #{upconv_forward.1} parent=51 // pred_check_branch
        %5169 = sbr.rel (%p5167) target = $region56
      $region55: #{upconv_forward.1} parent=51 // pred_region
        %s5170 = smul.u32 16, %s24
        %p5171 = scmp.lt.s32.totalorder %s23, 1
        %s5172 = scalar_select %p5171, %s23, 1
        %p5173 = scmp.lt.s32.totalorder %s5170, 31
        %s5174 = scalar_select %p5173, %s5170, 31
        %s5175 = smul.addr %s5174, 2
        %s5176 = smul.addr %s5172, 64
        %s5177 = sadd.s32 %s5175, %s5176
        %s5178 = smul.addr %s5177, 8
        %s5179 = scalar_lea.vmem %s6, %s5178
      $region56: #{upconv_forward.1} parent=51 // pred_fallthru
        _
    $region52: #{upconv_forward.1} parent=5 // pred_fallthru
      _
  $region6: #{upconv_forward.1} parent=0 // loop_footer
    %s16 = sadd.s32 1, %s12
  $region7: #{upconv_forward.1} parent=0 // loop_footer_branch
    %11 = sbr.rel target = $region3
  $region8: #{upconv_forward.1} parent=0 // loop_exit
    _

</llo_original>
